<compile_context>
chip_gen: v7x
topology: tpu7x:2x2x1
jax: 0.10.0
libtpu: 0.0.40
codegen_flags: <defaults>
</compile_context>

<pallas_src>
import functools
import math

import jax
import jax.numpy as jnp
from jax.experimental import pallas as pl
from jax.experimental.pallas import tpu as pltpu

_LN_EPS = 1e-5
_INV_SQRT2 = 1.0 / math.sqrt(2.0)


# ----------------------------- in-kernel helpers ----------------------------

def _layernorm(x, g, b):
    # fp32 layernorm (eps matches nn.LayerNorm default)
    mu = jnp.mean(x, axis=-1, keepdims=True)
    var = jnp.mean(jnp.square(x - mu), axis=-1, keepdims=True)
    return (x - mu) * jax.lax.rsqrt(var + _LN_EPS) * g + b


def _mm_bias(x_bf16, w_ref, b_ref):
    # bf16 operands, fp32 accumulate on the MXU, fp32 bias add
    return jnp.dot(x_bf16, w_ref[...], preferred_element_type=jnp.float32) + b_ref[...]


def _attention(x, g_ref, be_ref, wq_ref, bq_ref, wk_ref, bk_ref, wv_ref, bv_ref, scale):
    """LN1 + (block-diagonal per-head) Q/K/V + full-D attention.  x: (S, D) fp32.

    Matches the PyTorch reference exactly: scores are taken over the FULL feature
    dim (heads get mixed), scaled by 1/sqrt(d_head).  Returns bf16 (S, D).
    """
    xn = _layernorm(x, g_ref[...], be_ref[...])
    xb = xn.astype(jnp.bfloat16)
    q = _mm_bias(xb, wq_ref, bq_ref)
    k = _mm_bias(xb, wk_ref, bk_ref)
    v = _mm_bias(xb, wv_ref, bv_ref)
    s = jax.lax.dot_general(q.astype(jnp.bfloat16), k.astype(jnp.bfloat16),
                            (((1,), (1,)), ((), ())),
                            preferred_element_type=jnp.float32) * scale
    s = s - jnp.max(s, axis=-1, keepdims=True)
    p = jnp.exp(s)
    p = p * pl.reciprocal(jnp.sum(p, axis=-1, keepdims=True), approx=True)
    o = jnp.dot(p.astype(jnp.bfloat16), v.astype(jnp.bfloat16),
                preferred_element_type=jnp.float32)
    return o.astype(jnp.bfloat16)


def _ffn_half(x, a_bf16, wo_ref, bo_ref, g2_ref, be2_ref, w1_ref, b1_ref, w2_ref, b2_ref):
    """out-proj + residual + LN2 + MLP(GELU) + residual.  x: (S, D) fp32, a: (S, D) bf16."""
    x = x + _mm_bias(a_bf16, wo_ref, bo_ref)                       # residual 1 (dropout=id)
    xn = _layernorm(x, g2_ref[...], be2_ref[...])
    h = _mm_bias(xn.astype(jnp.bfloat16), w1_ref, b1_ref)          # (S, 4D)
    h = 0.5 * h * (1.0 + jax.lax.erf(h * _INV_SQRT2))              # exact GELU (nn.GELU)
    return x + _mm_bias(h.astype(jnp.bfloat16), w2_ref, b2_ref)    # residual 2 (dropout=id)


# ----------------------------- Pallas kernels -------------------------------

def _embed_attn_kernel(p_ref, pw_ref, tok_ref,
                       g1_ref, be1_ref, wq_ref, bq_ref, wk_ref, bk_ref, wv_ref, bv_ref,
                       x_ref, a_ref, *, scale):
    """Patch embed + token assembly + first block's attention.  One image per step.

    p_ref: (S, K) fp32, row 0 is zeros (cls slot); tok_ref: (S, D) fp32 additive
    table = pos + [cls | conv_bias broadcast], so x = p @ Wp + tok reproduces
    conv-patch-embed + cls concat + positional add exactly.
    """
    x = jnp.dot(p_ref[...].astype(jnp.bfloat16), pw_ref[...],
                preferred_element_type=jnp.float32) + tok_ref[...]          # (S, D)
    x_ref[...] = x
    a_ref[...] = _attention(x, g1_ref, be1_ref, wq_ref, bq_ref,
                            wk_ref, bk_ref, wv_ref, bv_ref, scale)


def _ffn_attn_kernel(x_ref, a_ref,
                     wo_ref, bo_ref, g2_ref, be2_ref, w1_ref, b1_ref, w2_ref, b2_ref,
                     g1n_ref, be1n_ref, wqn_ref, bqn_ref, wkn_ref, bkn_ref, wvn_ref, bvn_ref,
                     xo_ref, ao_ref, *, scale):
    """Block i-1 second half (out-proj/MLP/residuals) + block i attention."""
    x = _ffn_half(x_ref[...], a_ref[...], wo_ref, bo_ref, g2_ref, be2_ref,
                  w1_ref, b1_ref, w2_ref, b2_ref)
    xo_ref[...] = x
    ao_ref[...] = _attention(x, g1n_ref, be1n_ref, wqn_ref, bqn_ref,
                             wkn_ref, bkn_ref, wvn_ref, bvn_ref, scale)


def _ffn_head_kernel(x_ref, a_ref,
                     wo_ref, bo_ref, g2_ref, be2_ref, w1_ref, b1_ref, w2_ref, b2_ref,
                     hg_ref, hb_ref, hw_ref, hbias_ref, o_ref):
    """Last block second half + classification head (LN + Linear on the cls row)."""
    x = _ffn_half(x_ref[...], a_ref[...], wo_ref, bo_ref, g2_ref, be2_ref,
                  w1_ref, b1_ref, w2_ref, b2_ref)
    cls = x[0:1, :]                                                  # (1, D)
    cn = _layernorm(cls, hg_ref[...], hb_ref[...])
    o_ref[...] = _mm_bias(cn.astype(jnp.bfloat16), hw_ref, hbias_ref)  # (1, O)


# ----------------------------- pallas_call wrappers -------------------------

def _seq_spec(S, D):
    return pl.BlockSpec((None, S, D), lambda b: (b, 0, 0))


def _rep_spec(shape):
    return pl.BlockSpec(shape, lambda b: (0, 0))


def _parallel_params():
    return pltpu.CompilerParams(dimension_semantics=("parallel",))


def _embed_attn(patches_ext, patch_w, tok_add, blk, scale):
    N, S, K = patches_ext.shape
    D = patch_w.shape[1]
    return pl.pallas_call(
        functools.partial(_embed_attn_kernel, scale=scale),
        out_shape=(jax.ShapeDtypeStruct((N, S, D), jnp.float32),
                   jax.ShapeDtypeStruct((N, S, D), jnp.bfloat16)),
        grid=(N,),
        in_specs=[_seq_spec(S, K),
                  _rep_spec((K, D)), _rep_spec((S, D)),
                  _rep_spec((1, D)), _rep_spec((1, D)),
                  _rep_spec((D, D)), _rep_spec((1, D)),
                  _rep_spec((D, D)), _rep_spec((1, D)),
                  _rep_spec((D, D)), _rep_spec((1, D))],
        out_specs=(_seq_spec(S, D), _seq_spec(S, D)),
        compiler_params=_parallel_params(),
    )(patches_ext, patch_w, tok_add,
      blk["ln1_g"], blk["ln1_b"],
      blk["wq"], blk["bq"], blk["wk"], blk["bk"], blk["wv"], blk["bv"])


def _ffn_attn(x_seq, ao, blk_prev, blk_next, scale):
    N, S, D = x_seq.shape
    D4 = blk_prev["w1"].shape[1]
    return pl.pallas_call(
        functools.partial(_ffn_attn_kernel, scale=scale),
        out_shape=(jax.ShapeDtypeStruct((N, S, D), jnp.float32),
                   jax.ShapeDtypeStruct((N, S, D), jnp.bfloat16)),
        grid=(N,),
        in_specs=[_seq_spec(S, D), _seq_spec(S, D),
                  _rep_spec((D, D)), _rep_spec((1, D)),     # wo, bo
                  _rep_spec((1, D)), _rep_spec((1, D)),     # ln2
                  _rep_spec((D, D4)), _rep_spec((1, D4)),   # w1, b1
                  _rep_spec((D4, D)), _rep_spec((1, D)),    # w2, b2
                  _rep_spec((1, D)), _rep_spec((1, D)),     # next block ln1
                  _rep_spec((D, D)), _rep_spec((1, D)),     # next block wq, bq
                  _rep_spec((D, D)), _rep_spec((1, D)),     # next block wk, bk
                  _rep_spec((D, D)), _rep_spec((1, D))],    # next block wv, bv
        out_specs=(_seq_spec(S, D), _seq_spec(S, D)),
        input_output_aliases={0: 0},   # residual stream updated in place
        compiler_params=_parallel_params(),
    )(x_seq, ao,
      blk_prev["wo"], blk_prev["bo"], blk_prev["ln2_g"], blk_prev["ln2_b"],
      blk_prev["w1"], blk_prev["b1"], blk_prev["w2"], blk_prev["b2"],
      blk_next["ln1_g"], blk_next["ln1_b"],
      blk_next["wq"], blk_next["bq"], blk_next["wk"], blk_next["bk"],
      blk_next["wv"], blk_next["bv"])


def _ffn_head(x_seq, ao, blk, hg, hb, hw, hbias):
    N, S, D = x_seq.shape
    D4 = blk["w1"].shape[1]
    O = hw.shape[1]
    out = pl.pallas_call(
        _ffn_head_kernel,
        out_shape=jax.ShapeDtypeStruct((N, 1, O), jnp.float32),
        grid=(N,),
        in_specs=[_seq_spec(S, D), _seq_spec(S, D),
                  _rep_spec((D, D)), _rep_spec((1, D)),
                  _rep_spec((1, D)), _rep_spec((1, D)),
                  _rep_spec((D, D4)), _rep_spec((1, D4)),
                  _rep_spec((D4, D)), _rep_spec((1, D)),
                  _rep_spec((1, D)), _rep_spec((1, D)),     # head ln
                  _rep_spec((D, O)), _rep_spec((1, O))],    # head linear
        out_specs=pl.BlockSpec((None, 1, O), lambda b: (b, 0, 0)),
        compiler_params=_parallel_params(),
    )(x_seq, ao,
      blk["wo"], blk["bo"], blk["ln2_g"], blk["ln2_b"],
      blk["w1"], blk["b1"], blk["w2"], blk["b2"],
      hg, hb, hw, hbias)
    return out.reshape(N, O)


# ----------------------------- parameters -----------------------------------

def get_positional_embeddings(seq_len, d):
    i = jnp.arange(seq_len, dtype=jnp.float32)[:, None]
    j = jnp.arange(d, dtype=jnp.float32)[None, :]
    angle = i / jnp.power(10000.0, 2.0 * j / d)
    even = (jnp.arange(d) % 2 == 0)[None, :]
    return jnp.where(even, jnp.sin(angle), jnp.cos(angle)).astype(jnp.float32)


def init_params(key, chw, n_patches, n_blocks, hidden_d, n_heads, out_d, mlp_ratio=4):
    C, H, W = chw
    ph, pw = H // n_patches, W // n_patches
    input_d = C * ph * pw
    d_head = hidden_d // n_heads
    P2 = n_patches * n_patches
    S = P2 + 1
    row = lambda v: v.reshape(1, -1)

    def linear(k, fan_in, fan_out):
        kw, kb = jax.random.split(k)
        lim = 1.0 / math.sqrt(fan_in)
        w = jax.random.uniform(kw, (fan_in, fan_out), jnp.float32, -lim, lim)
        b = jax.random.uniform(kb, (fan_out,), jnp.float32, -lim, lim)
        return w, b

    def blockdiag(k):
        # n_heads independent (d_head, d_head) Linears == one block-diagonal (D, D).
        ks = jax.random.split(k, n_heads)
        w_full = jnp.zeros((hidden_d, hidden_d), jnp.float32)
        b_parts = []
        for h in range(n_heads):
            wh, bh = linear(ks[h], d_head, d_head)
            w_full = w_full.at[h * d_head:(h + 1) * d_head,
                               h * d_head:(h + 1) * d_head].set(wh)
            b_parts.append(bh)
        return w_full, jnp.concatenate(b_parts)

    keys = jax.random.split(key, 3 + n_blocks)
    params = {}

    # Conv2d(C, hidden_d, kernel=stride=patch) folded into a dense (input_d, D) matmul.
    lim = 1.0 / math.sqrt(input_d)
    kcw, kcb = jax.random.split(keys[0])
    conv_w = jax.random.uniform(kcw, (hidden_d, C, ph, pw), jnp.float32, -lim, lim)
    conv_b = jax.random.uniform(kcb, (hidden_d,), jnp.float32, -lim, lim)
    params["patch_w"] = conv_w.reshape(hidden_d, input_d).T.astype(jnp.bfloat16)

    # Additive token table: row 0 = cls + pos[0], rows 1.. = conv_bias + pos[1..].
    # Combined with a zero row prepended to the patches, this reproduces
    # conv-embed + cls concat + positional add in a single fused matmul+add.
    cls = jax.random.uniform(keys[1], (1, hidden_d), jnp.float32)
    pos = get_positional_embeddings(S, hidden_d)
    params["tok_add"] = jnp.concatenate(
        [cls, jnp.broadcast_to(conv_b[None, :], (P2, hidden_d))], axis=0) + pos

    blocks = []
    for bi in range(n_blocks):
        bkeys = jax.random.split(keys[3 + bi], 6)
        wq, bq = blockdiag(bkeys[0])
        wk, bk = blockdiag(bkeys[1])
        wv, bv = blockdiag(bkeys[2])
        wo, bo = linear(bkeys[3], hidden_d, hidden_d)
        w1, b1 = linear(bkeys[4], hidden_d, mlp_ratio * hidden_d)
        w2, b2 = linear(bkeys[5], mlp_ratio * hidden_d, hidden_d)
        blocks.append(dict(
            ln1_g=row(jnp.ones(hidden_d, jnp.float32)),
            ln1_b=row(jnp.zeros(hidden_d, jnp.float32)),
            wq=wq.astype(jnp.bfloat16), bq=row(bq),
            wk=wk.astype(jnp.bfloat16), bk=row(bk),
            wv=wv.astype(jnp.bfloat16), bv=row(bv),
            wo=wo.astype(jnp.bfloat16), bo=row(bo),
            ln2_g=row(jnp.ones(hidden_d, jnp.float32)),
            ln2_b=row(jnp.zeros(hidden_d, jnp.float32)),
            w1=w1.astype(jnp.bfloat16), b1=row(b1),
            w2=w2.astype(jnp.bfloat16), b2=row(b2),
        ))
    params["blocks"] = blocks

    wh, bh = linear(keys[2], hidden_d, out_d)
    params["head_ln_g"] = row(jnp.ones(hidden_d, jnp.float32))
    params["head_ln_b"] = row(jnp.zeros(hidden_d, jnp.float32))
    params["head_w"] = wh.astype(jnp.bfloat16)
    params["head_b"] = row(bh)
    return params


# ----------------------------- forward ---------------------------------------

def vit_forward(params, x, *, n_patches, n_heads):
    N, C, H, W = x.shape
    ph, pw = H // n_patches, W // n_patches
    K = C * ph * pw
    D = params["patch_w"].shape[1]
    d_head = D // n_heads
    P2 = n_patches * n_patches
    S = P2 + 1
    scale = 1.0 / math.sqrt(d_head)
    blocks = params["blocks"]

    # im2col (XLA glue): (N,C,H,W) -> (N,P2,K), per-patch flatten order (c,a,b)
    # matching Conv2d(kernel=stride=patch) folded into a dense matmul.  A zero row
    # is prepended so the cls/pos assembly happens inside the first kernel.
    patches = x.reshape(N, C, n_patches, ph, n_patches, pw)
    patches = patches.transpose(0, 2, 4, 1, 3, 5).reshape(N, P2, K)
    patches_ext = jnp.concatenate([jnp.zeros((N, 1, K), x.dtype), patches], axis=1)

    # K0: patch embed + tokens + block 0 attention
    x_seq, attn = _embed_attn(patches_ext, params["patch_w"], params["tok_add"],
                              blocks[0], scale)

    # Ki: block i-1 FFN half + block i attention.  The only XLA op per block is the
    # reference's transpose(1,2).contiguous().view(B,S,D) scramble on a ~2 KB bf16
    # slab (not expressible in-kernel; see module TODO).
    for i in range(1, len(blocks)):
        ao = jnp.transpose(attn, (0, 2, 1)).reshape(N, S, D)
        x_seq, attn = _ffn_attn(x_seq, ao, blocks[i - 1], blocks[i], scale)

    # KL: last block FFN half + classification head
    ao = jnp.transpose(attn, (0, 2, 1)).reshape(N, S, D)
    logits = _ffn_head(x_seq, ao, blocks[-1],
                       params["head_ln_g"], params["head_ln_b"],
                       params["head_w"], params["head_b"])
    return logits


# ----------------------------- main -------------------------------------------

if __name__ == "__main__":
    chw = (4, 16, 16)
    n_patches, n_blocks, hidden_d, n_heads, out_d = 4, 2, 32, 2, 10

    key = jax.random.PRNGKey(0)
    kx, kp = jax.random.split(key)
    x = jax.random.normal(kx, (2,) + chw, jnp.float32)

    params = init_params(kp, chw, n_patches, n_blocks, hidden_d, n_heads, out_d)
    fwd = jax.jit(functools.partial(vit_forward, n_patches=n_patches, n_heads=n_heads))
    logits = fwd(params, x)
    jax.block_until_ready(logits)
    assert logits.shape == (2, out_d), logits.shape
    assert bool(jnp.all(jnp.isfinite(logits)))
    print("KERNEL_OK")
</pallas_src>

<mosaic_0001>
module attributes {stable_mosaic.version = 11 : i64} {
  func.func @_embed_attn_kernel(%arg0: i32, %arg1: memref<1x17x64xf32, #tpu.memory_space<vmem>>, %arg2: memref<64x32xbf16, #tpu.memory_space<vmem>>, %arg3: memref<17x32xf32, #tpu.memory_space<vmem>>, %arg4: memref<1x32xf32, #tpu.memory_space<vmem>>, %arg5: memref<1x32xf32, #tpu.memory_space<vmem>>, %arg6: memref<32x32xbf16, #tpu.memory_space<vmem>>, %arg7: memref<1x32xf32, #tpu.memory_space<vmem>>, %arg8: memref<32x32xbf16, #tpu.memory_space<vmem>>, %arg9: memref<1x32xf32, #tpu.memory_space<vmem>>, %arg10: memref<32x32xbf16, #tpu.memory_space<vmem>>, %arg11: memref<1x32xf32, #tpu.memory_space<vmem>>, %arg12: memref<1x17x32xf32, #tpu.memory_space<vmem>>, %arg13: memref<1x17x32xbf16, #tpu.memory_space<vmem>>) attributes {dimension_semantics = [#tpu.dimension_semantics<parallel>], iteration_bounds = array<i64: 2>, scalar_prefetch = 0 : i64, scratch_operands = 0 : i64, tpu.core_type = #tpu.core_type<tc>, window_params = [{transform_indices = @transform_0, window_bounds = array<i64: 1, 17, 64>}, {pipeline_mode = #tpu.pipeline_mode<synchronous>, transform_indices = @transform_1, window_bounds = array<i64: 64, 32>}, {pipeline_mode = #tpu.pipeline_mode<synchronous>, transform_indices = @transform_2, window_bounds = array<i64: 17, 32>}, {pipeline_mode = #tpu.pipeline_mode<synchronous>, transform_indices = @transform_3, window_bounds = array<i64: 1, 32>}, {pipeline_mode = #tpu.pipeline_mode<synchronous>, transform_indices = @transform_4, window_bounds = array<i64: 1, 32>}, {pipeline_mode = #tpu.pipeline_mode<synchronous>, transform_indices = @transform_5, window_bounds = array<i64: 32, 32>}, {pipeline_mode = #tpu.pipeline_mode<synchronous>, transform_indices = @transform_6, window_bounds = array<i64: 1, 32>}, {pipeline_mode = #tpu.pipeline_mode<synchronous>, transform_indices = @transform_7, window_bounds = array<i64: 32, 32>}, {pipeline_mode = #tpu.pipeline_mode<synchronous>, transform_indices = @transform_8, window_bounds = array<i64: 1, 32>}, {pipeline_mode = #tpu.pipeline_mode<synchronous>, transform_indices = @transform_9, window_bounds = array<i64: 32, 32>}, {pipeline_mode = #tpu.pipeline_mode<synchronous>, transform_indices = @transform_10, window_bounds = array<i64: 1, 32>}, {transform_indices = @transform_11, window_bounds = array<i64: 1, 17, 32>}, {transform_indices = @transform_12, window_bounds = array<i64: 1, 17, 32>}]} {
    %c0 = arith.constant 0 : index
    %c0_0 = arith.constant 0 : index
    %c0_1 = arith.constant 0 : index
    %0 = vector.load %arg1[%c0, %c0_0, %c0_1] : memref<1x17x64xf32, #tpu.memory_space<vmem>>, vector<1x17x64xf32>
    %1 = vector.shape_cast %0 : vector<1x17x64xf32> to vector<17x64xf32>
    %2 = arith.truncf %1 : vector<17x64xf32> to vector<17x64xbf16>
    %c0_2 = arith.constant 0 : index
    %c0_3 = arith.constant 0 : index
    %3 = vector.load %arg2[%c0_2, %c0_3] : memref<64x32xbf16, #tpu.memory_space<vmem>>, vector<64x32xbf16>
    %cst = arith.constant dense<0.000000e+00> : vector<17x32xf32>
    %4 = tpu.matmul %2, %3, %cst {dimension_numbers = #tpu.dot_dimension_numbers<[1], [0], [0], [1], [0, 0, 1, 1], [], []>} : vector<17x64xbf16>, vector<64x32xbf16>, vector<17x32xf32> -> vector<17x32xf32>
    %c0_4 = arith.constant 0 : index
    %c0_5 = arith.constant 0 : index
    %5 = vector.load %arg3[%c0_4, %c0_5] : memref<17x32xf32, #tpu.memory_space<vmem>>, vector<17x32xf32>
    %6 = arith.addf %4, %5 : vector<17x32xf32>
    %c0_6 = arith.constant 0 : index
    %c0_7 = arith.constant 0 : index
    %c0_8 = arith.constant 0 : index
    %7 = vector.load %arg12[%c0_6, %c0_7, %c0_8] : memref<1x17x32xf32, #tpu.memory_space<vmem>>, vector<1x17x32xf32>
    %8 = vector.shape_cast %7 : vector<1x17x32xf32> to vector<17x32xf32>
    %9 = vector.shape_cast %6 : vector<17x32xf32> to vector<1x17x32xf32>
    tpu.vector_store %arg12[%c0_6, %c0_7, %c0_8], %9 {strides = array<i32>} : memref<1x17x32xf32, #tpu.memory_space<vmem>>, vector<1x17x32xf32>,
    %c0_9 = arith.constant 0 : index
    %c0_10 = arith.constant 0 : index
    %10 = vector.load %arg4[%c0_9, %c0_10] : memref<1x32xf32, #tpu.memory_space<vmem>>, vector<1x32xf32>
    %c0_11 = arith.constant 0 : index
    %c0_12 = arith.constant 0 : index
    %11 = vector.load %arg5[%c0_11, %c0_12] : memref<1x32xf32, #tpu.memory_space<vmem>>, vector<1x32xf32>
    %cst_13 = arith.constant dense<0.000000e+00> : vector<17xf32>
    %12 = vector.multi_reduction <add>, %6, %cst_13 [1] : vector<17x32xf32> to vector<17xf32>
    %13 = vector.shape_cast %12 : vector<17xf32> to vector<17x1xf32>
    %cst_14 = arith.constant 3.200000e+01 : f32
    %14 = vector.broadcast %cst_14 : f32 to vector<17x1xf32>
    %15 = arith.divf %13, %14 : vector<17x1xf32>
    %16 = vector.broadcast %15 : vector<17x1xf32> to vector<17x32xf32>
    %17 = arith.subf %6, %16 : vector<17x32xf32>
    %18 = arith.mulf %17, %17 : vector<17x32xf32>
    %cst_15 = arith.constant dense<0.000000e+00> : vector<17xf32>
    %19 = vector.multi_reduction <add>, %18, %cst_15 [1] : vector<17x32xf32> to vector<17xf32>
    %20 = vector.shape_cast %19 : vector<17xf32> to vector<17x1xf32>
    %cst_16 = arith.constant 3.200000e+01 : f32
    %21 = vector.broadcast %cst_16 : f32 to vector<17x1xf32>
    %22 = arith.divf %20, %21 : vector<17x1xf32>
    %23 = vector.broadcast %15 : vector<17x1xf32> to vector<17x32xf32>
    %24 = arith.subf %6, %23 : vector<17x32xf32>
    %cst_17 = arith.constant 9.99999974E-6 : f32
    %25 = vector.broadcast %cst_17 : f32 to vector<17x1xf32>
    %26 = arith.addf %22, %25 : vector<17x1xf32>
    %27 = math.rsqrt %26 : vector<17x1xf32>
    %28 = vector.broadcast %27 : vector<17x1xf32> to vector<17x32xf32>
    %29 = arith.mulf %24, %28 : vector<17x32xf32>
    %30 = vector.broadcast %10 : vector<1x32xf32> to vector<17x32xf32>
    %31 = arith.mulf %29, %30 : vector<17x32xf32>
    %32 = vector.broadcast %11 : vector<1x32xf32> to vector<17x32xf32>
    %33 = arith.addf %31, %32 : vector<17x32xf32>
    %34 = arith.truncf %33 : vector<17x32xf32> to vector<17x32xbf16>
    %c0_18 = arith.constant 0 : index
    %c0_19 = arith.constant 0 : index
    %35 = vector.load %arg6[%c0_18, %c0_19] : memref<32x32xbf16, #tpu.memory_space<vmem>>, vector<32x32xbf16>
    %cst_20 = arith.constant dense<0.000000e+00> : vector<17x32xf32>
    %36 = tpu.matmul %34, %35, %cst_20 {dimension_numbers = #tpu.dot_dimension_numbers<[1], [0], [0], [1], [0, 0, 1, 1], [], []>} : vector<17x32xbf16>, vector<32x32xbf16>, vector<17x32xf32> -> vector<17x32xf32>
    %c0_21 = arith.constant 0 : index
    %c0_22 = arith.constant 0 : index
    %37 = vector.load %arg7[%c0_21, %c0_22] : memref<1x32xf32, #tpu.memory_space<vmem>>, vector<1x32xf32>
    %38 = vector.broadcast %37 : vector<1x32xf32> to vector<17x32xf32>
    %39 = arith.addf %36, %38 : vector<17x32xf32>
    %c0_23 = arith.constant 0 : index
    %c0_24 = arith.constant 0 : index
    %40 = vector.load %arg8[%c0_23, %c0_24] : memref<32x32xbf16, #tpu.memory_space<vmem>>, vector<32x32xbf16>
    %cst_25 = arith.constant dense<0.000000e+00> : vector<17x32xf32>
    %41 = tpu.matmul %34, %40, %cst_25 {dimension_numbers = #tpu.dot_dimension_numbers<[1], [0], [0], [1], [0, 0, 1, 1], [], []>} : vector<17x32xbf16>, vector<32x32xbf16>, vector<17x32xf32> -> vector<17x32xf32>
    %c0_26 = arith.constant 0 : index
    %c0_27 = arith.constant 0 : index
    %42 = vector.load %arg9[%c0_26, %c0_27] : memref<1x32xf32, #tpu.memory_space<vmem>>, vector<1x32xf32>
    %43 = vector.broadcast %42 : vector<1x32xf32> to vector<17x32xf32>
    %44 = arith.addf %41, %43 : vector<17x32xf32>
    %c0_28 = arith.constant 0 : index
    %c0_29 = arith.constant 0 : index
    %45 = vector.load %arg10[%c0_28, %c0_29] : memref<32x32xbf16, #tpu.memory_space<vmem>>, vector<32x32xbf16>
    %cst_30 = arith.constant dense<0.000000e+00> : vector<17x32xf32>
    %46 = tpu.matmul %34, %45, %cst_30 {dimension_numbers = #tpu.dot_dimension_numbers<[1], [0], [0], [1], [0, 0, 1, 1], [], []>} : vector<17x32xbf16>, vector<32x32xbf16>, vector<17x32xf32> -> vector<17x32xf32>
    %c0_31 = arith.constant 0 : index
    %c0_32 = arith.constant 0 : index
    %47 = vector.load %arg11[%c0_31, %c0_32] : memref<1x32xf32, #tpu.memory_space<vmem>>, vector<1x32xf32>
    %48 = vector.broadcast %47 : vector<1x32xf32> to vector<17x32xf32>
    %49 = arith.addf %46, %48 : vector<17x32xf32>
    %50 = arith.truncf %39 : vector<17x32xf32> to vector<17x32xbf16>
    %51 = arith.truncf %44 : vector<17x32xf32> to vector<17x32xbf16>
    %cst_33 = arith.constant dense<0.000000e+00> : vector<17x17xf32>
    %52 = tpu.matmul %50, %51, %cst_33 {dimension_numbers = #tpu.dot_dimension_numbers<[1], [1], [0], [0], [0, 0, 1, 0], [], []>} : vector<17x32xbf16>, vector<17x32xbf16>, vector<17x17xf32> -> vector<17x17xf32>
    %cst_34 = arith.constant 2.500000e-01 : f32
    %53 = vector.broadcast %cst_34 : f32 to vector<17x17xf32>
    %54 = arith.mulf %52, %53 : vector<17x17xf32>
    %cst_35 = arith.constant dense<0xFF800000> : vector<17xf32>
    %55 = vector.multi_reduction <maximumf>, %54, %cst_35 [1] : vector<17x17xf32> to vector<17xf32>
    %56 = vector.shape_cast %55 : vector<17xf32> to vector<17x1xf32>
    %57 = vector.broadcast %56 : vector<17x1xf32> to vector<17x17xf32>
    %58 = arith.subf %54, %57 : vector<17x17xf32>
    %59 = math.exp %58 : vector<17x17xf32>
    %cst_36 = arith.constant dense<0.000000e+00> : vector<17xf32>
    %60 = vector.multi_reduction <add>, %59, %cst_36 [1] : vector<17x17xf32> to vector<17xf32>
    %61 = vector.shape_cast %60 : vector<17xf32> to vector<17x1xf32>
    %62 = tpu.reciprocal %61 {approx = true} : vector<17x1xf32> -> vector<17x1xf32>
    %63 = vector.broadcast %62 : vector<17x1xf32> to vector<17x17xf32>
    %64 = arith.mulf %59, %63 : vector<17x17xf32>
    %65 = arith.truncf %64 : vector<17x17xf32> to vector<17x17xbf16>
    %66 = arith.truncf %49 : vector<17x32xf32> to vector<17x32xbf16>
    %cst_37 = arith.constant dense<0.000000e+00> : vector<17x32xf32>
    %67 = tpu.matmul %65, %66, %cst_37 {dimension_numbers = #tpu.dot_dimension_numbers<[1], [0], [0], [1], [0, 0, 1, 1], [], []>} : vector<17x17xbf16>, vector<17x32xbf16>, vector<17x32xf32> -> vector<17x32xf32>
    %68 = arith.truncf %67 : vector<17x32xf32> to vector<17x32xbf16>
    %c0_38 = arith.constant 0 : index
    %c0_39 = arith.constant 0 : index
    %c0_40 = arith.constant 0 : index
    %69 = vector.load %arg13[%c0_38, %c0_39, %c0_40] : memref<1x17x32xbf16, #tpu.memory_space<vmem>>, vector<1x17x32xbf16>
    %70 = vector.shape_cast %69 : vector<1x17x32xbf16> to vector<17x32xbf16>
    %71 = vector.shape_cast %68 : vector<17x32xbf16> to vector<1x17x32xbf16>
    tpu.vector_store %arg13[%c0_38, %c0_39, %c0_40], %71 {strides = array<i32>} : memref<1x17x32xbf16, #tpu.memory_space<vmem>>, vector<1x17x32xbf16>,
    return
  }
  func.func @transform_0(%arg0: i32) -> (i32, i32, i32) {
    %c0_i32 = arith.constant 0 : i32
    %c0_i32_0 = arith.constant 0 : i32
    %c0_i32_1 = arith.constant 0 : i32
    return %arg0, %c0_i32, %c0_i32_0 : i32, i32, i32
  }
  func.func @transform_1(%arg0: i32) -> (i32, i32) {
    %c0_i32 = arith.constant 0 : i32
    %c0_i32_0 = arith.constant 0 : i32
    %c0_i32_1 = arith.constant 0 : i32
    return %c0_i32, %c0_i32_0 : i32, i32
  }
  func.func @transform_2(%arg0: i32) -> (i32, i32) {
    %c0_i32 = arith.constant 0 : i32
    %c0_i32_0 = arith.constant 0 : i32
    %c0_i32_1 = arith.constant 0 : i32
    return %c0_i32, %c0_i32_0 : i32, i32
  }
  func.func @transform_3(%arg0: i32) -> (i32, i32) {
    %c0_i32 = arith.constant 0 : i32
    %c0_i32_0 = arith.constant 0 : i32
    %c0_i32_1 = arith.constant 0 : i32
    return %c0_i32, %c0_i32_0 : i32, i32
  }
  func.func @transform_4(%arg0: i32) -> (i32, i32) {
    %c0_i32 = arith.constant 0 : i32
    %c0_i32_0 = arith.constant 0 : i32
    %c0_i32_1 = arith.constant 0 : i32
    return %c0_i32, %c0_i32_0 : i32, i32
  }
  func.func @transform_5(%arg0: i32) -> (i32, i32) {
    %c0_i32 = arith.constant 0 : i32
    %c0_i32_0 = arith.constant 0 : i32
    %c0_i32_1 = arith.constant 0 : i32
    return %c0_i32, %c0_i32_0 : i32, i32
  }
  func.func @transform_6(%arg0: i32) -> (i32, i32) {
    %c0_i32 = arith.constant 0 : i32
    %c0_i32_0 = arith.constant 0 : i32
    %c0_i32_1 = arith.constant 0 : i32
    return %c0_i32, %c0_i32_0 : i32, i32
  }
  func.func @transform_7(%arg0: i32) -> (i32, i32) {
    %c0_i32 = arith.constant 0 : i32
    %c0_i32_0 = arith.constant 0 : i32
    %c0_i32_1 = arith.constant 0 : i32
    return %c0_i32, %c0_i32_0 : i32, i32
  }
  func.func @transform_8(%arg0: i32) -> (i32, i32) {
    %c0_i32 = arith.constant 0 : i32
    %c0_i32_0 = arith.constant 0 : i32
    %c0_i32_1 = arith.constant 0 : i32
    return %c0_i32, %c0_i32_0 : i32, i32
  }
  func.func @transform_9(%arg0: i32) -> (i32, i32) {
    %c0_i32 = arith.constant 0 : i32
    %c0_i32_0 = arith.constant 0 : i32
    %c0_i32_1 = arith.constant 0 : i32
    return %c0_i32, %c0_i32_0 : i32, i32
  }
  func.func @transform_10(%arg0: i32) -> (i32, i32) {
    %c0_i32 = arith.constant 0 : i32
    %c0_i32_0 = arith.constant 0 : i32
    %c0_i32_1 = arith.constant 0 : i32
    return %c0_i32, %c0_i32_0 : i32, i32
  }
  func.func @transform_11(%arg0: i32) -> (i32, i32, i32) {
    %c0_i32 = arith.constant 0 : i32
    %c0_i32_0 = arith.constant 0 : i32
    %c0_i32_1 = arith.constant 0 : i32
    return %arg0, %c0_i32, %c0_i32_0 : i32, i32, i32
  }
  func.func @transform_12(%arg0: i32) -> (i32, i32, i32) {
    %c0_i32 = arith.constant 0 : i32
    %c0_i32_0 = arith.constant 0 : i32
    %c0_i32_1 = arith.constant 0 : i32
    return %arg0, %c0_i32, %c0_i32_0 : i32, i32, i32
  }
}

module attributes {stable_mosaic.version = 11 : i64} {
  func.func @_ffn_attn_kernel(%arg0: i32, %arg1: memref<1x17x32xf32, #tpu.memory_space<vmem>>, %arg2: memref<1x17x32xbf16, #tpu.memory_space<vmem>>, %arg3: memref<32x32xbf16, #tpu.memory_space<vmem>>, %arg4: memref<1x32xf32, #tpu.memory_space<vmem>>, %arg5: memref<1x32xf32, #tpu.memory_space<vmem>>, %arg6: memref<1x32xf32, #tpu.memory_space<vmem>>, %arg7: memref<32x128xbf16, #tpu.memory_space<vmem>>, %arg8: memref<1x128xf32, #tpu.memory_space<vmem>>, %arg9: memref<128x32xbf16, #tpu.memory_space<vmem>>, %arg10: memref<1x32xf32, #tpu.memory_space<vmem>>, %arg11: memref<1x32xf32, #tpu.memory_space<vmem>>, %arg12: memref<1x32xf32, #tpu.memory_space<vmem>>, %arg13: memref<32x32xbf16, #tpu.memory_space<vmem>>, %arg14: memref<1x32xf32, #tpu.memory_space<vmem>>, %arg15: memref<32x32xbf16, #tpu.memory_space<vmem>>, %arg16: memref<1x32xf32, #tpu.memory_space<vmem>>, %arg17: memref<32x32xbf16, #tpu.memory_space<vmem>>, %arg18: memref<1x32xf32, #tpu.memory_space<vmem>>, %arg19: memref<1x17x32xf32, #tpu.memory_space<vmem>>, %arg20: memref<1x17x32xbf16, #tpu.memory_space<vmem>>) attributes {dimension_semantics = [#tpu.dimension_semantics<parallel>], iteration_bounds = array<i64: 2>, scalar_prefetch = 0 : i64, scratch_operands = 0 : i64, tpu.core_type = #tpu.core_type<tc>, window_params = [{transform_indices = @transform_0, window_bounds = array<i64: 1, 17, 32>}, {transform_indices = @transform_1, window_bounds = array<i64: 1, 17, 32>}, {pipeline_mode = #tpu.pipeline_mode<synchronous>, transform_indices = @transform_2, window_bounds = array<i64: 32, 32>}, {pipeline_mode = #tpu.pipeline_mode<synchronous>, transform_indices = @transform_3, window_bounds = array<i64: 1, 32>}, {pipeline_mode = #tpu.pipeline_mode<synchronous>, transform_indices = @transform_4, window_bounds = array<i64: 1, 32>}, {pipeline_mode = #tpu.pipeline_mode<synchronous>, transform_indices = @transform_5, window_bounds = array<i64: 1, 32>}, {pipeline_mode = #tpu.pipeline_mode<synchronous>, transform_indices = @transform_6, window_bounds = array<i64: 32, 128>}, {pipeline_mode = #tpu.pipeline_mode<synchronous>, transform_indices = @transform_7, window_bounds = array<i64: 1, 128>}, {pipeline_mode = #tpu.pipeline_mode<synchronous>, transform_indices = @transform_8, window_bounds = array<i64: 128, 32>}, {pipeline_mode = #tpu.pipeline_mode<synchronous>, transform_indices = @transform_9, window_bounds = array<i64: 1, 32>}, {pipeline_mode = #tpu.pipeline_mode<synchronous>, transform_indices = @transform_10, window_bounds = array<i64: 1, 32>}, {pipeline_mode = #tpu.pipeline_mode<synchronous>, transform_indices = @transform_11, window_bounds = array<i64: 1, 32>}, {pipeline_mode = #tpu.pipeline_mode<synchronous>, transform_indices = @transform_12, window_bounds = array<i64: 32, 32>}, {pipeline_mode = #tpu.pipeline_mode<synchronous>, transform_indices = @transform_13, window_bounds = array<i64: 1, 32>}, {pipeline_mode = #tpu.pipeline_mode<synchronous>, transform_indices = @transform_14, window_bounds = array<i64: 32, 32>}, {pipeline_mode = #tpu.pipeline_mode<synchronous>, transform_indices = @transform_15, window_bounds = array<i64: 1, 32>}, {pipeline_mode = #tpu.pipeline_mode<synchronous>, transform_indices = @transform_16, window_bounds = array<i64: 32, 32>}, {pipeline_mode = #tpu.pipeline_mode<synchronous>, transform_indices = @transform_17, window_bounds = array<i64: 1, 32>}, {transform_indices = @transform_18, window_bounds = array<i64: 1, 17, 32>}, {transform_indices = @transform_19, window_bounds = array<i64: 1, 17, 32>}]} {
    %c0 = arith.constant 0 : index
    %c0_0 = arith.constant 0 : index
    %c0_1 = arith.constant 0 : index
    %0 = vector.load %arg1[%c0, %c0_0, %c0_1] : memref<1x17x32xf32, #tpu.memory_space<vmem>>, vector<1x17x32xf32>
    %1 = vector.shape_cast %0 : vector<1x17x32xf32> to vector<17x32xf32>
    %c0_2 = arith.constant 0 : index
    %c0_3 = arith.constant 0 : index
    %c0_4 = arith.constant 0 : index
    %2 = vector.load %arg2[%c0_2, %c0_3, %c0_4] : memref<1x17x32xbf16, #tpu.memory_space<vmem>>, vector<1x17x32xbf16>
    %3 = vector.shape_cast %2 : vector<1x17x32xbf16> to vector<17x32xbf16>
    %c0_5 = arith.constant 0 : index
    %c0_6 = arith.constant 0 : index
    %4 = vector.load %arg3[%c0_5, %c0_6] : memref<32x32xbf16, #tpu.memory_space<vmem>>, vector<32x32xbf16>
    %cst = arith.constant dense<0.000000e+00> : vector<17x32xf32>
    %5 = tpu.matmul %3, %4, %cst {dimension_numbers = #tpu.dot_dimension_numbers<[1], [0], [0], [1], [0, 0, 1, 1], [], []>} : vector<17x32xbf16>, vector<32x32xbf16>, vector<17x32xf32> -> vector<17x32xf32>
    %c0_7 = arith.constant 0 : index
    %c0_8 = arith.constant 0 : index
    %6 = vector.load %arg4[%c0_7, %c0_8] : memref<1x32xf32, #tpu.memory_space<vmem>>, vector<1x32xf32>
    %7 = vector.broadcast %6 : vector<1x32xf32> to vector<17x32xf32>
    %8 = arith.addf %5, %7 : vector<17x32xf32>
    %9 = arith.addf %1, %8 : vector<17x32xf32>
    %c0_9 = arith.constant 0 : index
    %c0_10 = arith.constant 0 : index
    %10 = vector.load %arg5[%c0_9, %c0_10] : memref<1x32xf32, #tpu.memory_space<vmem>>, vector<1x32xf32>
    %c0_11 = arith.constant 0 : index
    %c0_12 = arith.constant 0 : index
    %11 = vector.load %arg6[%c0_11, %c0_12] : memref<1x32xf32, #tpu.memory_space<vmem>>, vector<1x32xf32>
    %cst_13 = arith.constant dense<0.000000e+00> : vector<17xf32>
    %12 = vector.multi_reduction <add>, %9, %cst_13 [1] : vector<17x32xf32> to vector<17xf32>
    %13 = vector.shape_cast %12 : vector<17xf32> to vector<17x1xf32>
    %cst_14 = arith.constant 3.200000e+01 : f32
    %14 = vector.broadcast %cst_14 : f32 to vector<17x1xf32>
    %15 = arith.divf %13, %14 : vector<17x1xf32>
    %16 = vector.broadcast %15 : vector<17x1xf32> to vector<17x32xf32>
    %17 = arith.subf %9, %16 : vector<17x32xf32>
    %18 = arith.mulf %17, %17 : vector<17x32xf32>
    %cst_15 = arith.constant dense<0.000000e+00> : vector<17xf32>
    %19 = vector.multi_reduction <add>, %18, %cst_15 [1] : vector<17x32xf32> to vector<17xf32>
    %20 = vector.shape_cast %19 : vector<17xf32> to vector<17x1xf32>
    %cst_16 = arith.constant 3.200000e+01 : f32
    %21 = vector.broadcast %cst_16 : f32 to vector<17x1xf32>
    %22 = arith.divf %20, %21 : vector<17x1xf32>
    %23 = vector.broadcast %15 : vector<17x1xf32> to vector<17x32xf32>
    %24 = arith.subf %9, %23 : vector<17x32xf32>
    %cst_17 = arith.constant 9.99999974E-6 : f32
    %25 = vector.broadcast %cst_17 : f32 to vector<17x1xf32>
    %26 = arith.addf %22, %25 : vector<17x1xf32>
    %27 = math.rsqrt %26 : vector<17x1xf32>
    %28 = vector.broadcast %27 : vector<17x1xf32> to vector<17x32xf32>
    %29 = arith.mulf %24, %28 : vector<17x32xf32>
    %30 = vector.broadcast %10 : vector<1x32xf32> to vector<17x32xf32>
    %31 = arith.mulf %29, %30 : vector<17x32xf32>
    %32 = vector.broadcast %11 : vector<1x32xf32> to vector<17x32xf32>
    %33 = arith.addf %31, %32 : vector<17x32xf32>
    %34 = arith.truncf %33 : vector<17x32xf32> to vector<17x32xbf16>
    %c0_18 = arith.constant 0 : index
    %c0_19 = arith.constant 0 : index
    %35 = vector.load %arg7[%c0_18, %c0_19] : memref<32x128xbf16, #tpu.memory_space<vmem>>, vector<32x128xbf16>
    %cst_20 = arith.constant dense<0.000000e+00> : vector<17x128xf32>
    %36 = tpu.matmul %34, %35, %cst_20 {dimension_numbers = #tpu.dot_dimension_numbers<[1], [0], [0], [1], [0, 0, 1, 1], [], []>} : vector<17x32xbf16>, vector<32x128xbf16>, vector<17x128xf32> -> vector<17x128xf32>
    %c0_21 = arith.constant 0 : index
    %c0_22 = arith.constant 0 : index
    %37 = vector.load %arg8[%c0_21, %c0_22] : memref<1x128xf32, #tpu.memory_space<vmem>>, vector<1x128xf32>
    %38 = vector.broadcast %37 : vector<1x128xf32> to vector<17x128xf32>
    %39 = arith.addf %36, %38 : vector<17x128xf32>
    %cst_23 = arith.constant 5.000000e-01 : f32
    %40 = vector.broadcast %cst_23 : f32 to vector<17x128xf32>
    %41 = arith.mulf %40, %39 : vector<17x128xf32>
    %cst_24 = arith.constant 0.707106769 : f32
    %42 = vector.broadcast %cst_24 : f32 to vector<17x128xf32>
    %43 = arith.mulf %39, %42 : vector<17x128xf32>
    %44 = math.erf %43 : vector<17x128xf32>
    %cst_25 = arith.constant 1.000000e+00 : f32
    %45 = vector.broadcast %cst_25 : f32 to vector<17x128xf32>
    %46 = arith.addf %45, %44 : vector<17x128xf32>
    %47 = arith.mulf %41, %46 : vector<17x128xf32>
    %48 = arith.truncf %47 : vector<17x128xf32> to vector<17x128xbf16>
    %c0_26 = arith.constant 0 : index
    %c0_27 = arith.constant 0 : index
    %49 = vector.load %arg9[%c0_26, %c0_27] : memref<128x32xbf16, #tpu.memory_space<vmem>>, vector<128x32xbf16>
    %cst_28 = arith.constant dense<0.000000e+00> : vector<17x32xf32>
    %50 = tpu.matmul %48, %49, %cst_28 {dimension_numbers = #tpu.dot_dimension_numbers<[1], [0], [0], [1], [0, 0, 1, 1], [], []>} : vector<17x128xbf16>, vector<128x32xbf16>, vector<17x32xf32> -> vector<17x32xf32>
    %c0_29 = arith.constant 0 : index
    %c0_30 = arith.constant 0 : index
    %51 = vector.load %arg10[%c0_29, %c0_30] : memref<1x32xf32, #tpu.memory_space<vmem>>, vector<1x32xf32>
    %52 = vector.broadcast %51 : vector<1x32xf32> to vector<17x32xf32>
    %53 = arith.addf %50, %52 : vector<17x32xf32>
    %54 = arith.addf %9, %53 : vector<17x32xf32>
    %c0_31 = arith.constant 0 : index
    %c0_32 = arith.constant 0 : index
    %c0_33 = arith.constant 0 : index
    %55 = vector.load %arg19[%c0_31, %c0_32, %c0_33] : memref<1x17x32xf32, #tpu.memory_space<vmem>>, vector<1x17x32xf32>
    %56 = vector.shape_cast %55 : vector<1x17x32xf32> to vector<17x32xf32>
    %57 = vector.shape_cast %54 : vector<17x32xf32> to vector<1x17x32xf32>
    tpu.vector_store %arg19[%c0_31, %c0_32, %c0_33], %57 {strides = array<i32>} : memref<1x17x32xf32, #tpu.memory_space<vmem>>, vector<1x17x32xf32>,
    %c0_34 = arith.constant 0 : index
    %c0_35 = arith.constant 0 : index
    %58 = vector.load %arg11[%c0_34, %c0_35] : memref<1x32xf32, #tpu.memory_space<vmem>>, vector<1x32xf32>
    %c0_36 = arith.constant 0 : index
    %c0_37 = arith.constant 0 : index
    %59 = vector.load %arg12[%c0_36, %c0_37] : memref<1x32xf32, #tpu.memory_space<vmem>>, vector<1x32xf32>
    %cst_38 = arith.constant dense<0.000000e+00> : vector<17xf32>
    %60 = vector.multi_reduction <add>, %54, %cst_38 [1] : vector<17x32xf32> to vector<17xf32>
    %61 = vector.shape_cast %60 : vector<17xf32> to vector<17x1xf32>
    %cst_39 = arith.constant 3.200000e+01 : f32
    %62 = vector.broadcast %cst_39 : f32 to vector<17x1xf32>
    %63 = arith.divf %61, %62 : vector<17x1xf32>
    %64 = vector.broadcast %63 : vector<17x1xf32> to vector<17x32xf32>
    %65 = arith.subf %54, %64 : vector<17x32xf32>
    %66 = arith.mulf %65, %65 : vector<17x32xf32>
    %cst_40 = arith.constant dense<0.000000e+00> : vector<17xf32>
    %67 = vector.multi_reduction <add>, %66, %cst_40 [1] : vector<17x32xf32> to vector<17xf32>
    %68 = vector.shape_cast %67 : vector<17xf32> to vector<17x1xf32>
    %cst_41 = arith.constant 3.200000e+01 : f32
    %69 = vector.broadcast %cst_41 : f32 to vector<17x1xf32>
    %70 = arith.divf %68, %69 : vector<17x1xf32>
    %71 = vector.broadcast %63 : vector<17x1xf32> to vector<17x32xf32>
    %72 = arith.subf %54, %71 : vector<17x32xf32>
    %cst_42 = arith.constant 9.99999974E-6 : f32
    %73 = vector.broadcast %cst_42 : f32 to vector<17x1xf32>
    %74 = arith.addf %70, %73 : vector<17x1xf32>
    %75 = math.rsqrt %74 : vector<17x1xf32>
    %76 = vector.broadcast %75 : vector<17x1xf32> to vector<17x32xf32>
    %77 = arith.mulf %72, %76 : vector<17x32xf32>
    %78 = vector.broadcast %58 : vector<1x32xf32> to vector<17x32xf32>
    %79 = arith.mulf %77, %78 : vector<17x32xf32>
    %80 = vector.broadcast %59 : vector<1x32xf32> to vector<17x32xf32>
    %81 = arith.addf %79, %80 : vector<17x32xf32>
    %82 = arith.truncf %81 : vector<17x32xf32> to vector<17x32xbf16>
    %c0_43 = arith.constant 0 : index
    %c0_44 = arith.constant 0 : index
    %83 = vector.load %arg13[%c0_43, %c0_44] : memref<32x32xbf16, #tpu.memory_space<vmem>>, vector<32x32xbf16>
    %cst_45 = arith.constant dense<0.000000e+00> : vector<17x32xf32>
    %84 = tpu.matmul %82, %83, %cst_45 {dimension_numbers = #tpu.dot_dimension_numbers<[1], [0], [0], [1], [0, 0, 1, 1], [], []>} : vector<17x32xbf16>, vector<32x32xbf16>, vector<17x32xf32> -> vector<17x32xf32>
    %c0_46 = arith.constant 0 : index
    %c0_47 = arith.constant 0 : index
    %85 = vector.load %arg14[%c0_46, %c0_47] : memref<1x32xf32, #tpu.memory_space<vmem>>, vector<1x32xf32>
    %86 = vector.broadcast %85 : vector<1x32xf32> to vector<17x32xf32>
    %87 = arith.addf %84, %86 : vector<17x32xf32>
    %c0_48 = arith.constant 0 : index
    %c0_49 = arith.constant 0 : index
    %88 = vector.load %arg15[%c0_48, %c0_49] : memref<32x32xbf16, #tpu.memory_space<vmem>>, vector<32x32xbf16>
    %cst_50 = arith.constant dense<0.000000e+00> : vector<17x32xf32>
    %89 = tpu.matmul %82, %88, %cst_50 {dimension_numbers = #tpu.dot_dimension_numbers<[1], [0], [0], [1], [0, 0, 1, 1], [], []>} : vector<17x32xbf16>, vector<32x32xbf16>, vector<17x32xf32> -> vector<17x32xf32>
    %c0_51 = arith.constant 0 : index
    %c0_52 = arith.constant 0 : index
    %90 = vector.load %arg16[%c0_51, %c0_52] : memref<1x32xf32, #tpu.memory_space<vmem>>, vector<1x32xf32>
    %91 = vector.broadcast %90 : vector<1x32xf32> to vector<17x32xf32>
    %92 = arith.addf %89, %91 : vector<17x32xf32>
    %c0_53 = arith.constant 0 : index
    %c0_54 = arith.constant 0 : index
    %93 = vector.load %arg17[%c0_53, %c0_54] : memref<32x32xbf16, #tpu.memory_space<vmem>>, vector<32x32xbf16>
    %cst_55 = arith.constant dense<0.000000e+00> : vector<17x32xf32>
    %94 = tpu.matmul %82, %93, %cst_55 {dimension_numbers = #tpu.dot_dimension_numbers<[1], [0], [0], [1], [0, 0, 1, 1], [], []>} : vector<17x32xbf16>, vector<32x32xbf16>, vector<17x32xf32> -> vector<17x32xf32>
    %c0_56 = arith.constant 0 : index
    %c0_57 = arith.constant 0 : index
    %95 = vector.load %arg18[%c0_56, %c0_57] : memref<1x32xf32, #tpu.memory_space<vmem>>, vector<1x32xf32>
    %96 = vector.broadcast %95 : vector<1x32xf32> to vector<17x32xf32>
    %97 = arith.addf %94, %96 : vector<17x32xf32>
    %98 = arith.truncf %87 : vector<17x32xf32> to vector<17x32xbf16>
    %99 = arith.truncf %92 : vector<17x32xf32> to vector<17x32xbf16>
    %cst_58 = arith.constant dense<0.000000e+00> : vector<17x17xf32>
    %100 = tpu.matmul %98, %99, %cst_58 {dimension_numbers = #tpu.dot_dimension_numbers<[1], [1], [0], [0], [0, 0, 1, 0], [], []>} : vector<17x32xbf16>, vector<17x32xbf16>, vector<17x17xf32> -> vector<17x17xf32>
    %cst_59 = arith.constant 2.500000e-01 : f32
    %101 = vector.broadcast %cst_59 : f32 to vector<17x17xf32>
    %102 = arith.mulf %100, %101 : vector<17x17xf32>
    %cst_60 = arith.constant dense<0xFF800000> : vector<17xf32>
    %103 = vector.multi_reduction <maximumf>, %102, %cst_60 [1] : vector<17x17xf32> to vector<17xf32>
    %104 = vector.shape_cast %103 : vector<17xf32> to vector<17x1xf32>
    %105 = vector.broadcast %104 : vector<17x1xf32> to vector<17x17xf32>
    %106 = arith.subf %102, %105 : vector<17x17xf32>
    %107 = math.exp %106 : vector<17x17xf32>
    %cst_61 = arith.constant dense<0.000000e+00> : vector<17xf32>
    %108 = vector.multi_reduction <add>, %107, %cst_61 [1] : vector<17x17xf32> to vector<17xf32>
    %109 = vector.shape_cast %108 : vector<17xf32> to vector<17x1xf32>
    %110 = tpu.reciprocal %109 {approx = true} : vector<17x1xf32> -> vector<17x1xf32>
    %111 = vector.broadcast %110 : vector<17x1xf32> to vector<17x17xf32>
    %112 = arith.mulf %107, %111 : vector<17x17xf32>
    %113 = arith.truncf %112 : vector<17x17xf32> to vector<17x17xbf16>
    %114 = arith.truncf %97 : vector<17x32xf32> to vector<17x32xbf16>
    %cst_62 = arith.constant dense<0.000000e+00> : vector<17x32xf32>
    %115 = tpu.matmul %113, %114, %cst_62 {dimension_numbers = #tpu.dot_dimension_numbers<[1], [0], [0], [1], [0, 0, 1, 1], [], []>} : vector<17x17xbf16>, vector<17x32xbf16>, vector<17x32xf32> -> vector<17x32xf32>
    %116 = arith.truncf %115 : vector<17x32xf32> to vector<17x32xbf16>
    %c0_63 = arith.constant 0 : index
    %c0_64 = arith.constant 0 : index
    %c0_65 = arith.constant 0 : index
    %117 = vector.load %arg20[%c0_63, %c0_64, %c0_65] : memref<1x17x32xbf16, #tpu.memory_space<vmem>>, vector<1x17x32xbf16>
    %118 = vector.shape_cast %117 : vector<1x17x32xbf16> to vector<17x32xbf16>
    %119 = vector.shape_cast %116 : vector<17x32xbf16> to vector<1x17x32xbf16>
    tpu.vector_store %arg20[%c0_63, %c0_64, %c0_65], %119 {strides = array<i32>} : memref<1x17x32xbf16, #tpu.memory_space<vmem>>, vector<1x17x32xbf16>,
    return
  }
  func.func @transform_0(%arg0: i32) -> (i32, i32, i32) {
    %c0_i32 = arith.constant 0 : i32
    %c0_i32_0 = arith.constant 0 : i32
    %c0_i32_1 = arith.constant 0 : i32
    return %arg0, %c0_i32, %c0_i32_0 : i32, i32, i32
  }
  func.func @transform_1(%arg0: i32) -> (i32, i32, i32) {
    %c0_i32 = arith.constant 0 : i32
    %c0_i32_0 = arith.constant 0 : i32
    %c0_i32_1 = arith.constant 0 : i32
    return %arg0, %c0_i32, %c0_i32_0 : i32, i32, i32
  }
  func.func @transform_2(%arg0: i32) -> (i32, i32) {
    %c0_i32 = arith.constant 0 : i32
    %c0_i32_0 = arith.constant 0 : i32
    %c0_i32_1 = arith.constant 0 : i32
    return %c0_i32, %c0_i32_0 : i32, i32
  }
  func.func @transform_3(%arg0: i32) -> (i32, i32) {
    %c0_i32 = arith.constant 0 : i32
    %c0_i32_0 = arith.constant 0 : i32
    %c0_i32_1 = arith.constant 0 : i32
    return %c0_i32, %c0_i32_0 : i32, i32
  }
  func.func @transform_4(%arg0: i32) -> (i32, i32) {
    %c0_i32 = arith.constant 0 : i32
    %c0_i32_0 = arith.constant 0 : i32
    %c0_i32_1 = arith.constant 0 : i32
    return %c0_i32, %c0_i32_0 : i32, i32
  }
  func.func @transform_5(%arg0: i32) -> (i32, i32) {
    %c0_i32 = arith.constant 0 : i32
    %c0_i32_0 = arith.constant 0 : i32
    %c0_i32_1 = arith.constant 0 : i32
    return %c0_i32, %c0_i32_0 : i32, i32
  }
  func.func @transform_6(%arg0: i32) -> (i32, i32) {
    %c0_i32 = arith.constant 0 : i32
    %c0_i32_0 = arith.constant 0 : i32
    %c0_i32_1 = arith.constant 0 : i32
    return %c0_i32, %c0_i32_0 : i32, i32
  }
  func.func @transform_7(%arg0: i32) -> (i32, i32) {
    %c0_i32 = arith.constant 0 : i32
    %c0_i32_0 = arith.constant 0 : i32
    %c0_i32_1 = arith.constant 0 : i32
    return %c0_i32, %c0_i32_0 : i32, i32
  }
  func.func @transform_8(%arg0: i32) -> (i32, i32) {
    %c0_i32 = arith.constant 0 : i32
    %c0_i32_0 = arith.constant 0 : i32
    %c0_i32_1 = arith.constant 0 : i32
    return %c0_i32, %c0_i32_0 : i32, i32
  }
  func.func @transform_9(%arg0: i32) -> (i32, i32) {
    %c0_i32 = arith.constant 0 : i32
    %c0_i32_0 = arith.constant 0 : i32
    %c0_i32_1 = arith.constant 0 : i32
    return %c0_i32, %c0_i32_0 : i32, i32
  }
  func.func @transform_10(%arg0: i32) -> (i32, i32) {
    %c0_i32 = arith.constant 0 : i32
    %c0_i32_0 = arith.constant 0 : i32
    %c0_i32_1 = arith.constant 0 : i32
    return %c0_i32, %c0_i32_0 : i32, i32
  }
  func.func @transform_11(%arg0: i32) -> (i32, i32) {
    %c0_i32 = arith.constant 0 : i32
    %c0_i32_0 = arith.constant 0 : i32
    %c0_i32_1 = arith.constant 0 : i32
    return %c0_i32, %c0_i32_0 : i32, i32
  }
  func.func @transform_12(%arg0: i32) -> (i32, i32) {
    %c0_i32 = arith.constant 0 : i32
    %c0_i32_0 = arith.constant 0 : i32
    %c0_i32_1 = arith.constant 0 : i32
    return %c0_i32, %c0_i32_0 : i32, i32
  }
  func.func @transform_13(%arg0: i32) -> (i32, i32) {
    %c0_i32 = arith.constant 0 : i32
    %c0_i32_0 = arith.constant 0 : i32
    %c0_i32_1 = arith.constant 0 : i32
    return %c0_i32, %c0_i32_0 : i32, i32
  }
  func.func @transform_14(%arg0: i32) -> (i32, i32) {
    %c0_i32 = arith.constant 0 : i32
    %c0_i32_0 = arith.constant 0 : i32
    %c0_i32_1 = arith.constant 0 : i32
    return %c0_i32, %c0_i32_0 : i32, i32
  }
  func.func @transform_15(%arg0: i32) -> (i32, i32) {
    %c0_i32 = arith.constant 0 : i32
    %c0_i32_0 = arith.constant 0 : i32
    %c0_i32_1 = arith.constant 0 : i32
    return %c0_i32, %c0_i32_0 : i32, i32
  }
  func.func @transform_16(%arg0: i32) -> (i32, i32) {
    %c0_i32 = arith.constant 0 : i32
    %c0_i32_0 = arith.constant 0 : i32
    %c0_i32_1 = arith.constant 0 : i32
    return %c0_i32, %c0_i32_0 : i32, i32
  }
  func.func @transform_17(%arg0: i32) -> (i32, i32) {
    %c0_i32 = arith.constant 0 : i32
    %c0_i32_0 = arith.constant 0 : i32
    %c0_i32_1 = arith.constant 0 : i32
    return %c0_i32, %c0_i32_0 : i32, i32
  }
  func.func @transform_18(%arg0: i32) -> (i32, i32, i32) {
    %c0_i32 = arith.constant 0 : i32
    %c0_i32_0 = arith.constant 0 : i32
    %c0_i32_1 = arith.constant 0 : i32
    return %arg0, %c0_i32, %c0_i32_0 : i32, i32, i32
  }
  func.func @transform_19(%arg0: i32) -> (i32, i32, i32) {
    %c0_i32 = arith.constant 0 : i32
    %c0_i32_0 = arith.constant 0 : i32
    %c0_i32_1 = arith.constant 0 : i32
    return %arg0, %c0_i32, %c0_i32_0 : i32, i32, i32
  }
}

module attributes {stable_mosaic.version = 11 : i64} {
  func.func @_ffn_head_kernel(%arg0: i32, %arg1: memref<1x17x32xf32, #tpu.memory_space<vmem>>, %arg2: memref<1x17x32xbf16, #tpu.memory_space<vmem>>, %arg3: memref<32x32xbf16, #tpu.memory_space<vmem>>, %arg4: memref<1x32xf32, #tpu.memory_space<vmem>>, %arg5: memref<1x32xf32, #tpu.memory_space<vmem>>, %arg6: memref<1x32xf32, #tpu.memory_space<vmem>>, %arg7: memref<32x128xbf16, #tpu.memory_space<vmem>>, %arg8: memref<1x128xf32, #tpu.memory_space<vmem>>, %arg9: memref<128x32xbf16, #tpu.memory_space<vmem>>, %arg10: memref<1x32xf32, #tpu.memory_space<vmem>>, %arg11: memref<1x32xf32, #tpu.memory_space<vmem>>, %arg12: memref<1x32xf32, #tpu.memory_space<vmem>>, %arg13: memref<32x10xbf16, #tpu.memory_space<vmem>>, %arg14: memref<1x10xf32, #tpu.memory_space<vmem>>, %arg15: memref<1x1x10xf32, #tpu.memory_space<vmem>>) attributes {dimension_semantics = [#tpu.dimension_semantics<parallel>], iteration_bounds = array<i64: 2>, scalar_prefetch = 0 : i64, scratch_operands = 0 : i64, tpu.core_type = #tpu.core_type<tc>, window_params = [{transform_indices = @transform_0, window_bounds = array<i64: 1, 17, 32>}, {transform_indices = @transform_1, window_bounds = array<i64: 1, 17, 32>}, {pipeline_mode = #tpu.pipeline_mode<synchronous>, transform_indices = @transform_2, window_bounds = array<i64: 32, 32>}, {pipeline_mode = #tpu.pipeline_mode<synchronous>, transform_indices = @transform_3, window_bounds = array<i64: 1, 32>}, {pipeline_mode = #tpu.pipeline_mode<synchronous>, transform_indices = @transform_4, window_bounds = array<i64: 1, 32>}, {pipeline_mode = #tpu.pipeline_mode<synchronous>, transform_indices = @transform_5, window_bounds = array<i64: 1, 32>}, {pipeline_mode = #tpu.pipeline_mode<synchronous>, transform_indices = @transform_6, window_bounds = array<i64: 32, 128>}, {pipeline_mode = #tpu.pipeline_mode<synchronous>, transform_indices = @transform_7, window_bounds = array<i64: 1, 128>}, {pipeline_mode = #tpu.pipeline_mode<synchronous>, transform_indices = @transform_8, window_bounds = array<i64: 128, 32>}, {pipeline_mode = #tpu.pipeline_mode<synchronous>, transform_indices = @transform_9, window_bounds = array<i64: 1, 32>}, {pipeline_mode = #tpu.pipeline_mode<synchronous>, transform_indices = @transform_10, window_bounds = array<i64: 1, 32>}, {pipeline_mode = #tpu.pipeline_mode<synchronous>, transform_indices = @transform_11, window_bounds = array<i64: 1, 32>}, {pipeline_mode = #tpu.pipeline_mode<synchronous>, transform_indices = @transform_12, window_bounds = array<i64: 32, 10>}, {pipeline_mode = #tpu.pipeline_mode<synchronous>, transform_indices = @transform_13, window_bounds = array<i64: 1, 10>}, {transform_indices = @transform_14, window_bounds = array<i64: 1, 1, 10>}]} {
    %c0 = arith.constant 0 : index
    %c0_0 = arith.constant 0 : index
    %c0_1 = arith.constant 0 : index
    %0 = vector.load %arg1[%c0, %c0_0, %c0_1] : memref<1x17x32xf32, #tpu.memory_space<vmem>>, vector<1x17x32xf32>
    %1 = vector.shape_cast %0 : vector<1x17x32xf32> to vector<17x32xf32>
    %c0_2 = arith.constant 0 : index
    %c0_3 = arith.constant 0 : index
    %c0_4 = arith.constant 0 : index
    %2 = vector.load %arg2[%c0_2, %c0_3, %c0_4] : memref<1x17x32xbf16, #tpu.memory_space<vmem>>, vector<1x17x32xbf16>
    %3 = vector.shape_cast %2 : vector<1x17x32xbf16> to vector<17x32xbf16>
    %c0_5 = arith.constant 0 : index
    %c0_6 = arith.constant 0 : index
    %4 = vector.load %arg3[%c0_5, %c0_6] : memref<32x32xbf16, #tpu.memory_space<vmem>>, vector<32x32xbf16>
    %cst = arith.constant dense<0.000000e+00> : vector<17x32xf32>
    %5 = tpu.matmul %3, %4, %cst {dimension_numbers = #tpu.dot_dimension_numbers<[1], [0], [0], [1], [0, 0, 1, 1], [], []>} : vector<17x32xbf16>, vector<32x32xbf16>, vector<17x32xf32> -> vector<17x32xf32>
    %c0_7 = arith.constant 0 : index
    %c0_8 = arith.constant 0 : index
    %6 = vector.load %arg4[%c0_7, %c0_8] : memref<1x32xf32, #tpu.memory_space<vmem>>, vector<1x32xf32>
    %7 = vector.broadcast %6 : vector<1x32xf32> to vector<17x32xf32>
    %8 = arith.addf %5, %7 : vector<17x32xf32>
    %9 = arith.addf %1, %8 : vector<17x32xf32>
    %c0_9 = arith.constant 0 : index
    %c0_10 = arith.constant 0 : index
    %10 = vector.load %arg5[%c0_9, %c0_10] : memref<1x32xf32, #tpu.memory_space<vmem>>, vector<1x32xf32>
    %c0_11 = arith.constant 0 : index
    %c0_12 = arith.constant 0 : index
    %11 = vector.load %arg6[%c0_11, %c0_12] : memref<1x32xf32, #tpu.memory_space<vmem>>, vector<1x32xf32>
    %cst_13 = arith.constant dense<0.000000e+00> : vector<17xf32>
    %12 = vector.multi_reduction <add>, %9, %cst_13 [1] : vector<17x32xf32> to vector<17xf32>
    %13 = vector.shape_cast %12 : vector<17xf32> to vector<17x1xf32>
    %cst_14 = arith.constant 3.200000e+01 : f32
    %14 = vector.broadcast %cst_14 : f32 to vector<17x1xf32>
    %15 = arith.divf %13, %14 : vector<17x1xf32>
    %16 = vector.broadcast %15 : vector<17x1xf32> to vector<17x32xf32>
    %17 = arith.subf %9, %16 : vector<17x32xf32>
    %18 = arith.mulf %17, %17 : vector<17x32xf32>
    %cst_15 = arith.constant dense<0.000000e+00> : vector<17xf32>
    %19 = vector.multi_reduction <add>, %18, %cst_15 [1] : vector<17x32xf32> to vector<17xf32>
    %20 = vector.shape_cast %19 : vector<17xf32> to vector<17x1xf32>
    %cst_16 = arith.constant 3.200000e+01 : f32
    %21 = vector.broadcast %cst_16 : f32 to vector<17x1xf32>
    %22 = arith.divf %20, %21 : vector<17x1xf32>
    %23 = vector.broadcast %15 : vector<17x1xf32> to vector<17x32xf32>
    %24 = arith.subf %9, %23 : vector<17x32xf32>
    %cst_17 = arith.constant 9.99999974E-6 : f32
    %25 = vector.broadcast %cst_17 : f32 to vector<17x1xf32>
    %26 = arith.addf %22, %25 : vector<17x1xf32>
    %27 = math.rsqrt %26 : vector<17x1xf32>
    %28 = vector.broadcast %27 : vector<17x1xf32> to vector<17x32xf32>
    %29 = arith.mulf %24, %28 : vector<17x32xf32>
    %30 = vector.broadcast %10 : vector<1x32xf32> to vector<17x32xf32>
    %31 = arith.mulf %29, %30 : vector<17x32xf32>
    %32 = vector.broadcast %11 : vector<1x32xf32> to vector<17x32xf32>
    %33 = arith.addf %31, %32 : vector<17x32xf32>
    %34 = arith.truncf %33 : vector<17x32xf32> to vector<17x32xbf16>
    %c0_18 = arith.constant 0 : index
    %c0_19 = arith.constant 0 : index
    %35 = vector.load %arg7[%c0_18, %c0_19] : memref<32x128xbf16, #tpu.memory_space<vmem>>, vector<32x128xbf16>
    %cst_20 = arith.constant dense<0.000000e+00> : vector<17x128xf32>
    %36 = tpu.matmul %34, %35, %cst_20 {dimension_numbers = #tpu.dot_dimension_numbers<[1], [0], [0], [1], [0, 0, 1, 1], [], []>} : vector<17x32xbf16>, vector<32x128xbf16>, vector<17x128xf32> -> vector<17x128xf32>
    %c0_21 = arith.constant 0 : index
    %c0_22 = arith.constant 0 : index
    %37 = vector.load %arg8[%c0_21, %c0_22] : memref<1x128xf32, #tpu.memory_space<vmem>>, vector<1x128xf32>
    %38 = vector.broadcast %37 : vector<1x128xf32> to vector<17x128xf32>
    %39 = arith.addf %36, %38 : vector<17x128xf32>
    %cst_23 = arith.constant 5.000000e-01 : f32
    %40 = vector.broadcast %cst_23 : f32 to vector<17x128xf32>
    %41 = arith.mulf %40, %39 : vector<17x128xf32>
    %cst_24 = arith.constant 0.707106769 : f32
    %42 = vector.broadcast %cst_24 : f32 to vector<17x128xf32>
    %43 = arith.mulf %39, %42 : vector<17x128xf32>
    %44 = math.erf %43 : vector<17x128xf32>
    %cst_25 = arith.constant 1.000000e+00 : f32
    %45 = vector.broadcast %cst_25 : f32 to vector<17x128xf32>
    %46 = arith.addf %45, %44 : vector<17x128xf32>
    %47 = arith.mulf %41, %46 : vector<17x128xf32>
    %48 = arith.truncf %47 : vector<17x128xf32> to vector<17x128xbf16>
    %c0_26 = arith.constant 0 : index
    %c0_27 = arith.constant 0 : index
    %49 = vector.load %arg9[%c0_26, %c0_27] : memref<128x32xbf16, #tpu.memory_space<vmem>>, vector<128x32xbf16>
    %cst_28 = arith.constant dense<0.000000e+00> : vector<17x32xf32>
    %50 = tpu.matmul %48, %49, %cst_28 {dimension_numbers = #tpu.dot_dimension_numbers<[1], [0], [0], [1], [0, 0, 1, 1], [], []>} : vector<17x128xbf16>, vector<128x32xbf16>, vector<17x32xf32> -> vector<17x32xf32>
    %c0_29 = arith.constant 0 : index
    %c0_30 = arith.constant 0 : index
    %51 = vector.load %arg10[%c0_29, %c0_30] : memref<1x32xf32, #tpu.memory_space<vmem>>, vector<1x32xf32>
    %52 = vector.broadcast %51 : vector<1x32xf32> to vector<17x32xf32>
    %53 = arith.addf %50, %52 : vector<17x32xf32>
    %54 = arith.addf %9, %53 : vector<17x32xf32>
    %55 = vector.extract_strided_slice %54 {offsets = [0, 0], sizes = [1, 32], strides = [1, 1]} : vector<17x32xf32> to vector<1x32xf32>
    %c0_31 = arith.constant 0 : index
    %c0_32 = arith.constant 0 : index
    %56 = vector.load %arg11[%c0_31, %c0_32] : memref<1x32xf32, #tpu.memory_space<vmem>>, vector<1x32xf32>
    %c0_33 = arith.constant 0 : index
    %c0_34 = arith.constant 0 : index
    %57 = vector.load %arg12[%c0_33, %c0_34] : memref<1x32xf32, #tpu.memory_space<vmem>>, vector<1x32xf32>
    %cst_35 = arith.constant dense<0.000000e+00> : vector<1xf32>
    %58 = vector.multi_reduction <add>, %55, %cst_35 [1] : vector<1x32xf32> to vector<1xf32>
    %59 = vector.shape_cast %58 : vector<1xf32> to vector<1x1xf32>
    %cst_36 = arith.constant 3.200000e+01 : f32
    %60 = vector.broadcast %cst_36 : f32 to vector<1x1xf32>
    %61 = arith.divf %59, %60 : vector<1x1xf32>
    %62 = vector.broadcast %61 : vector<1x1xf32> to vector<1x32xf32>
    %63 = arith.subf %55, %62 : vector<1x32xf32>
    %64 = arith.mulf %63, %63 : vector<1x32xf32>
    %cst_37 = arith.constant dense<0.000000e+00> : vector<1xf32>
    %65 = vector.multi_reduction <add>, %64, %cst_37 [1] : vector<1x32xf32> to vector<1xf32>
    %66 = vector.shape_cast %65 : vector<1xf32> to vector<1x1xf32>
    %cst_38 = arith.constant 3.200000e+01 : f32
    %67 = vector.broadcast %cst_38 : f32 to vector<1x1xf32>
    %68 = arith.divf %66, %67 : vector<1x1xf32>
    %69 = vector.broadcast %61 : vector<1x1xf32> to vector<1x32xf32>
    %70 = arith.subf %55, %69 : vector<1x32xf32>
    %cst_39 = arith.constant 9.99999974E-6 : f32
    %71 = vector.broadcast %cst_39 : f32 to vector<1x1xf32>
    %72 = arith.addf %68, %71 : vector<1x1xf32>
    %73 = math.rsqrt %72 : vector<1x1xf32>
    %74 = vector.broadcast %73 : vector<1x1xf32> to vector<1x32xf32>
    %75 = arith.mulf %70, %74 : vector<1x32xf32>
    %76 = arith.mulf %75, %56 : vector<1x32xf32>
    %77 = arith.addf %76, %57 : vector<1x32xf32>
    %78 = arith.truncf %77 : vector<1x32xf32> to vector<1x32xbf16>
    %c0_40 = arith.constant 0 : index
    %c0_41 = arith.constant 0 : index
    %79 = vector.load %arg13[%c0_40, %c0_41] : memref<32x10xbf16, #tpu.memory_space<vmem>>, vector<32x10xbf16>
    %cst_42 = arith.constant dense<0.000000e+00> : vector<1x10xf32>
    %80 = tpu.matmul %78, %79, %cst_42 {dimension_numbers = #tpu.dot_dimension_numbers<[1], [0], [0], [1], [0, 0, 1, 1], [], []>} : vector<1x32xbf16>, vector<32x10xbf16>, vector<1x10xf32> -> vector<1x10xf32>
    %c0_43 = arith.constant 0 : index
    %c0_44 = arith.constant 0 : index
    %81 = vector.load %arg14[%c0_43, %c0_44] : memref<1x10xf32, #tpu.memory_space<vmem>>, vector<1x10xf32>
    %82 = arith.addf %80, %81 : vector<1x10xf32>
    %c0_45 = arith.constant 0 : index
    %c0_46 = arith.constant 0 : index
    %c0_47 = arith.constant 0 : index
    %83 = vector.load %arg15[%c0_45, %c0_46, %c0_47] : memref<1x1x10xf32, #tpu.memory_space<vmem>>, vector<1x1x10xf32>
    %84 = vector.shape_cast %83 : vector<1x1x10xf32> to vector<1x10xf32>
    %85 = vector.shape_cast %82 : vector<1x10xf32> to vector<1x1x10xf32>
    tpu.vector_store %arg15[%c0_45, %c0_46, %c0_47], %85 {strides = array<i32>} : memref<1x1x10xf32, #tpu.memory_space<vmem>>, vector<1x1x10xf32>,
    return
  }
  func.func @transform_0(%arg0: i32) -> (i32, i32, i32) {
    %c0_i32 = arith.constant 0 : i32
    %c0_i32_0 = arith.constant 0 : i32
    %c0_i32_1 = arith.constant 0 : i32
    return %arg0, %c0_i32, %c0_i32_0 : i32, i32, i32
  }
  func.func @transform_1(%arg0: i32) -> (i32, i32, i32) {
    %c0_i32 = arith.constant 0 : i32
    %c0_i32_0 = arith.constant 0 : i32
    %c0_i32_1 = arith.constant 0 : i32
    return %arg0, %c0_i32, %c0_i32_0 : i32, i32, i32
  }
  func.func @transform_2(%arg0: i32) -> (i32, i32) {
    %c0_i32 = arith.constant 0 : i32
    %c0_i32_0 = arith.constant 0 : i32
    %c0_i32_1 = arith.constant 0 : i32
    return %c0_i32, %c0_i32_0 : i32, i32
  }
  func.func @transform_3(%arg0: i32) -> (i32, i32) {
    %c0_i32 = arith.constant 0 : i32
    %c0_i32_0 = arith.constant 0 : i32
    %c0_i32_1 = arith.constant 0 : i32
    return %c0_i32, %c0_i32_0 : i32, i32
  }
  func.func @transform_4(%arg0: i32) -> (i32, i32) {
    %c0_i32 = arith.constant 0 : i32
    %c0_i32_0 = arith.constant 0 : i32
    %c0_i32_1 = arith.constant 0 : i32
    return %c0_i32, %c0_i32_0 : i32, i32
  }
  func.func @transform_5(%arg0: i32) -> (i32, i32) {
    %c0_i32 = arith.constant 0 : i32
    %c0_i32_0 = arith.constant 0 : i32
    %c0_i32_1 = arith.constant 0 : i32
    return %c0_i32, %c0_i32_0 : i32, i32
  }
  func.func @transform_6(%arg0: i32) -> (i32, i32) {
    %c0_i32 = arith.constant 0 : i32
    %c0_i32_0 = arith.constant 0 : i32
    %c0_i32_1 = arith.constant 0 : i32
    return %c0_i32, %c0_i32_0 : i32, i32
  }
  func.func @transform_7(%arg0: i32) -> (i32, i32) {
    %c0_i32 = arith.constant 0 : i32
    %c0_i32_0 = arith.constant 0 : i32
    %c0_i32_1 = arith.constant 0 : i32
    return %c0_i32, %c0_i32_0 : i32, i32
  }
  func.func @transform_8(%arg0: i32) -> (i32, i32) {
    %c0_i32 = arith.constant 0 : i32
    %c0_i32_0 = arith.constant 0 : i32
    %c0_i32_1 = arith.constant 0 : i32
    return %c0_i32, %c0_i32_0 : i32, i32
  }
  func.func @transform_9(%arg0: i32) -> (i32, i32) {
    %c0_i32 = arith.constant 0 : i32
    %c0_i32_0 = arith.constant 0 : i32
    %c0_i32_1 = arith.constant 0 : i32
    return %c0_i32, %c0_i32_0 : i32, i32
  }
  func.func @transform_10(%arg0: i32) -> (i32, i32) {
    %c0_i32 = arith.constant 0 : i32
    %c0_i32_0 = arith.constant 0 : i32
    %c0_i32_1 = arith.constant 0 : i32
    return %c0_i32, %c0_i32_0 : i32, i32
  }
  func.func @transform_11(%arg0: i32) -> (i32, i32) {
    %c0_i32 = arith.constant 0 : i32
    %c0_i32_0 = arith.constant 0 : i32
    %c0_i32_1 = arith.constant 0 : i32
    return %c0_i32, %c0_i32_0 : i32, i32
  }
  func.func @transform_12(%arg0: i32) -> (i32, i32) {
    %c0_i32 = arith.constant 0 : i32
    %c0_i32_0 = arith.constant 0 : i32
    %c0_i32_1 = arith.constant 0 : i32
    return %c0_i32, %c0_i32_0 : i32, i32
  }
  func.func @transform_13(%arg0: i32) -> (i32, i32) {
    %c0_i32 = arith.constant 0 : i32
    %c0_i32_0 = arith.constant 0 : i32
    %c0_i32_1 = arith.constant 0 : i32
    return %c0_i32, %c0_i32_0 : i32, i32
  }
  func.func @transform_14(%arg0: i32) -> (i32, i32, i32) {
    %c0_i32 = arith.constant 0 : i32
    %c0_i32_0 = arith.constant 0 : i32
    %c0_i32_1 = arith.constant 0 : i32
    return %arg0, %c0_i32, %c0_i32_0 : i32, i32, i32
  }
}

</mosaic_0001>

<llo_original>
// kernel: vit_forward.3
$region0: #{vit_forward.3}
  #allocation0 [shape = 'u32[]', space=smem, size = 0x4, offset = 0x4, fixed_abs, tag = 'smem constant byte address 0x4 - core index']
  #allocation1 [shape = 'u32[144,128]{1,0:T(1,128)}', space=vmem, size = 0x12000, scoped, tag = 'internal scratch']
  %s0 = inlined_call_operand.vmem [shape: f32[2,17,64], index: 0, kind: input, shape index: {}]
  %s1 = inlined_call_operand.vmem [shape: bf16[64,32], index: 1, kind: input, shape index: {}]
  %s2 = inlined_call_operand.vmem [shape: f32[17,32], index: 2, kind: input, shape index: {}]
  %s3 = inlined_call_operand.vmem [shape: f32[1,32], index: 3, kind: input, shape index: {}]
  %s4 = inlined_call_operand.vmem [shape: f32[1,32], index: 4, kind: input, shape index: {}]
  %s5 = inlined_call_operand.vmem [shape: bf16[32,32], index: 5, kind: input, shape index: {}]
  %s6 = inlined_call_operand.vmem [shape: f32[1,32], index: 6, kind: input, shape index: {}]
  %s7 = inlined_call_operand.vmem [shape: bf16[32,32], index: 7, kind: input, shape index: {}]
  %s8 = inlined_call_operand.vmem [shape: f32[1,32], index: 8, kind: input, shape index: {}]
  %s9 = inlined_call_operand.vmem [shape: bf16[32,32], index: 9, kind: input, shape index: {}]
  %s10 = inlined_call_operand.vmem [shape: f32[1,32], index: 10, kind: input, shape index: {}]
  %s11 = inlined_call_operand.vmem [shape: f32[2,17,32], index: 11, kind: output, shape index: {0}]
  %s12 = inlined_call_operand.vmem [shape: bf16[2,17,32], index: 12, kind: output, shape index: {1}]
  %13 = xla_tuple %s11, %s12
  %s14 = sld [smem:[#allocation0]]
  $region85: #{vit_forward.3} parent=0
    _
  %s16 = ssub.s32 1, %s14
  %s17 = scalar_select 0, %s16, %s14
  loop: start=0, step=1, limit=4
  $region2: #{vit_forward.3} parent=0 // loop_pre_header
    _
  $region3: #{vit_forward.3} parent=0 // loop_header
    %s19 = sphi 0, %s23
    %p20 = scmp.ge.s32.totalorder %s19, 4
    %s29 = sphi 0, %s31
    %s32 = sphi 0, %s29
    %s33 = sphi 0, %s32
    %s49 = sphi 0, %s33
    %s53 = sphi 0, %s53
    %s55 = sphi 0, %s53
    %s56 = sphi 0, %s55
    %s70 = sphi 0, %s56
    %s74 = sphi 0, %s74
    %s76 = sphi 0, %s74
    %s77 = sphi 0, %s76
    %s91 = sphi 0, %s77
    %s95 = sphi 0, %s95
    %s97 = sphi 0, %s95
    %s98 = sphi 0, %s97
    %s112 = sphi 0, %s98
    %s116 = sphi 0, %s116
    %s118 = sphi 0, %s116
    %s119 = sphi 0, %s118
    %s133 = sphi 0, %s119
    %s137 = sphi 0, %s137
    %s139 = sphi 0, %s137
    %s140 = sphi 0, %s139
    %s154 = sphi 0, %s140
    %s158 = sphi 0, %s158
    %s160 = sphi 0, %s158
    %s161 = sphi 0, %s160
    %s175 = sphi 0, %s161
    %s179 = sphi 0, %s179
    %s181 = sphi 0, %s179
    %s182 = sphi 0, %s181
    %s196 = sphi 0, %s182
    %s200 = sphi 0, %s200
    %s202 = sphi 0, %s200
    %s203 = sphi 0, %s202
    %s217 = sphi 0, %s203
    %s221 = sphi 0, %s221
    %s223 = sphi 0, %s221
    %s224 = sphi 0, %s223
    %s238 = sphi 0, %s224
    %s242 = sphi 0, %s242
    %s244 = sphi 0, %s242
    %s245 = sphi 0, %s244
    %s259 = sphi 0, %s245
    %s265 = sphi 0, %s267
    %s268 = sphi 0, %s265
    %s269 = sphi 0, %s268
    %s285 = sphi 0, %s269
    %s291 = sphi 0, %s293
    %s294 = sphi 0, %s291
    %s295 = sphi 0, %s294
    %s311 = sphi 0, %s295
  $region4: #{vit_forward.3} parent=0 // loop_header_branch
    %22 = sbr.rel (%p20) target = $region8
  $region5: #{vit_forward.3} parent=0 // loop_body
    %s24 = ssub.s32 %s19, 1
    %s25 = ssub.s32 %s19, 2
    %s26 = sadd.s32 %s19, 1
    %s27 = ssub.s32 %s19, %s26
    %p28 = scmp.eq.s32.totalorder %s27, 0
    %s30 = sadd.s32 %s29, 1
    %s31 = scalar_select %p28, %s29, %s30
    %p34 = pneg %p28
    %p35 = scmp.eq.s32.totalorder %s19, 1
    %p36 = por %p34, %p35
    %p37 = scmp.ne.s32.totalorder %s29, %s32
    %p38 = scmp.eq.s32.totalorder %s19, 0
    %p39 = por %p37, %p38
    %p40 = scmp.ne.s32.totalorder %s29, %s32
    %p41 = scmp.eq.s32.totalorder %s24, 1
    %p42 = por %p40, %p41
    %p43 = scmp.ne.s32.totalorder %s32, %s33
    %p44 = scmp.eq.s32.totalorder %s24, 0
    %p45 = por %p43, %p44
    %p46 = scmp.ne.s32.totalorder %s32, %s33
    %p47 = scmp.eq.s32.totalorder %s25, 1
    %p48 = por %p46, %p47
    %p50 = scmp.ne.s32.totalorder %s33, %s49
    %p51 = scmp.eq.s32.totalorder %s25, 0
    %p52 = por %p50, %p51
    %s54 = sadd.s32 %s53, 1
    %p57 = scmp.eq.s32.totalorder %s19, 1
    %p58 = scmp.ne.s32.totalorder %s53, %s55
    %p59 = scmp.eq.s32.totalorder %s19, 0
    %p60 = por %p58, %p59
    %p61 = scmp.ne.s32.totalorder %s53, %s55
    %p62 = scmp.eq.s32.totalorder %s24, 1
    %p63 = por %p61, %p62
    %p64 = scmp.ne.s32.totalorder %s55, %s56
    %p65 = scmp.eq.s32.totalorder %s24, 0
    %p66 = por %p64, %p65
    %p67 = scmp.ne.s32.totalorder %s55, %s56
    %p68 = scmp.eq.s32.totalorder %s25, 1
    %p69 = por %p67, %p68
    %p71 = scmp.ne.s32.totalorder %s56, %s70
    %p72 = scmp.eq.s32.totalorder %s25, 0
    %p73 = por %p71, %p72
    %s75 = sadd.s32 %s74, 1
    %p78 = scmp.eq.s32.totalorder %s19, 1
    %p79 = scmp.ne.s32.totalorder %s74, %s76
    %p80 = scmp.eq.s32.totalorder %s19, 0
    %p81 = por %p79, %p80
    %p82 = scmp.ne.s32.totalorder %s74, %s76
    %p83 = scmp.eq.s32.totalorder %s24, 1
    %p84 = por %p82, %p83
    %p85 = scmp.ne.s32.totalorder %s76, %s77
    %p86 = scmp.eq.s32.totalorder %s24, 0
    %p87 = por %p85, %p86
    %p88 = scmp.ne.s32.totalorder %s76, %s77
    %p89 = scmp.eq.s32.totalorder %s25, 1
    %p90 = por %p88, %p89
    %p92 = scmp.ne.s32.totalorder %s77, %s91
    %p93 = scmp.eq.s32.totalorder %s25, 0
    %p94 = por %p92, %p93
    %s96 = sadd.s32 %s95, 1
    %p99 = scmp.eq.s32.totalorder %s19, 1
    %p100 = scmp.ne.s32.totalorder %s95, %s97
    %p101 = scmp.eq.s32.totalorder %s19, 0
    %p102 = por %p100, %p101
    %p103 = scmp.ne.s32.totalorder %s95, %s97
    %p104 = scmp.eq.s32.totalorder %s24, 1
    %p105 = por %p103, %p104
    %p106 = scmp.ne.s32.totalorder %s97, %s98
    %p107 = scmp.eq.s32.totalorder %s24, 0
    %p108 = por %p106, %p107
    %p109 = scmp.ne.s32.totalorder %s97, %s98
    %p110 = scmp.eq.s32.totalorder %s25, 1
    %p111 = por %p109, %p110
    %p113 = scmp.ne.s32.totalorder %s98, %s112
    %p114 = scmp.eq.s32.totalorder %s25, 0
    %p115 = por %p113, %p114
    %s117 = sadd.s32 %s116, 1
    %p120 = scmp.eq.s32.totalorder %s19, 1
    %p121 = scmp.ne.s32.totalorder %s116, %s118
    %p122 = scmp.eq.s32.totalorder %s19, 0
    %p123 = por %p121, %p122
    %p124 = scmp.ne.s32.totalorder %s116, %s118
    %p125 = scmp.eq.s32.totalorder %s24, 1
    %p126 = por %p124, %p125
    %p127 = scmp.ne.s32.totalorder %s118, %s119
    %p128 = scmp.eq.s32.totalorder %s24, 0
    %p129 = por %p127, %p128
    %p130 = scmp.ne.s32.totalorder %s118, %s119
    %p131 = scmp.eq.s32.totalorder %s25, 1
    %p132 = por %p130, %p131
    %p134 = scmp.ne.s32.totalorder %s119, %s133
    %p135 = scmp.eq.s32.totalorder %s25, 0
    %p136 = por %p134, %p135
    %s138 = sadd.s32 %s137, 1
    %p141 = scmp.eq.s32.totalorder %s19, 1
    %p142 = scmp.ne.s32.totalorder %s137, %s139
    %p143 = scmp.eq.s32.totalorder %s19, 0
    %p144 = por %p142, %p143
    %p145 = scmp.ne.s32.totalorder %s137, %s139
    %p146 = scmp.eq.s32.totalorder %s24, 1
    %p147 = por %p145, %p146
    %p148 = scmp.ne.s32.totalorder %s139, %s140
    %p149 = scmp.eq.s32.totalorder %s24, 0
    %p150 = por %p148, %p149
    %p151 = scmp.ne.s32.totalorder %s139, %s140
    %p152 = scmp.eq.s32.totalorder %s25, 1
    %p153 = por %p151, %p152
    %p155 = scmp.ne.s32.totalorder %s140, %s154
    %p156 = scmp.eq.s32.totalorder %s25, 0
    %p157 = por %p155, %p156
    %s159 = sadd.s32 %s158, 1
    %p162 = scmp.eq.s32.totalorder %s19, 1
    %p163 = scmp.ne.s32.totalorder %s158, %s160
    %p164 = scmp.eq.s32.totalorder %s19, 0
    %p165 = por %p163, %p164
    %p166 = scmp.ne.s32.totalorder %s158, %s160
    %p167 = scmp.eq.s32.totalorder %s24, 1
    %p168 = por %p166, %p167
    %p169 = scmp.ne.s32.totalorder %s160, %s161
    %p170 = scmp.eq.s32.totalorder %s24, 0
    %p171 = por %p169, %p170
    %p172 = scmp.ne.s32.totalorder %s160, %s161
    %p173 = scmp.eq.s32.totalorder %s25, 1
    %p174 = por %p172, %p173
    %p176 = scmp.ne.s32.totalorder %s161, %s175
    %p177 = scmp.eq.s32.totalorder %s25, 0
    %p178 = por %p176, %p177
    %s180 = sadd.s32 %s179, 1
    %p183 = scmp.eq.s32.totalorder %s19, 1
    %p184 = scmp.ne.s32.totalorder %s179, %s181
    %p185 = scmp.eq.s32.totalorder %s19, 0
    %p186 = por %p184, %p185
    %p187 = scmp.ne.s32.totalorder %s179, %s181
    %p188 = scmp.eq.s32.totalorder %s24, 1
    %p189 = por %p187, %p188
    %p190 = scmp.ne.s32.totalorder %s181, %s182
    %p191 = scmp.eq.s32.totalorder %s24, 0
    %p192 = por %p190, %p191
    %p193 = scmp.ne.s32.totalorder %s181, %s182
    %p194 = scmp.eq.s32.totalorder %s25, 1
    %p195 = por %p193, %p194
    %p197 = scmp.ne.s32.totalorder %s182, %s196
    %p198 = scmp.eq.s32.totalorder %s25, 0
    %p199 = por %p197, %p198
    %s201 = sadd.s32 %s200, 1
    %p204 = scmp.eq.s32.totalorder %s19, 1
    %p205 = scmp.ne.s32.totalorder %s200, %s202
    %p206 = scmp.eq.s32.totalorder %s19, 0
    %p207 = por %p205, %p206
    %p208 = scmp.ne.s32.totalorder %s200, %s202
    %p209 = scmp.eq.s32.totalorder %s24, 1
    %p210 = por %p208, %p209
    %p211 = scmp.ne.s32.totalorder %s202, %s203
    %p212 = scmp.eq.s32.totalorder %s24, 0
    %p213 = por %p211, %p212
    %p214 = scmp.ne.s32.totalorder %s202, %s203
    %p215 = scmp.eq.s32.totalorder %s25, 1
    %p216 = por %p214, %p215
    %p218 = scmp.ne.s32.totalorder %s203, %s217
    %p219 = scmp.eq.s32.totalorder %s25, 0
    %p220 = por %p218, %p219
    %s222 = sadd.s32 %s221, 1
    %p225 = scmp.eq.s32.totalorder %s19, 1
    %p226 = scmp.ne.s32.totalorder %s221, %s223
    %p227 = scmp.eq.s32.totalorder %s19, 0
    %p228 = por %p226, %p227
    %p229 = scmp.ne.s32.totalorder %s221, %s223
    %p230 = scmp.eq.s32.totalorder %s24, 1
    %p231 = por %p229, %p230
    %p232 = scmp.ne.s32.totalorder %s223, %s224
    %p233 = scmp.eq.s32.totalorder %s24, 0
    %p234 = por %p232, %p233
    %p235 = scmp.ne.s32.totalorder %s223, %s224
    %p236 = scmp.eq.s32.totalorder %s25, 1
    %p237 = por %p235, %p236
    %p239 = scmp.ne.s32.totalorder %s224, %s238
    %p240 = scmp.eq.s32.totalorder %s25, 0
    %p241 = por %p239, %p240
    %s243 = sadd.s32 %s242, 1
    %p246 = scmp.eq.s32.totalorder %s19, 1
    %p247 = scmp.ne.s32.totalorder %s242, %s244
    %p248 = scmp.eq.s32.totalorder %s19, 0
    %p249 = por %p247, %p248
    %p250 = scmp.ne.s32.totalorder %s242, %s244
    %p251 = scmp.eq.s32.totalorder %s24, 1
    %p252 = por %p250, %p251
    %p253 = scmp.ne.s32.totalorder %s244, %s245
    %p254 = scmp.eq.s32.totalorder %s24, 0
    %p255 = por %p253, %p254
    %p256 = scmp.ne.s32.totalorder %s244, %s245
    %p257 = scmp.eq.s32.totalorder %s25, 1
    %p258 = por %p256, %p257
    %p260 = scmp.ne.s32.totalorder %s245, %s259
    %p261 = scmp.eq.s32.totalorder %s25, 0
    %p262 = por %p260, %p261
    %s263 = ssub.s32 %s19, %s26
    %p264 = scmp.eq.s32.totalorder %s263, 0
    %s266 = sadd.s32 %s265, 1
    %s267 = scalar_select %p264, %s265, %s266
    %p270 = pneg %p264
    %p271 = scmp.eq.s32.totalorder %s19, 1
    %p272 = por %p270, %p271
    %p273 = scmp.ne.s32.totalorder %s265, %s268
    %p274 = scmp.eq.s32.totalorder %s19, 0
    %p275 = por %p273, %p274
    %p276 = scmp.ne.s32.totalorder %s265, %s268
    %p277 = scmp.eq.s32.totalorder %s24, 1
    %p278 = por %p276, %p277
    %p279 = scmp.ne.s32.totalorder %s268, %s269
    %p280 = scmp.eq.s32.totalorder %s24, 0
    %p281 = por %p279, %p280
    %p282 = scmp.ne.s32.totalorder %s268, %s269
    %p283 = scmp.eq.s32.totalorder %s25, 1
    %p284 = por %p282, %p283
    %p286 = scmp.ne.s32.totalorder %s269, %s285
    %p287 = scmp.eq.s32.totalorder %s25, 0
    %p288 = por %p286, %p287
    %s289 = ssub.s32 %s19, %s26
    %p290 = scmp.eq.s32.totalorder %s289, 0
    %s292 = sadd.s32 %s291, 1
    %s293 = scalar_select %p290, %s291, %s292
    %p296 = pneg %p290
    %p297 = scmp.eq.s32.totalorder %s19, 1
    %p298 = por %p296, %p297
    %p299 = scmp.ne.s32.totalorder %s291, %s294
    %p300 = scmp.eq.s32.totalorder %s19, 0
    %p301 = por %p299, %p300
    %p302 = scmp.ne.s32.totalorder %s291, %s294
    %p303 = scmp.eq.s32.totalorder %s24, 1
    %p304 = por %p302, %p303
    %p305 = scmp.ne.s32.totalorder %s294, %s295
    %p306 = scmp.eq.s32.totalorder %s24, 0
    %p307 = por %p305, %p306
    %p308 = scmp.ne.s32.totalorder %s294, %s295
    %p309 = scmp.eq.s32.totalorder %s25, 1
    %p310 = por %p308, %p309
    %p312 = scmp.ne.s32.totalorder %s295, %s311
    %p313 = scmp.eq.s32.totalorder %s25, 0
    %p314 = por %p312, %p313
    %p315 = scmp.le.s32.totalorder 1, %s19
    %p316 = scmp.lt.s32.totalorder %s19, 3
    %p317 = pnand %p315, %p316
    %p318 = pneg %p317
    // Predicated region
    $region9: #{vit_forward.3} parent=5 // pred_check
      _
    $region10: #{vit_forward.3} parent=5 // pred_check_branch
      %320 = sbr.rel (%p317) target = $region12
    $region11: #{vit_forward.3} parent=5 // pred_region
      %s321 = ssub.s32 %s19, 1
      // Predicated region
      $region13: #{vit_forward.3} parent=11 // pred_check
        %p322 = pneg %p66
      $region14: #{vit_forward.3} parent=11 // pred_check_branch
        %324 = sbr.rel (%p322) target = $region16
      $region15: #{vit_forward.3} parent=11 // pred_region
        _
      $region16: #{vit_forward.3} parent=11 // pred_fallthru
        _
      // Predicated region
      $region17: #{vit_forward.3} parent=11 // pred_check
        %p325 = pneg %p87
      $region18: #{vit_forward.3} parent=11 // pred_check_branch
        %327 = sbr.rel (%p325) target = $region20
      $region19: #{vit_forward.3} parent=11 // pred_region
        _
      $region20: #{vit_forward.3} parent=11 // pred_fallthru
        _
      // Predicated region
      $region21: #{vit_forward.3} parent=11 // pred_check
        %p328 = pneg %p108
      $region22: #{vit_forward.3} parent=11 // pred_check_branch
        %330 = sbr.rel (%p328) target = $region24
      $region23: #{vit_forward.3} parent=11 // pred_region
        _
      $region24: #{vit_forward.3} parent=11 // pred_fallthru
        _
      // Predicated region
      $region25: #{vit_forward.3} parent=11 // pred_check
        %p331 = pneg %p129
      $region26: #{vit_forward.3} parent=11 // pred_check_branch
        %333 = sbr.rel (%p331) target = $region28
      $region27: #{vit_forward.3} parent=11 // pred_region
        _
      $region28: #{vit_forward.3} parent=11 // pred_fallthru
        _
      // Predicated region
      $region29: #{vit_forward.3} parent=11 // pred_check
        %p334 = pneg %p150
      $region30: #{vit_forward.3} parent=11 // pred_check_branch
        %336 = sbr.rel (%p334) target = $region32
      $region31: #{vit_forward.3} parent=11 // pred_region
        _
      $region32: #{vit_forward.3} parent=11 // pred_fallthru
        _
      // Predicated region
      $region33: #{vit_forward.3} parent=11 // pred_check
        %p337 = pneg %p171
      $region34: #{vit_forward.3} parent=11 // pred_check_branch
        %339 = sbr.rel (%p337) target = $region36
      $region35: #{vit_forward.3} parent=11 // pred_region
        _
      $region36: #{vit_forward.3} parent=11 // pred_fallthru
        _
      // Predicated region
      $region37: #{vit_forward.3} parent=11 // pred_check
        %p340 = pneg %p192
      $region38: #{vit_forward.3} parent=11 // pred_check_branch
        %342 = sbr.rel (%p340) target = $region40
      $region39: #{vit_forward.3} parent=11 // pred_region
        _
      $region40: #{vit_forward.3} parent=11 // pred_fallthru
        _
      // Predicated region
      $region41: #{vit_forward.3} parent=11 // pred_check
        %p343 = pneg %p213
      $region42: #{vit_forward.3} parent=11 // pred_check_branch
        %345 = sbr.rel (%p343) target = $region44
      $region43: #{vit_forward.3} parent=11 // pred_region
        _
      $region44: #{vit_forward.3} parent=11 // pred_fallthru
        _
      // Predicated region
      $region45: #{vit_forward.3} parent=11 // pred_check
        %p346 = pneg %p234
      $region46: #{vit_forward.3} parent=11 // pred_check_branch
        %348 = sbr.rel (%p346) target = $region48
      $region47: #{vit_forward.3} parent=11 // pred_region
        _
      $region48: #{vit_forward.3} parent=11 // pred_fallthru
        _
      // Predicated region
      $region49: #{vit_forward.3} parent=11 // pred_check
        %p349 = pneg %p255
      $region50: #{vit_forward.3} parent=11 // pred_check_branch
        %351 = sbr.rel (%p349) target = $region52
      $region51: #{vit_forward.3} parent=11 // pred_region
        _
      $region52: #{vit_forward.3} parent=11 // pred_fallthru
        _
    $region12: #{vit_forward.3} parent=5 // pred_fallthru
      _
    %p352 = scmp.lt.s32.totalorder %s19, 2
    // Predicated region
    $region53: #{vit_forward.3} parent=5 // pred_check
      %p353 = pneg %p352
    $region54: #{vit_forward.3} parent=5 // pred_check_branch
      %355 = sbr.rel (%p353) target = $region56
    $region55: #{vit_forward.3} parent=5 // pred_region
      // Predicated region
      $region57: #{vit_forward.3} parent=55 // pred_check
        %p356 = pneg %p39
      $region58: #{vit_forward.3} parent=55 // pred_check_branch
        %358 = sbr.rel (%p356) target = $region60
      $region59: #{vit_forward.3} parent=55 // pred_region
        %p359 = scmp.lt.s32.totalorder %s19, 1
        %s360 = scalar_select %p359, %s19, 1
        %s361 = smul.addr %s360, 3
        %s362 = smul.addr %s361, 8
        %s363 = scalar_lea.vmem %s0, %s362
      $region60: #{vit_forward.3} parent=55 // pred_fallthru
        _
    $region56: #{vit_forward.3} parent=5 // pred_fallthru
      _
    %p364 = scmp.le.s32.totalorder 1, %s19
    %p365 = scmp.lt.s32.totalorder %s19, 3
    %p366 = pnand %p364, %p365
    %p367 = pneg %p366
    // Predicated region
    $region61: #{vit_forward.3} parent=5 // pred_check
      _
    $region62: #{vit_forward.3} parent=5 // pred_check_branch
      %369 = sbr.rel (%p366) target = $region64
    $region63: #{vit_forward.3} parent=5 // pred_region
      %s370 = ssub.s32 %s19, 1
      %p371 = scmp.lt.s32.totalorder %s24, 1
      %s372 = scalar_select %p371, %s24, 1
      %s373 = smul.addr %s372, 3
      %s374 = smul.addr %s373, 8
      %s375 = scalar_lea.vmem %s0, %s374
      %p376 = pneg %p45
      %p377 = pneg %p42
      %p378 = pneg %p66
      %p379 = pneg %p63
      %p380 = pneg %p87
      %p381 = pneg %p84
      %p382 = pneg %p108
      %p383 = pneg %p105
      %p384 = pneg %p129
      %p385 = pneg %p126
      %p386 = pneg %p150
      %p387 = pneg %p147
      %p388 = pneg %p171
      %p389 = pneg %p168
      %p390 = pneg %p192
      %p391 = pneg %p189
      %p392 = pneg %p213
      %p393 = pneg %p210
      %p394 = pneg %p234
      %p395 = pneg %p231
      %p396 = pneg %p255
      %p397 = pneg %p252
      %p398 = pneg %p281
      %p399 = pneg %p278
      %p400 = scmp.lt.s32.totalorder %s24, 1
      %s401 = scalar_select %p400, %s24, 1
      %s402 = smul.addr %s401, 3
      %s403 = smul.addr %s402, 8
      %s404 = scalar_lea.vmem %s11, %s403
      %p405 = pneg %p307
      %p406 = pneg %p304
      %p407 = scmp.lt.s32.totalorder %s24, 1
      %s408 = scalar_select %p407, %s24, 1
      %s409 = smul.addr %s408, 3
      %s410 = smul.addr %s409, 4
      %s411 = scalar_lea.vmem %s12, %s410
      %p412 = scmp.lt.s32.totalorder %s24, 1
      %s413 = scalar_select %p412, %s24, 1
      %s414 = smul.addr %s413, 3
      %s415 = smul.addr %s414, 8
      %s416 = scalar_lea.vmem %s0, %s415
      %p417 = scmp.lt.s32.totalorder %s24, 1
      %s418 = scalar_select %p417, %s24, 1
      %s419 = smul.addr %s418, 3
      %s420 = smul.addr %s419, 8
      %s421 = scalar_lea.vmem %s11, %s420
      %p422 = scmp.lt.s32.totalorder %s24, 1
      %s423 = scalar_select %p422, %s24, 1
      %s424 = smul.addr %s423, 3
      %s425 = smul.addr %s424, 4
      %s426 = scalar_lea.vmem %s12, %s425
      %v428 = vld [vmem:[%s416] sm:$0xff]
      %v429 = vld [vmem:[%s416 + $0x8] sm:$0xff]
      %v430 = vld [vmem:[%s416 + $0x10] sm:$0x1]
      %v431 = vpack.c.bf16 %v429, %v428
      %v432 = vpack.c.bf16 %v430, %v430
      %v433 = vld [vmem:[%s1] sm:$0xf]
      %v434 = vld [vmem:[%s1 + $0x4] sm:$0xf]
      %v435 = vld [vmem:[%s1 + $0x8] sm:$0xf]
      %v436 = vld [vmem:[%s1 + $0xc] sm:$0xf]
      %v437 = vld [vmem:[%s1 + $0x10] sm:$0xf]
      %v438 = vld [vmem:[%s1 + $0x14] sm:$0xf]
      %v439 = vld [vmem:[%s1 + $0x18] sm:$0xf]
      %v440 = vld [vmem:[%s1 + $0x1c] sm:$0xf]
      %v441 = vld [vmem:[%s2] sm:$0xff]
      %v442 = vld [vmem:[%s2 + $0x8] sm:$0xff]
      %v443 = vld [vmem:[%s2 + $0x10] sm:$0x1]
      %v452 = vunpack.c.l.b16 %v433
      %v453 = vunpack.c.l.b16 %v434
      %v454 = vunpack.c.l.b16 %v435
      %v455 = vunpack.c.l.b16 %v436
      %v456 = vunpack.c.l.b16 %v437
      %v457 = vunpack.c.l.b16 %v438
      %v458 = vunpack.c.l.b16 %v439
      %v459 = vunpack.c.l.b16 %v440
      %v460 = vpack.c.b16 %v453, %v452
      %v461 = vpack.c.b16 %v455, %v454
      %v462 = vpack.c.b16 %v457, %v456
      %v463 = vpack.c.b16 %v459, %v458
      %vm468 = vcmask 523264
      %v470 = vsel %vm468, %v431, 0
      %v473 = vsel %vm468, %v432, 0
      %475 = vmatprep.subr.bf16.mxu0 0
      %476 = vmatpush1.bf16.msra.mxu0 %v460
      %477 = vmatprep.subr.bf16.mxu0 0
      %478 = vmatpush1.bf16.msra.mxu0 %v461
      %479 = vmatprep.subr.bf16.mxu0 0
      %480 = vmatpush1.bf16.msra.mxu0 %v462
      %481 = vmatprep.subr.bf16.mxu0 0
      %482 = vmatpush1.bf16.msra.mxu0 %v463
      %483 = vmatprep.subr.bf16.mxu0 0
      %484 = vmatpush1.bf16.msra.mxu0 0
      %485 = vmatprep.subr.bf16.mxu0 0
      %486 = vmatpush1.bf16.msra.mxu0 0
      %487 = vmatprep.subr.bf16.mxu0 0
      %488 = vmatpush1.bf16.msra.mxu0 0
      %489 = vmatprep.subr.bf16.mxu0 0
      %490 = vmatpush1.bf16.msra.mxu0 0
      %491 = vmatprep.subr.bf16.mxu0 0
      %492 = vmatpush1.bf16.msra.mxu0 0
      %493 = vmatprep.subr.bf16.mxu0 0
      %494 = vmatpush1.bf16.msra.mxu0 0
      %495 = vmatprep.subr.bf16.mxu0 0
      %496 = vmatpush1.bf16.msra.mxu0 0
      %497 = vmatprep.subr.bf16.mxu0 0
      %498 = vmatpush1.bf16.msra.mxu0 0
      %499 = vmatprep.subr.bf16.mxu0 0
      %500 = vmatpush1.bf16.msra.mxu0 0
      %501 = vmatprep.subr.bf16.mxu0 0
      %502 = vmatpush1.bf16.msra.mxu0 0
      %503 = vmatprep.subr.bf16.mxu0 0
      %504 = vmatpush1.bf16.msra.mxu0 0
      %505 = vmatprep.subr.bf16.mxu0 0
      %506 = vmatpush1.bf16.msra.mxu0 0
      %507 = vmatprep.mubr.bf16.mxu0 0
      %508 = vmatmul.mubr.bf16.gmra.mrb[0].mxu0 %v470
      %v509 = vpop.f32.mrb[0].mxu0
      %v510 = vadd.f32 %v441, %v509
      %v511 = vpop.f32.mrb[0].mxu0
      %v512 = vpop.f32.mrb[0].mxu0
      %v513 = vadd.f32 %v442, %v512
      %v514 = vpop.f32.mrb[0].mxu0
      %515 = vmatprep.mubr.bf16.mxu0 0
      %516 = vmatmul.mubr.bf16.gmra.mrb[0].mxu0 %v473
      %v517 = vpop.f32.mrb[0].mxu0
      %v518 = vadd.f32 %v443, %v517
      %v519 = vpop.f32.mrb[0].mxu0
      %v520 = vpop.f32.mrb[0].mxu0
      %v521 = vpop.f32.mrb[0].mxu0
      %522 = vdwg.mxu0
      %vm523 = vcmask 261120
      %524 = vst.msk [vmem:[%s421] sm:$0xff] %vm523, %v510
      %525 = vst.msk [vmem:[%s421 + $0x8] sm:$0xff] %vm523, %v513
      %vm526 = vcmask 253952
      %527 = vst.msk [vmem:[%s421 + $0x10] sm:$0x1] %vm526, %v518
      %v528 = vld [vmem:[%s3] sm:$0x1]
      %v529 = vld [vmem:[%s4] sm:$0x1]
      %v530 = vsel %vm523, %v510, 0.0
      %531 = vadd.xlane.f32.xlu0 %v530
      %v532 = vpop.xlane.xlu0 %531
      %v533 = vsel %vm523, %v513, 0.0
      %534 = vadd.xlane.f32.xlu0 %v533
      %v535 = vpop.xlane.xlu0 %534
      %v536 = vsel %vm526, %v518, 0.0
      %537 = vadd.xlane.f32.xlu0 %v536
      %v538 = vpop.xlane.xlu0 %537
      %v539 = vrcp.pop 32.0
      %v540 = vmul.f32 %v532, %v539
      %v541 = vmul.f32 %v535, %v539
      %v542 = vmul.f32 %v538, %v539
      %v543 = vsub.f32 %v510, %v540
      %v544 = vsub.f32 %v513, %v541
      %v545 = vsub.f32 %v518, %v542
      %v546 = vmul.f32 %v543, %v543
      %v547 = vmul.f32 %v544, %v544
      %v548 = vmul.f32 %v545, %v545
      %v549 = vsel %vm523, %v546, 0.0
      %550 = vadd.xlane.f32.xlu0 %v549
      %v551 = vpop.xlane.xlu0 %550
      %v552 = vsel %vm523, %v547, 0.0
      %553 = vadd.xlane.f32.xlu0 %v552
      %v554 = vpop.xlane.xlu0 %553
      %v555 = vsel %vm526, %v548, 0.0
      %556 = vadd.xlane.f32.xlu0 %v555
      %v557 = vpop.xlane.xlu0 %556
      %v558 = vmul.f32 %v551, %v539
      %v559 = vmul.f32 %v554, %v539
      %v560 = vmul.f32 %v557, %v539
      %v561 = vadd.f32 %v558, 1e-05
      %v562 = vadd.f32 %v559, 1e-05
      %v563 = vadd.f32 %v560, 1e-05
      %v564 = vrsqrt.pop %v561
      %v565 = vrsqrt.pop %v562
      %v566 = vrsqrt.pop %v563
      %v567 = vmul.f32 %v543, %v564
      %v568 = vmul.f32 %v544, %v565
      %v569 = vmul.f32 %v545, %v566
      %v571 = vlaneseq
      %v572 = vshrl.u32 %v571, 7
      %v573 = vsub.s32 0, %v572
      %v574 = vrot.slane %v528, %v573
      %v576 = vmul.f32 %v567, %v574
      %v577 = vmul.f32 %v568, %v574
      %v578 = vmul.f32 %v569, %v574
      %v580 = vlaneseq
      %v581 = vshrl.u32 %v580, 7
      %v582 = vsub.s32 0, %v581
      %v583 = vrot.slane %v529, %v582
      %v585 = vadd.f32 %v576, %v583
      %v586 = vadd.f32 %v577, %v583
      %v587 = vadd.f32 %v578, %v583
      %v588 = vpack.c.bf16 %v586, %v585
      %v589 = vpack.c.bf16 %v587, %v587
      %v590 = vld [vmem:[%s5] sm:$0xf]
      %v591 = vld [vmem:[%s5 + $0x4] sm:$0xf]
      %v592 = vld [vmem:[%s5 + $0x8] sm:$0xf]
      %v593 = vld [vmem:[%s5 + $0xc] sm:$0xf]
      %v594 = vld [vmem:[%s6] sm:$0x1]
      %v596 = vlaneseq
      %v597 = vshrl.u32 %v596, 7
      %v598 = vsub.s32 0, %v597
      %v599 = vrot.slane %v594, %v598
      %v605 = vunpack.c.l.b16 %v590
      %v606 = vunpack.c.l.b16 %v591
      %v607 = vunpack.c.l.b16 %v592
      %v608 = vunpack.c.l.b16 %v593
      %v609 = vpack.c.b16 %v606, %v605
      %v610 = vpack.c.b16 %v608, %v607
      %v614 = vsel %vm523, %v588, 0
      %v617 = vsel %vm523, %v589, 0
      %619 = vmatprep.subr.bf16.mxu0 0
      %620 = vmatpush1.bf16.msra.mxu0 %v609
      %621 = vmatprep.subr.bf16.mxu0 0
      %622 = vmatpush1.bf16.msra.mxu0 %v610
      %623 = vmatprep.subr.bf16.mxu0 0
      %624 = vmatpush1.bf16.msra.mxu0 0
      %625 = vmatprep.subr.bf16.mxu0 0
      %626 = vmatpush1.bf16.msra.mxu0 0
      %627 = vmatprep.subr.bf16.mxu0 0
      %628 = vmatpush1.bf16.msra.mxu0 0
      %629 = vmatprep.subr.bf16.mxu0 0
      %630 = vmatpush1.bf16.msra.mxu0 0
      %631 = vmatprep.subr.bf16.mxu0 0
      %632 = vmatpush1.bf16.msra.mxu0 0
      %633 = vmatprep.subr.bf16.mxu0 0
      %634 = vmatpush1.bf16.msra.mxu0 0
      %635 = vmatprep.subr.bf16.mxu0 0
      %636 = vmatpush1.bf16.msra.mxu0 0
      %637 = vmatprep.subr.bf16.mxu0 0
      %638 = vmatpush1.bf16.msra.mxu0 0
      %639 = vmatprep.subr.bf16.mxu0 0
      %640 = vmatpush1.bf16.msra.mxu0 0
      %641 = vmatprep.subr.bf16.mxu0 0
      %642 = vmatpush1.bf16.msra.mxu0 0
      %643 = vmatprep.subr.bf16.mxu0 0
      %644 = vmatpush1.bf16.msra.mxu0 0
      %645 = vmatprep.subr.bf16.mxu0 0
      %646 = vmatpush1.bf16.msra.mxu0 0
      %647 = vmatprep.subr.bf16.mxu0 0
      %648 = vmatpush1.bf16.msra.mxu0 0
      %649 = vmatprep.subr.bf16.mxu0 0
      %650 = vmatpush1.bf16.msra.mxu0 0
      %651 = vmatprep.mubr.bf16.mxu0 0
      %652 = vmatmul.mubr.bf16.gmra.mrb[0].mxu0 %v614
      %v653 = vpop.f32.mrb[0].mxu0
      %v654 = vadd.f32 %v599, %v653
      %v655 = vpop.f32.mrb[0].mxu0
      %v656 = vpop.f32.mrb[0].mxu0
      %v657 = vadd.f32 %v599, %v656
      %v658 = vpop.f32.mrb[0].mxu0
      %659 = vmatprep.mubr.bf16.mxu0 0
      %660 = vmatmul.mubr.bf16.gmra.mrb[0].mxu0 %v617
      %v661 = vpop.f32.mrb[0].mxu0
      %v662 = vadd.f32 %v599, %v661
      %v663 = vpop.f32.mrb[0].mxu0
      %v664 = vpop.f32.mrb[0].mxu0
      %v665 = vpop.f32.mrb[0].mxu0
      %666 = vdwg.mxu0
      %v667 = vld [vmem:[%s7] sm:$0xf]
      %v668 = vld [vmem:[%s7 + $0x4] sm:$0xf]
      %v669 = vld [vmem:[%s7 + $0x8] sm:$0xf]
      %v670 = vld [vmem:[%s7 + $0xc] sm:$0xf]
      %v671 = vld [vmem:[%s8] sm:$0x1]
      %v673 = vlaneseq
      %v674 = vshrl.u32 %v673, 7
      %v675 = vsub.s32 0, %v674
      %v676 = vrot.slane %v671, %v675
      %v682 = vunpack.c.l.b16 %v667
      %v683 = vunpack.c.l.b16 %v668
      %v684 = vunpack.c.l.b16 %v669
      %v685 = vunpack.c.l.b16 %v670
      %v686 = vpack.c.b16 %v683, %v682
      %v687 = vpack.c.b16 %v685, %v684
      %690 = vmatprep.subr.bf16.mxu0 0
      %691 = vmatpush1.bf16.msra.mxu0 %v686
      %692 = vmatprep.subr.bf16.mxu0 0
      %693 = vmatpush1.bf16.msra.mxu0 %v687
      %694 = vmatprep.subr.bf16.mxu0 0
      %695 = vmatpush1.bf16.msra.mxu0 0
      %696 = vmatprep.subr.bf16.mxu0 0
      %697 = vmatpush1.bf16.msra.mxu0 0
      %698 = vmatprep.subr.bf16.mxu0 0
      %699 = vmatpush1.bf16.msra.mxu0 0
      %700 = vmatprep.subr.bf16.mxu0 0
      %701 = vmatpush1.bf16.msra.mxu0 0
      %702 = vmatprep.subr.bf16.mxu0 0
      %703 = vmatpush1.bf16.msra.mxu0 0
      %704 = vmatprep.subr.bf16.mxu0 0
      %705 = vmatpush1.bf16.msra.mxu0 0
      %706 = vmatprep.subr.bf16.mxu0 0
      %707 = vmatpush1.bf16.msra.mxu0 0
      %708 = vmatprep.subr.bf16.mxu0 0
      %709 = vmatpush1.bf16.msra.mxu0 0
      %710 = vmatprep.subr.bf16.mxu0 0
      %711 = vmatpush1.bf16.msra.mxu0 0
      %712 = vmatprep.subr.bf16.mxu0 0
      %713 = vmatpush1.bf16.msra.mxu0 0
      %714 = vmatprep.subr.bf16.mxu0 0
      %715 = vmatpush1.bf16.msra.mxu0 0
      %716 = vmatprep.subr.bf16.mxu0 0
      %717 = vmatpush1.bf16.msra.mxu0 0
      %718 = vmatprep.subr.bf16.mxu0 0
      %719 = vmatpush1.bf16.msra.mxu0 0
      %720 = vmatprep.subr.bf16.mxu0 0
      %721 = vmatpush1.bf16.msra.mxu0 0
      %722 = vmatprep.mubr.bf16.mxu0 0
      %723 = vmatmul.mubr.bf16.gmra.mrb[0].mxu0 %v614
      %v724 = vpop.f32.mrb[0].mxu0
      %v725 = vadd.f32 %v676, %v724
      %v726 = vpop.f32.mrb[0].mxu0
      %v727 = vpop.f32.mrb[0].mxu0
      %v728 = vadd.f32 %v676, %v727
      %v729 = vpop.f32.mrb[0].mxu0
      %730 = vmatprep.mubr.bf16.mxu0 0
      %731 = vmatmul.mubr.bf16.gmra.mrb[0].mxu0 %v617
      %v732 = vpop.f32.mrb[0].mxu0
      %v733 = vadd.f32 %v676, %v732
      %v734 = vpop.f32.mrb[0].mxu0
      %v735 = vpop.f32.mrb[0].mxu0
      %v736 = vpop.f32.mrb[0].mxu0
      %737 = vdwg.mxu0
      %v738 = vld [vmem:[%s9] sm:$0xf]
      %v739 = vld [vmem:[%s9 + $0x4] sm:$0xf]
      %v740 = vld [vmem:[%s9 + $0x8] sm:$0xf]
      %v741 = vld [vmem:[%s9 + $0xc] sm:$0xf]
      %v742 = vld [vmem:[%s10] sm:$0x1]
      %v744 = vlaneseq
      %v745 = vshrl.u32 %v744, 7
      %v746 = vsub.s32 0, %v745
      %v747 = vrot.slane %v742, %v746
      %v753 = vunpack.c.l.b16 %v738
      %v754 = vunpack.c.l.b16 %v739
      %v755 = vunpack.c.l.b16 %v740
      %v756 = vunpack.c.l.b16 %v741
      %v757 = vpack.c.b16 %v754, %v753
      %v758 = vpack.c.b16 %v756, %v755
      %761 = vmatprep.subr.bf16.mxu0 0
      %762 = vmatpush1.bf16.msra.mxu0 %v757
      %763 = vmatprep.subr.bf16.mxu0 0
      %764 = vmatpush1.bf16.msra.mxu0 %v758
      %765 = vmatprep.subr.bf16.mxu0 0
      %766 = vmatpush1.bf16.msra.mxu0 0
      %767 = vmatprep.subr.bf16.mxu0 0
      %768 = vmatpush1.bf16.msra.mxu0 0
      %769 = vmatprep.subr.bf16.mxu0 0
      %770 = vmatpush1.bf16.msra.mxu0 0
      %771 = vmatprep.subr.bf16.mxu0 0
      %772 = vmatpush1.bf16.msra.mxu0 0
      %773 = vmatprep.subr.bf16.mxu0 0
      %774 = vmatpush1.bf16.msra.mxu0 0
      %775 = vmatprep.subr.bf16.mxu0 0
      %776 = vmatpush1.bf16.msra.mxu0 0
      %777 = vmatprep.subr.bf16.mxu0 0
      %778 = vmatpush1.bf16.msra.mxu0 0
      %779 = vmatprep.subr.bf16.mxu0 0
      %780 = vmatpush1.bf16.msra.mxu0 0
      %781 = vmatprep.subr.bf16.mxu0 0
      %782 = vmatpush1.bf16.msra.mxu0 0
      %783 = vmatprep.subr.bf16.mxu0 0
      %784 = vmatpush1.bf16.msra.mxu0 0
      %785 = vmatprep.subr.bf16.mxu0 0
      %786 = vmatpush1.bf16.msra.mxu0 0
      %787 = vmatprep.subr.bf16.mxu0 0
      %788 = vmatpush1.bf16.msra.mxu0 0
      %789 = vmatprep.subr.bf16.mxu0 0
      %790 = vmatpush1.bf16.msra.mxu0 0
      %791 = vmatprep.subr.bf16.mxu0 0
      %792 = vmatpush1.bf16.msra.mxu0 0
      %793 = vmatprep.mubr.bf16.mxu0 0
      %794 = vmatmul.mubr.bf16.gmra.mrb[0].mxu0 %v614
      %v795 = vpop.f32.mrb[0].mxu0
      %v796 = vadd.f32 %v747, %v795
      %v797 = vpop.f32.mrb[0].mxu0
      %v798 = vpop.f32.mrb[0].mxu0
      %v799 = vadd.f32 %v747, %v798
      %v800 = vpop.f32.mrb[0].mxu0
      %801 = vmatprep.mubr.bf16.mxu0 0
      %802 = vmatmul.mubr.bf16.gmra.mrb[0].mxu0 %v617
      %v803 = vpop.f32.mrb[0].mxu0
      %v804 = vadd.f32 %v747, %v803
      %v805 = vpop.f32.mrb[0].mxu0
      %v806 = vpop.f32.mrb[0].mxu0
      %v807 = vpop.f32.mrb[0].mxu0
      %808 = vdwg.mxu0
      %v809 = vpack.c.bf16 %v657, %v654
      %v810 = vpack.c.bf16 %v662, %v662
      %v811 = vpack.c.bf16 %v728, %v725
      %v812 = vpack.c.bf16 %v733, %v733
      %v814 = vsel %vm523, %v809, 0
      %v817 = vsel %vm523, %v810, 0
      %v820 = vsel %vm523, %v811, 0
      %v823 = vsel %vm523, %v812, 0
      %825 = vmatprep.subr.bf16.mxu0 0
      %826 = vmatpush1.bf16.xpose.msra.mxu0 %v820
      %827 = vmatprep.subr.bf16.mxu0 0
      %828 = vmatpush1.bf16.xpose.msra.mxu0 %v823
      %829 = vmatprep.subr.bf16.mxu0 0
      %830 = vmatpush1.bf16.xpose.msra.mxu0 0
      %831 = vmatprep.subr.bf16.mxu0 0
      %832 = vmatpush1.bf16.xpose.msra.mxu0 0
      %833 = vmatprep.subr.bf16.mxu0 0
      %834 = vmatpush1.bf16.xpose.msra.mxu0 0
      %835 = vmatprep.subr.bf16.mxu0 0
      %836 = vmatpush1.bf16.xpose.msra.mxu0 0
      %837 = vmatprep.subr.bf16.mxu0 0
      %838 = vmatpush1.bf16.xpose.msra.mxu0 0
      %839 = vmatprep.subr.bf16.mxu0 0
      %840 = vmatpush1.bf16.xpose.msra.mxu0 0
      %841 = vmatprep.subr.bf16.mxu0 0
      %842 = vmatpush1.bf16.xpose.msra.mxu0 0
      %843 = vmatprep.subr.bf16.mxu0 0
      %844 = vmatpush1.bf16.xpose.msra.mxu0 0
      %845 = vmatprep.subr.bf16.mxu0 0
      %846 = vmatpush1.bf16.xpose.msra.mxu0 0
      %847 = vmatprep.subr.bf16.mxu0 0
      %848 = vmatpush1.bf16.xpose.msra.mxu0 0
      %849 = vmatprep.subr.bf16.mxu0 0
      %850 = vmatpush1.bf16.xpose.msra.mxu0 0
      %851 = vmatprep.subr.bf16.mxu0 0
      %852 = vmatpush1.bf16.xpose.msra.mxu0 0
      %853 = vmatprep.subr.bf16.mxu0 0
      %854 = vmatpush1.bf16.xpose.msra.mxu0 0
      %855 = vmatprep.subr.bf16.mxu0 0
      %856 = vmatpush1.bf16.xpose.msra.mxu0 0
      %857 = vmatprep.mubr.bf16.mxu0 0
      %858 = vmatmul.mubr.bf16.gmra.mrb[0].mxu0 %v814
      %v859 = vpop.f32.mrb[0].mxu0
      %v860 = vadd.f32 0.0, %v859
      %v861 = vpop.f32.mrb[0].mxu0
      %v862 = vpop.f32.mrb[0].mxu0
      %v863 = vadd.f32 0.0, %v862
      %v864 = vpop.f32.mrb[0].mxu0
      %865 = vmatprep.mubr.bf16.mxu0 0
      %866 = vmatmul.mubr.bf16.gmra.mrb[0].mxu0 %v817
      %v867 = vpop.f32.mrb[0].mxu0
      %v868 = vadd.f32 0.0, %v867
      %v869 = vpop.f32.mrb[0].mxu0
      %v870 = vpop.f32.mrb[0].mxu0
      %v871 = vpop.f32.mrb[0].mxu0
      %872 = vdwg.mxu0
      %v873 = vmul.f32 %v860, 0.25
      %v874 = vmul.f32 %v863, 0.25
      %v875 = vmul.f32 %v868, 0.25
      %vm876 = vcmask 138240
      %v877 = vsel %vm876, %v873, -inf
      %878 = vmax.xlane.f32.xlu0 %v877
      %v879 = vpop.xlane.xlu0 %878
      %v880 = vsel %vm876, %v874, -inf
      %881 = vmax.xlane.f32.xlu0 %v880
      %v882 = vpop.xlane.xlu0 %881
      %vm883 = vcmask 131072
      %v884 = vsel %vm883, %v875, -inf
      %885 = vmax.xlane.f32.xlu0 %v884
      %v886 = vpop.xlane.xlu0 %885
      %v887 = vsub.f32 %v873, %v879
      %v888 = vsub.f32 %v874, %v882
      %v889 = vsub.f32 %v875, %v886
      %v890 = vmul.f32 %v887, 1.442695
      %v891 = vpow.pop %v890
      %v892 = vmul.f32 %v888, 1.442695
      %v893 = vpow.pop %v892
      %v894 = vmul.f32 %v889, 1.442695
      %v895 = vpow.pop %v894
      %v896 = vsel %vm876, %v891, 0.0
      %897 = vadd.xlane.f32.xlu0 %v896
      %v898 = vpop.xlane.xlu0 %897
      %v899 = vsel %vm876, %v893, 0.0
      %900 = vadd.xlane.f32.xlu0 %v899
      %v901 = vpop.xlane.xlu0 %900
      %v902 = vsel %vm883, %v895, 0.0
      %903 = vadd.xlane.f32.xlu0 %v902
      %v904 = vpop.xlane.xlu0 %903
      %v905 = vrcp.pop %v898
      %v906 = vrcp.pop %v901
      %v907 = vrcp.pop %v904
      %v908 = vmul.f32 %v891, %v905
      %v909 = vmul.f32 %v893, %v906
      %v910 = vmul.f32 %v895, %v907
      %v911 = vpack.c.bf16 %v909, %v908
      %v912 = vpack.c.bf16 %v910, %v910
      %v913 = vpack.c.bf16 %v799, %v796
      %v914 = vpack.c.bf16 %v804, %v804
      %v916 = vsel %vm876, %v911, 0
      %v919 = vsel %vm876, %v912, 0
      %vm921 = vcmask 1040384
      %v922 = vsel 0, 4294967295, 65535
      %v923 = vsel %vm921, %v922, 0
      %v925 = vand.u32 %v914, %v923
      %927 = vmatprep.subr.bf16.mxu0 0
      %928 = vmatpush1.bf16.msra.mxu0 %v913
      %929 = vmatprep.subr.bf16.mxu0 0
      %930 = vmatpush1.bf16.msra.mxu0 %v925
      %931 = vmatprep.subr.bf16.mxu0 0
      %932 = vmatpush1.bf16.msra.mxu0 0
      %933 = vmatprep.subr.bf16.mxu0 0
      %934 = vmatpush1.bf16.msra.mxu0 0
      %935 = vmatprep.subr.bf16.mxu0 0
      %936 = vmatpush1.bf16.msra.mxu0 0
      %937 = vmatprep.subr.bf16.mxu0 0
      %938 = vmatpush1.bf16.msra.mxu0 0
      %939 = vmatprep.subr.bf16.mxu0 0
      %940 = vmatpush1.bf16.msra.mxu0 0
      %941 = vmatprep.subr.bf16.mxu0 0
      %942 = vmatpush1.bf16.msra.mxu0 0
      %943 = vmatprep.subr.bf16.mxu0 0
      %944 = vmatpush1.bf16.msra.mxu0 0
      %945 = vmatprep.subr.bf16.mxu0 0
      %946 = vmatpush1.bf16.msra.mxu0 0
      %947 = vmatprep.subr.bf16.mxu0 0
      %948 = vmatpush1.bf16.msra.mxu0 0
      %949 = vmatprep.subr.bf16.mxu0 0
      %950 = vmatpush1.bf16.msra.mxu0 0
      %951 = vmatprep.subr.bf16.mxu0 0
      %952 = vmatpush1.bf16.msra.mxu0 0
      %953 = vmatprep.subr.bf16.mxu0 0
      %954 = vmatpush1.bf16.msra.mxu0 0
      %955 = vmatprep.subr.bf16.mxu0 0
      %956 = vmatpush1.bf16.msra.mxu0 0
      %957 = vmatprep.subr.bf16.mxu0 0
      %958 = vmatpush1.bf16.msra.mxu0 0
      %959 = vmatprep.mubr.bf16.mxu0 0
      %960 = vmatmul.mubr.bf16.gmra.mrb[0].mxu0 %v916
      %v961 = vpop.f32.mrb[0].mxu0
      %v962 = vadd.f32 0.0, %v961
      %v963 = vpop.f32.mrb[0].mxu0
      %v964 = vpop.f32.mrb[0].mxu0
      %v965 = vadd.f32 0.0, %v964
      %v966 = vpop.f32.mrb[0].mxu0
      %967 = vmatprep.mubr.bf16.mxu0 0
      %968 = vmatmul.mubr.bf16.gmra.mrb[0].mxu0 %v919
      %v969 = vpop.f32.mrb[0].mxu0
      %v970 = vadd.f32 0.0, %v969
      %v971 = vpop.f32.mrb[0].mxu0
      %v972 = vpop.f32.mrb[0].mxu0
      %v973 = vpop.f32.mrb[0].mxu0
      %974 = vdwg.mxu0
      %v975 = vpack.c.bf16 %v965, %v962
      %v976 = vpack.c.bf16 %v970, %v970
      %v979 = vunpack.c.l.b16 %v975
      %v980 = vunpack.c.h.b16 %v975
      %v981 = vunpack.c.l.b16 %v976
      %v982 = vpack.c.b16 %v979, %v979
      %v983 = vpack.c.b16 %v980, %v980
      %v984 = vpack.c.b16 %v981, %v981
      %vm988 = vcmask 257024
      %989 = vst.msk [vmem:[%s426] sm:$0xf] %vm988, %v982
      %990 = vst.msk [vmem:[%s426 + $0x4] sm:$0xf] %vm988, %v983
      %vm991 = vcmask 253952
      %vm992 = vsmask.f32 256
      %vm993 = vmand %vm991, %vm992
      %v994 = vld [vmem:[%s426 + $0x8] sm:$0x1]
      %v995 = vsel %vm993, %v984, %v994
      %996 = vst [vmem:[%s426 + $0x8] sm:$0x1] %v995
      %p997 = scmp.lt.s32.totalorder %s24, 1
      %s998 = scalar_select %p997, %s24, 1
      %s999 = smul.addr %s998, 3
      %s1000 = smul.addr %s999, 8
      %s1001 = scalar_lea.vmem %s11, %s1000
      %p1002 = scmp.lt.s32.totalorder %s24, 1
      %s1003 = scalar_select %p1002, %s24, 1
      %s1004 = smul.addr %s1003, 3
      %s1005 = smul.addr %s1004, 4
      %s1006 = scalar_lea.vmem %s12, %s1005
      // Predicated region
      $region65: #{vit_forward.3} parent=63 // pred_check
        %p1007 = pneg %p278
      $region66: #{vit_forward.3} parent=63 // pred_check_branch
        %1009 = sbr.rel (%p1007) target = $region68
      $region67: #{vit_forward.3} parent=63 // pred_region
        _
      $region68: #{vit_forward.3} parent=63 // pred_fallthru
        _
      // Predicated region
      $region69: #{vit_forward.3} parent=63 // pred_check
        %p1010 = pneg %p304
      $region70: #{vit_forward.3} parent=63 // pred_check_branch
        %1012 = sbr.rel (%p1010) target = $region72
      $region71: #{vit_forward.3} parent=63 // pred_region
        _
      $region72: #{vit_forward.3} parent=63 // pred_fallthru
        _
    $region64: #{vit_forward.3} parent=5 // pred_fallthru
      _
    %p1013 = scmp.le.s32.totalorder 2, %s19
    // Predicated region
    $region73: #{vit_forward.3} parent=5 // pred_check
      %p1014 = pneg %p1013
    $region74: #{vit_forward.3} parent=5 // pred_check_branch
      %1016 = sbr.rel (%p1014) target = $region76
    $region75: #{vit_forward.3} parent=5 // pred_region
      %s1017 = ssub.s32 %s19, 2
      // Predicated region
      $region77: #{vit_forward.3} parent=75 // pred_check
        %p1018 = pneg %p284
      $region78: #{vit_forward.3} parent=75 // pred_check_branch
        %1020 = sbr.rel (%p1018) target = $region80
      $region79: #{vit_forward.3} parent=75 // pred_region
        %p1021 = scmp.lt.s32.totalorder %s25, 1
        %s1022 = scalar_select %p1021, %s25, 1
        %s1023 = smul.addr %s1022, 3
        %s1024 = smul.addr %s1023, 8
        %s1025 = scalar_lea.vmem %s11, %s1024
      $region80: #{vit_forward.3} parent=75 // pred_fallthru
        _
      // Predicated region
      $region81: #{vit_forward.3} parent=75 // pred_check
        %p1026 = pneg %p310
      $region82: #{vit_forward.3} parent=75 // pred_check_branch
        %1028 = sbr.rel (%p1026) target = $region84
      $region83: #{vit_forward.3} parent=75 // pred_region
        %p1029 = scmp.lt.s32.totalorder %s25, 1
        %s1030 = scalar_select %p1029, %s25, 1
        %s1031 = smul.addr %s1030, 3
        %s1032 = smul.addr %s1031, 4
        %s1033 = scalar_lea.vmem %s12, %s1032
      $region84: #{vit_forward.3} parent=75 // pred_fallthru
        _
    $region76: #{vit_forward.3} parent=5 // pred_fallthru
      _
  $region6: #{vit_forward.3} parent=0 // loop_footer
    %s23 = sadd.s32 1, %s19
  $region7: #{vit_forward.3} parent=0 // loop_footer_branch
    %18 = sbr.rel target = $region3
  $region8: #{vit_forward.3} parent=0 // loop_exit
    _

// kernel: vit_forward.5
$region0: #{vit_forward.5}
  #allocation0 [shape = 'u32[]', space=smem, size = 0x4, offset = 0x4, fixed_abs, tag = 'smem constant byte address 0x4 - core index']
  #allocation1 [shape = 'u32[144,128]{1,0:T(1,128)}', space=vmem, size = 0x12000, scoped, tag = 'internal scratch']
  %s0 = inlined_call_operand.vmem [shape: f32[2,17,32], index: 0, kind: input, shape index: {}]
  %s1 = inlined_call_operand.vmem [shape: bf16[2,17,32], index: 1, kind: input, shape index: {}]
  %s2 = inlined_call_operand.vmem [shape: bf16[32,32], index: 2, kind: input, shape index: {}]
  %s3 = inlined_call_operand.vmem [shape: f32[1,32], index: 3, kind: input, shape index: {}]
  %s4 = inlined_call_operand.vmem [shape: f32[1,32], index: 4, kind: input, shape index: {}]
  %s5 = inlined_call_operand.vmem [shape: f32[1,32], index: 5, kind: input, shape index: {}]
  %s6 = inlined_call_operand.vmem [shape: bf16[32,128], index: 6, kind: input, shape index: {}]
  %s7 = inlined_call_operand.vmem [shape: f32[1,128], index: 7, kind: input, shape index: {}]
  %s8 = inlined_call_operand.vmem [shape: bf16[128,32], index: 8, kind: input, shape index: {}]
  %s9 = inlined_call_operand.vmem [shape: f32[1,32], index: 9, kind: input, shape index: {}]
  %s10 = inlined_call_operand.vmem [shape: f32[1,32], index: 10, kind: input, shape index: {}]
  %s11 = inlined_call_operand.vmem [shape: f32[1,32], index: 11, kind: input, shape index: {}]
  %s12 = inlined_call_operand.vmem [shape: bf16[32,10], index: 12, kind: input, shape index: {}]
  %s13 = inlined_call_operand.vmem [shape: f32[1,10], index: 13, kind: input, shape index: {}]
  %s14 = inlined_call_operand.hbm [shape: f32[2,1,10], index: 14, kind: output, shape index: {}]
  %s15 = sld [smem:[#allocation0]]
  $region89: #{vit_forward.5} parent=0
    _
  %s17 = ssub.s32 1, %s15
  %s18 = scalar_select 0, %s17, %s15
  $region1: #{vit_forward.5} parent=0
    #allocation2 [shape = 'u8[1024]{0}', space=vmem, size = 0x400, scoped, tag = 'output window, operand 0']
    #allocation3 [shape = 's32[2]{0}', space=sflag, size = 0x8, scoped, tag = 'scoped memory for vit_forward.5']
    %19 = vsyncpa [#allocation3], 0
    %s20 = scalar_lea.sflag [#allocation3], 1
    %21 = vsyncpa %s20, 0
    loop: start=0, step=1, limit=4
    $region2: #{vit_forward.5} parent=1 // loop_pre_header
      _
    $region3: #{vit_forward.5} parent=1 // loop_header
      %s23 = sphi 0, %s27
      %p24 = scmp.ge.s32.totalorder %s23, 4
      %s33 = sphi 0, %s35
      %s36 = sphi 0, %s33
      %s37 = sphi 0, %s36
      %s53 = sphi 0, %s37
      %s59 = sphi 0, %s61
      %s62 = sphi 0, %s59
      %s63 = sphi 0, %s62
      %s79 = sphi 0, %s63
      %s83 = sphi 0, %s83
      %s85 = sphi 0, %s83
      %s86 = sphi 0, %s85
      %s100 = sphi 0, %s86
      %s104 = sphi 0, %s104
      %s106 = sphi 0, %s104
      %s107 = sphi 0, %s106
      %s121 = sphi 0, %s107
      %s125 = sphi 0, %s125
      %s127 = sphi 0, %s125
      %s128 = sphi 0, %s127
      %s142 = sphi 0, %s128
      %s146 = sphi 0, %s146
      %s148 = sphi 0, %s146
      %s149 = sphi 0, %s148
      %s163 = sphi 0, %s149
      %s167 = sphi 0, %s167
      %s169 = sphi 0, %s167
      %s170 = sphi 0, %s169
      %s184 = sphi 0, %s170
      %s188 = sphi 0, %s188
      %s190 = sphi 0, %s188
      %s191 = sphi 0, %s190
      %s205 = sphi 0, %s191
      %s209 = sphi 0, %s209
      %s211 = sphi 0, %s209
      %s212 = sphi 0, %s211
      %s226 = sphi 0, %s212
      %s230 = sphi 0, %s230
      %s232 = sphi 0, %s230
      %s233 = sphi 0, %s232
      %s247 = sphi 0, %s233
      %s251 = sphi 0, %s251
      %s253 = sphi 0, %s251
      %s254 = sphi 0, %s253
      %s268 = sphi 0, %s254
      %s272 = sphi 0, %s272
      %s274 = sphi 0, %s272
      %s275 = sphi 0, %s274
      %s289 = sphi 0, %s275
      %s293 = sphi 0, %s293
      %s295 = sphi 0, %s293
      %s296 = sphi 0, %s295
      %s310 = sphi 0, %s296
      %s314 = sphi 0, %s314
      %s316 = sphi 0, %s314
      %s317 = sphi 0, %s316
      %s331 = sphi 0, %s317
      %s337 = sphi 0, %s339
      %s340 = sphi 0, %s337
      %s341 = sphi 0, %s340
      %s357 = sphi 0, %s341
    $region4: #{vit_forward.5} parent=1 // loop_header_branch
      %26 = sbr.rel (%p24) target = $region8
    $region5: #{vit_forward.5} parent=1 // loop_body
      %s28 = ssub.s32 %s23, 1
      %s29 = ssub.s32 %s23, 2
      %s30 = sadd.s32 %s23, 1
      %s31 = ssub.s32 %s23, %s30
      %p32 = scmp.eq.s32.totalorder %s31, 0
      %s34 = sadd.s32 %s33, 1
      %s35 = scalar_select %p32, %s33, %s34
      %p38 = pneg %p32
      %p39 = scmp.eq.s32.totalorder %s23, 1
      %p40 = por %p38, %p39
      %p41 = scmp.ne.s32.totalorder %s33, %s36
      %p42 = scmp.eq.s32.totalorder %s23, 0
      %p43 = por %p41, %p42
      %p44 = scmp.ne.s32.totalorder %s33, %s36
      %p45 = scmp.eq.s32.totalorder %s28, 1
      %p46 = por %p44, %p45
      %p47 = scmp.ne.s32.totalorder %s36, %s37
      %p48 = scmp.eq.s32.totalorder %s28, 0
      %p49 = por %p47, %p48
      %p50 = scmp.ne.s32.totalorder %s36, %s37
      %p51 = scmp.eq.s32.totalorder %s29, 1
      %p52 = por %p50, %p51
      %p54 = scmp.ne.s32.totalorder %s37, %s53
      %p55 = scmp.eq.s32.totalorder %s29, 0
      %p56 = por %p54, %p55
      %s57 = ssub.s32 %s23, %s30
      %p58 = scmp.eq.s32.totalorder %s57, 0
      %s60 = sadd.s32 %s59, 1
      %s61 = scalar_select %p58, %s59, %s60
      %p64 = pneg %p58
      %p65 = scmp.eq.s32.totalorder %s23, 1
      %p66 = por %p64, %p65
      %p67 = scmp.ne.s32.totalorder %s59, %s62
      %p68 = scmp.eq.s32.totalorder %s23, 0
      %p69 = por %p67, %p68
      %p70 = scmp.ne.s32.totalorder %s59, %s62
      %p71 = scmp.eq.s32.totalorder %s28, 1
      %p72 = por %p70, %p71
      %p73 = scmp.ne.s32.totalorder %s62, %s63
      %p74 = scmp.eq.s32.totalorder %s28, 0
      %p75 = por %p73, %p74
      %p76 = scmp.ne.s32.totalorder %s62, %s63
      %p77 = scmp.eq.s32.totalorder %s29, 1
      %p78 = por %p76, %p77
      %p80 = scmp.ne.s32.totalorder %s63, %s79
      %p81 = scmp.eq.s32.totalorder %s29, 0
      %p82 = por %p80, %p81
      %s84 = sadd.s32 %s83, 1
      %p87 = scmp.eq.s32.totalorder %s23, 1
      %p88 = scmp.ne.s32.totalorder %s83, %s85
      %p89 = scmp.eq.s32.totalorder %s23, 0
      %p90 = por %p88, %p89
      %p91 = scmp.ne.s32.totalorder %s83, %s85
      %p92 = scmp.eq.s32.totalorder %s28, 1
      %p93 = por %p91, %p92
      %p94 = scmp.ne.s32.totalorder %s85, %s86
      %p95 = scmp.eq.s32.totalorder %s28, 0
      %p96 = por %p94, %p95
      %p97 = scmp.ne.s32.totalorder %s85, %s86
      %p98 = scmp.eq.s32.totalorder %s29, 1
      %p99 = por %p97, %p98
      %p101 = scmp.ne.s32.totalorder %s86, %s100
      %p102 = scmp.eq.s32.totalorder %s29, 0
      %p103 = por %p101, %p102
      %s105 = sadd.s32 %s104, 1
      %p108 = scmp.eq.s32.totalorder %s23, 1
      %p109 = scmp.ne.s32.totalorder %s104, %s106
      %p110 = scmp.eq.s32.totalorder %s23, 0
      %p111 = por %p109, %p110
      %p112 = scmp.ne.s32.totalorder %s104, %s106
      %p113 = scmp.eq.s32.totalorder %s28, 1
      %p114 = por %p112, %p113
      %p115 = scmp.ne.s32.totalorder %s106, %s107
      %p116 = scmp.eq.s32.totalorder %s28, 0
      %p117 = por %p115, %p116
      %p118 = scmp.ne.s32.totalorder %s106, %s107
      %p119 = scmp.eq.s32.totalorder %s29, 1
      %p120 = por %p118, %p119
      %p122 = scmp.ne.s32.totalorder %s107, %s121
      %p123 = scmp.eq.s32.totalorder %s29, 0
      %p124 = por %p122, %p123
      %s126 = sadd.s32 %s125, 1
      %p129 = scmp.eq.s32.totalorder %s23, 1
      %p130 = scmp.ne.s32.totalorder %s125, %s127
      %p131 = scmp.eq.s32.totalorder %s23, 0
      %p132 = por %p130, %p131
      %p133 = scmp.ne.s32.totalorder %s125, %s127
      %p134 = scmp.eq.s32.totalorder %s28, 1
      %p135 = por %p133, %p134
      %p136 = scmp.ne.s32.totalorder %s127, %s128
      %p137 = scmp.eq.s32.totalorder %s28, 0
      %p138 = por %p136, %p137
      %p139 = scmp.ne.s32.totalorder %s127, %s128
      %p140 = scmp.eq.s32.totalorder %s29, 1
      %p141 = por %p139, %p140
      %p143 = scmp.ne.s32.totalorder %s128, %s142
      %p144 = scmp.eq.s32.totalorder %s29, 0
      %p145 = por %p143, %p144
      %s147 = sadd.s32 %s146, 1
      %p150 = scmp.eq.s32.totalorder %s23, 1
      %p151 = scmp.ne.s32.totalorder %s146, %s148
      %p152 = scmp.eq.s32.totalorder %s23, 0
      %p153 = por %p151, %p152
      %p154 = scmp.ne.s32.totalorder %s146, %s148
      %p155 = scmp.eq.s32.totalorder %s28, 1
      %p156 = por %p154, %p155
      %p157 = scmp.ne.s32.totalorder %s148, %s149
      %p158 = scmp.eq.s32.totalorder %s28, 0
      %p159 = por %p157, %p158
      %p160 = scmp.ne.s32.totalorder %s148, %s149
      %p161 = scmp.eq.s32.totalorder %s29, 1
      %p162 = por %p160, %p161
      %p164 = scmp.ne.s32.totalorder %s149, %s163
      %p165 = scmp.eq.s32.totalorder %s29, 0
      %p166 = por %p164, %p165
      %s168 = sadd.s32 %s167, 1
      %p171 = scmp.eq.s32.totalorder %s23, 1
      %p172 = scmp.ne.s32.totalorder %s167, %s169
      %p173 = scmp.eq.s32.totalorder %s23, 0
      %p174 = por %p172, %p173
      %p175 = scmp.ne.s32.totalorder %s167, %s169
      %p176 = scmp.eq.s32.totalorder %s28, 1
      %p177 = por %p175, %p176
      %p178 = scmp.ne.s32.totalorder %s169, %s170
      %p179 = scmp.eq.s32.totalorder %s28, 0
      %p180 = por %p178, %p179
      %p181 = scmp.ne.s32.totalorder %s169, %s170
      %p182 = scmp.eq.s32.totalorder %s29, 1
      %p183 = por %p181, %p182
      %p185 = scmp.ne.s32.totalorder %s170, %s184
      %p186 = scmp.eq.s32.totalorder %s29, 0
      %p187 = por %p185, %p186
      %s189 = sadd.s32 %s188, 1
      %p192 = scmp.eq.s32.totalorder %s23, 1
      %p193 = scmp.ne.s32.totalorder %s188, %s190
      %p194 = scmp.eq.s32.totalorder %s23, 0
      %p195 = por %p193, %p194
      %p196 = scmp.ne.s32.totalorder %s188, %s190
      %p197 = scmp.eq.s32.totalorder %s28, 1
      %p198 = por %p196, %p197
      %p199 = scmp.ne.s32.totalorder %s190, %s191
      %p200 = scmp.eq.s32.totalorder %s28, 0
      %p201 = por %p199, %p200
      %p202 = scmp.ne.s32.totalorder %s190, %s191
      %p203 = scmp.eq.s32.totalorder %s29, 1
      %p204 = por %p202, %p203
      %p206 = scmp.ne.s32.totalorder %s191, %s205
      %p207 = scmp.eq.s32.totalorder %s29, 0
      %p208 = por %p206, %p207
      %s210 = sadd.s32 %s209, 1
      %p213 = scmp.eq.s32.totalorder %s23, 1
      %p214 = scmp.ne.s32.totalorder %s209, %s211
      %p215 = scmp.eq.s32.totalorder %s23, 0
      %p216 = por %p214, %p215
      %p217 = scmp.ne.s32.totalorder %s209, %s211
      %p218 = scmp.eq.s32.totalorder %s28, 1
      %p219 = por %p217, %p218
      %p220 = scmp.ne.s32.totalorder %s211, %s212
      %p221 = scmp.eq.s32.totalorder %s28, 0
      %p222 = por %p220, %p221
      %p223 = scmp.ne.s32.totalorder %s211, %s212
      %p224 = scmp.eq.s32.totalorder %s29, 1
      %p225 = por %p223, %p224
      %p227 = scmp.ne.s32.totalorder %s212, %s226
      %p228 = scmp.eq.s32.totalorder %s29, 0
      %p229 = por %p227, %p228
      %s231 = sadd.s32 %s230, 1
      %p234 = scmp.eq.s32.totalorder %s23, 1
      %p235 = scmp.ne.s32.totalorder %s230, %s232
      %p236 = scmp.eq.s32.totalorder %s23, 0
      %p237 = por %p235, %p236
      %p238 = scmp.ne.s32.totalorder %s230, %s232
      %p239 = scmp.eq.s32.totalorder %s28, 1
      %p240 = por %p238, %p239
      %p241 = scmp.ne.s32.totalorder %s232, %s233
      %p242 = scmp.eq.s32.totalorder %s28, 0
      %p243 = por %p241, %p242
      %p244 = scmp.ne.s32.totalorder %s232, %s233
      %p245 = scmp.eq.s32.totalorder %s29, 1
      %p246 = por %p244, %p245
      %p248 = scmp.ne.s32.totalorder %s233, %s247
      %p249 = scmp.eq.s32.totalorder %s29, 0
      %p250 = por %p248, %p249
      %s252 = sadd.s32 %s251, 1
      %p255 = scmp.eq.s32.totalorder %s23, 1
      %p256 = scmp.ne.s32.totalorder %s251, %s253
      %p257 = scmp.eq.s32.totalorder %s23, 0
      %p258 = por %p256, %p257
      %p259 = scmp.ne.s32.totalorder %s251, %s253
      %p260 = scmp.eq.s32.totalorder %s28, 1
      %p261 = por %p259, %p260
      %p262 = scmp.ne.s32.totalorder %s253, %s254
      %p263 = scmp.eq.s32.totalorder %s28, 0
      %p264 = por %p262, %p263
      %p265 = scmp.ne.s32.totalorder %s253, %s254
      %p266 = scmp.eq.s32.totalorder %s29, 1
      %p267 = por %p265, %p266
      %p269 = scmp.ne.s32.totalorder %s254, %s268
      %p270 = scmp.eq.s32.totalorder %s29, 0
      %p271 = por %p269, %p270
      %s273 = sadd.s32 %s272, 1
      %p276 = scmp.eq.s32.totalorder %s23, 1
      %p277 = scmp.ne.s32.totalorder %s272, %s274
      %p278 = scmp.eq.s32.totalorder %s23, 0
      %p279 = por %p277, %p278
      %p280 = scmp.ne.s32.totalorder %s272, %s274
      %p281 = scmp.eq.s32.totalorder %s28, 1
      %p282 = por %p280, %p281
      %p283 = scmp.ne.s32.totalorder %s274, %s275
      %p284 = scmp.eq.s32.totalorder %s28, 0
      %p285 = por %p283, %p284
      %p286 = scmp.ne.s32.totalorder %s274, %s275
      %p287 = scmp.eq.s32.totalorder %s29, 1
      %p288 = por %p286, %p287
      %p290 = scmp.ne.s32.totalorder %s275, %s289
      %p291 = scmp.eq.s32.totalorder %s29, 0
      %p292 = por %p290, %p291
      %s294 = sadd.s32 %s293, 1
      %p297 = scmp.eq.s32.totalorder %s23, 1
      %p298 = scmp.ne.s32.totalorder %s293, %s295
      %p299 = scmp.eq.s32.totalorder %s23, 0
      %p300 = por %p298, %p299
      %p301 = scmp.ne.s32.totalorder %s293, %s295
      %p302 = scmp.eq.s32.totalorder %s28, 1
      %p303 = por %p301, %p302
      %p304 = scmp.ne.s32.totalorder %s295, %s296
      %p305 = scmp.eq.s32.totalorder %s28, 0
      %p306 = por %p304, %p305
      %p307 = scmp.ne.s32.totalorder %s295, %s296
      %p308 = scmp.eq.s32.totalorder %s29, 1
      %p309 = por %p307, %p308
      %p311 = scmp.ne.s32.totalorder %s296, %s310
      %p312 = scmp.eq.s32.totalorder %s29, 0
      %p313 = por %p311, %p312
      %s315 = sadd.s32 %s314, 1
      %p318 = scmp.eq.s32.totalorder %s23, 1
      %p319 = scmp.ne.s32.totalorder %s314, %s316
      %p320 = scmp.eq.s32.totalorder %s23, 0
      %p321 = por %p319, %p320
      %p322 = scmp.ne.s32.totalorder %s314, %s316
      %p323 = scmp.eq.s32.totalorder %s28, 1
      %p324 = por %p322, %p323
      %p325 = scmp.ne.s32.totalorder %s316, %s317
      %p326 = scmp.eq.s32.totalorder %s28, 0
      %p327 = por %p325, %p326
      %p328 = scmp.ne.s32.totalorder %s316, %s317
      %p329 = scmp.eq.s32.totalorder %s29, 1
      %p330 = por %p328, %p329
      %p332 = scmp.ne.s32.totalorder %s317, %s331
      %p333 = scmp.eq.s32.totalorder %s29, 0
      %p334 = por %p332, %p333
      %s335 = ssub.s32 %s23, %s30
      %p336 = scmp.eq.s32.totalorder %s335, 0
      %s338 = sadd.s32 %s337, 1
      %s339 = scalar_select %p336, %s337, %s338
      %p342 = pneg %p336
      %p343 = scmp.eq.s32.totalorder %s23, 1
      %p344 = por %p342, %p343
      %p345 = scmp.ne.s32.totalorder %s337, %s340
      %p346 = scmp.eq.s32.totalorder %s23, 0
      %p347 = por %p345, %p346
      %p348 = scmp.ne.s32.totalorder %s337, %s340
      %p349 = scmp.eq.s32.totalorder %s28, 1
      %p350 = por %p348, %p349
      %p351 = scmp.ne.s32.totalorder %s340, %s341
      %p352 = scmp.eq.s32.totalorder %s28, 0
      %p353 = por %p351, %p352
      %p354 = scmp.ne.s32.totalorder %s340, %s341
      %p355 = scmp.eq.s32.totalorder %s29, 1
      %p356 = por %p354, %p355
      %p358 = scmp.ne.s32.totalorder %s341, %s357
      %p359 = scmp.eq.s32.totalorder %s29, 0
      %p360 = por %p358, %p359
      %p361 = scmp.le.s32.totalorder 1, %s23
      %p362 = scmp.lt.s32.totalorder %s23, 3
      %p363 = pnand %p361, %p362
      %p364 = pneg %p363
      // Predicated region
      $region9: #{vit_forward.5} parent=5 // pred_check
        _
      $region10: #{vit_forward.5} parent=5 // pred_check_branch
        %366 = sbr.rel (%p363) target = $region12
      $region11: #{vit_forward.5} parent=5 // pred_region
        %s367 = ssub.s32 %s23, 1
        // Predicated region
        $region13: #{vit_forward.5} parent=11 // pred_check
          %p368 = pneg %p96
        $region14: #{vit_forward.5} parent=11 // pred_check_branch
          %370 = sbr.rel (%p368) target = $region16
        $region15: #{vit_forward.5} parent=11 // pred_region
          _
        $region16: #{vit_forward.5} parent=11 // pred_fallthru
          _
        // Predicated region
        $region17: #{vit_forward.5} parent=11 // pred_check
          %p371 = pneg %p117
        $region18: #{vit_forward.5} parent=11 // pred_check_branch
          %373 = sbr.rel (%p371) target = $region20
        $region19: #{vit_forward.5} parent=11 // pred_region
          _
        $region20: #{vit_forward.5} parent=11 // pred_fallthru
          _
        // Predicated region
        $region21: #{vit_forward.5} parent=11 // pred_check
          %p374 = pneg %p138
        $region22: #{vit_forward.5} parent=11 // pred_check_branch
          %376 = sbr.rel (%p374) target = $region24
        $region23: #{vit_forward.5} parent=11 // pred_region
          _
        $region24: #{vit_forward.5} parent=11 // pred_fallthru
          _
        // Predicated region
        $region25: #{vit_forward.5} parent=11 // pred_check
          %p377 = pneg %p159
        $region26: #{vit_forward.5} parent=11 // pred_check_branch
          %379 = sbr.rel (%p377) target = $region28
        $region27: #{vit_forward.5} parent=11 // pred_region
          _
        $region28: #{vit_forward.5} parent=11 // pred_fallthru
          _
        // Predicated region
        $region29: #{vit_forward.5} parent=11 // pred_check
          %p380 = pneg %p180
        $region30: #{vit_forward.5} parent=11 // pred_check_branch
          %382 = sbr.rel (%p380) target = $region32
        $region31: #{vit_forward.5} parent=11 // pred_region
          _
        $region32: #{vit_forward.5} parent=11 // pred_fallthru
          _
        // Predicated region
        $region33: #{vit_forward.5} parent=11 // pred_check
          %p383 = pneg %p201
        $region34: #{vit_forward.5} parent=11 // pred_check_branch
          %385 = sbr.rel (%p383) target = $region36
        $region35: #{vit_forward.5} parent=11 // pred_region
          _
        $region36: #{vit_forward.5} parent=11 // pred_fallthru
          _
        // Predicated region
        $region37: #{vit_forward.5} parent=11 // pred_check
          %p386 = pneg %p222
        $region38: #{vit_forward.5} parent=11 // pred_check_branch
          %388 = sbr.rel (%p386) target = $region40
        $region39: #{vit_forward.5} parent=11 // pred_region
          _
        $region40: #{vit_forward.5} parent=11 // pred_fallthru
          _
        // Predicated region
        $region41: #{vit_forward.5} parent=11 // pred_check
          %p389 = pneg %p243
        $region42: #{vit_forward.5} parent=11 // pred_check_branch
          %391 = sbr.rel (%p389) target = $region44
        $region43: #{vit_forward.5} parent=11 // pred_region
          _
        $region44: #{vit_forward.5} parent=11 // pred_fallthru
          _
        // Predicated region
        $region45: #{vit_forward.5} parent=11 // pred_check
          %p392 = pneg %p264
        $region46: #{vit_forward.5} parent=11 // pred_check_branch
          %394 = sbr.rel (%p392) target = $region48
        $region47: #{vit_forward.5} parent=11 // pred_region
          _
        $region48: #{vit_forward.5} parent=11 // pred_fallthru
          _
        // Predicated region
        $region49: #{vit_forward.5} parent=11 // pred_check
          %p395 = pneg %p285
        $region50: #{vit_forward.5} parent=11 // pred_check_branch
          %397 = sbr.rel (%p395) target = $region52
        $region51: #{vit_forward.5} parent=11 // pred_region
          _
        $region52: #{vit_forward.5} parent=11 // pred_fallthru
          _
        // Predicated region
        $region53: #{vit_forward.5} parent=11 // pred_check
          %p398 = pneg %p306
        $region54: #{vit_forward.5} parent=11 // pred_check_branch
          %400 = sbr.rel (%p398) target = $region56
        $region55: #{vit_forward.5} parent=11 // pred_region
          _
        $region56: #{vit_forward.5} parent=11 // pred_fallthru
          _
        // Predicated region
        $region57: #{vit_forward.5} parent=11 // pred_check
          %p401 = pneg %p327
        $region58: #{vit_forward.5} parent=11 // pred_check_branch
          %403 = sbr.rel (%p401) target = $region60
        $region59: #{vit_forward.5} parent=11 // pred_region
          _
        $region60: #{vit_forward.5} parent=11 // pred_fallthru
          _
      $region12: #{vit_forward.5} parent=5 // pred_fallthru
        _
      %p404 = scmp.lt.s32.totalorder %s23, 2
      // Predicated region
      $region61: #{vit_forward.5} parent=5 // pred_check
        %p405 = pneg %p404
      $region62: #{vit_forward.5} parent=5 // pred_check_branch
        %407 = sbr.rel (%p405) target = $region64
      $region63: #{vit_forward.5} parent=5 // pred_region
        // Predicated region
        $region65: #{vit_forward.5} parent=63 // pred_check
          %p408 = pneg %p43
        $region66: #{vit_forward.5} parent=63 // pred_check_branch
          %410 = sbr.rel (%p408) target = $region68
        $region67: #{vit_forward.5} parent=63 // pred_region
          %p411 = scmp.lt.s32.totalorder %s23, 1
          %s412 = scalar_select %p411, %s23, 1
          %s413 = smul.addr %s412, 3
          %s414 = smul.addr %s413, 8
          %s415 = scalar_lea.vmem %s0, %s414
        $region68: #{vit_forward.5} parent=63 // pred_fallthru
          _
        // Predicated region
        $region69: #{vit_forward.5} parent=63 // pred_check
          %p416 = pneg %p69
        $region70: #{vit_forward.5} parent=63 // pred_check_branch
          %418 = sbr.rel (%p416) target = $region72
        $region71: #{vit_forward.5} parent=63 // pred_region
          %p419 = scmp.lt.s32.totalorder %s23, 1
          %s420 = scalar_select %p419, %s23, 1
          %s421 = smul.addr %s420, 3
          %s422 = smul.addr %s421, 4
          %s423 = scalar_lea.vmem %s1, %s422
        $region72: #{vit_forward.5} parent=63 // pred_fallthru
          _
      $region64: #{vit_forward.5} parent=5 // pred_fallthru
        _
      %p424 = scmp.le.s32.totalorder 1, %s23
      %p425 = scmp.lt.s32.totalorder %s23, 3
      %p426 = pnand %p424, %p425
      %p427 = pneg %p426
      // Predicated region
      $region73: #{vit_forward.5} parent=5 // pred_check
        _
      $region74: #{vit_forward.5} parent=5 // pred_check_branch
        %429 = sbr.rel (%p426) target = $region76
      $region75: #{vit_forward.5} parent=5 // pred_region
        %s430 = ssub.s32 %s23, 1
        %p431 = scmp.lt.s32.totalorder %s28, 1
        %s432 = scalar_select %p431, %s28, 1
        %s433 = smul.addr %s432, 3
        %s434 = smul.addr %s433, 8
        %s435 = scalar_lea.vmem %s0, %s434
        %p436 = pneg %p49
        %p437 = pneg %p46
        %p438 = scmp.lt.s32.totalorder %s28, 1
        %s439 = scalar_select %p438, %s28, 1
        %s440 = smul.addr %s439, 3
        %s441 = smul.addr %s440, 4
        %s442 = scalar_lea.vmem %s1, %s441
        %p443 = pneg %p75
        %p444 = pneg %p72
        %p445 = pneg %p96
        %p446 = pneg %p93
        %p447 = pneg %p117
        %p448 = pneg %p114
        %p449 = pneg %p138
        %p450 = pneg %p135
        %p451 = pneg %p159
        %p452 = pneg %p156
        %p453 = pneg %p180
        %p454 = pneg %p177
        %p455 = pneg %p201
        %p456 = pneg %p198
        %p457 = pneg %p222
        %p458 = pneg %p219
        %p459 = pneg %p243
        %p460 = pneg %p240
        %p461 = pneg %p264
        %p462 = pneg %p261
        %p463 = pneg %p285
        %p464 = pneg %p282
        %p465 = pneg %p306
        %p466 = pneg %p303
        %p467 = pneg %p327
        %p468 = pneg %p324
        %p469 = pneg %p353
        %p470 = pneg %p350
        %s471 = sand.u32 %s340, 1
        %s472 = scalar_lea.sflag [#allocation3], %s471
        %s473 = sand.u32 %s340, 1
        %s474 = scalar_lea.vmem [#allocation2], %s473
        %p475 = scmp.lt.s32.totalorder %s28, 1
        %s476 = scalar_select %p475, %s28, 1
        %s477 = smul.addr %s476, 3
        %s478 = smul.addr %s477, 8
        %s479 = scalar_lea.vmem %s0, %s478
        %p480 = scmp.lt.s32.totalorder %s28, 1
        %s481 = scalar_select %p480, %s28, 1
        %s482 = smul.addr %s481, 3
        %s483 = smul.addr %s482, 4
        %s484 = scalar_lea.vmem %s1, %s483
        %v486 = vld [vmem:[%s479] sm:$0xff]
        %v487 = vld [vmem:[%s479 + $0x8] sm:$0xff]
        %v488 = vld [vmem:[%s479 + $0x10] sm:$0x1]
        %v489 = vld [vmem:[%s484] sm:$0xf]
        %v490 = vld [vmem:[%s484 + $0x4] sm:$0xf]
        %v491 = vld [vmem:[%s484 + $0x8] sm:$0x1]
        %v492 = vld [vmem:[%s2] sm:$0xf]
        %v493 = vld [vmem:[%s2 + $0x4] sm:$0xf]
        %v494 = vld [vmem:[%s2 + $0x8] sm:$0xf]
        %v495 = vld [vmem:[%s2 + $0xc] sm:$0xf]
        %v496 = vld [vmem:[%s3] sm:$0x1]
        %v498 = vlaneseq
        %v499 = vshrl.u32 %v498, 7
        %v500 = vsub.s32 0, %v499
        %v501 = vrot.slane %v496, %v500
        %v506 = vunpack.c.l.b16 %v489
        %v507 = vunpack.c.l.b16 %v490
        %v508 = vunpack.c.l.b16 %v491
        %v509 = vpack.c.b16 %v507, %v506
        %v510 = vpack.c.b16 %v508, %v508
        %v515 = vunpack.c.l.b16 %v492
        %v516 = vunpack.c.l.b16 %v493
        %v517 = vunpack.c.l.b16 %v494
        %v518 = vunpack.c.l.b16 %v495
        %v519 = vpack.c.b16 %v516, %v515
        %v520 = vpack.c.b16 %v518, %v517
        %vm523 = vcmask 261120
        %v525 = vsel %vm523, %v509, 0
        %v528 = vsel %vm523, %v510, 0
        %530 = vmatprep.subr.bf16.mxu0 0
        %531 = vmatpush1.bf16.msra.mxu0 %v519
        %532 = vmatprep.subr.bf16.mxu0 0
        %533 = vmatpush1.bf16.msra.mxu0 %v520
        %534 = vmatprep.subr.bf16.mxu0 0
        %535 = vmatpush1.bf16.msra.mxu0 0
        %536 = vmatprep.subr.bf16.mxu0 0
        %537 = vmatpush1.bf16.msra.mxu0 0
        %538 = vmatprep.subr.bf16.mxu0 0
        %539 = vmatpush1.bf16.msra.mxu0 0
        %540 = vmatprep.subr.bf16.mxu0 0
        %541 = vmatpush1.bf16.msra.mxu0 0
        %542 = vmatprep.subr.bf16.mxu0 0
        %543 = vmatpush1.bf16.msra.mxu0 0
        %544 = vmatprep.subr.bf16.mxu0 0
        %545 = vmatpush1.bf16.msra.mxu0 0
        %546 = vmatprep.subr.bf16.mxu0 0
        %547 = vmatpush1.bf16.msra.mxu0 0
        %548 = vmatprep.subr.bf16.mxu0 0
        %549 = vmatpush1.bf16.msra.mxu0 0
        %550 = vmatprep.subr.bf16.mxu0 0
        %551 = vmatpush1.bf16.msra.mxu0 0
        %552 = vmatprep.subr.bf16.mxu0 0
        %553 = vmatpush1.bf16.msra.mxu0 0
        %554 = vmatprep.subr.bf16.mxu0 0
        %555 = vmatpush1.bf16.msra.mxu0 0
        %556 = vmatprep.subr.bf16.mxu0 0
        %557 = vmatpush1.bf16.msra.mxu0 0
        %558 = vmatprep.subr.bf16.mxu0 0
        %559 = vmatpush1.bf16.msra.mxu0 0
        %560 = vmatprep.subr.bf16.mxu0 0
        %561 = vmatpush1.bf16.msra.mxu0 0
        %562 = vmatprep.mubr.bf16.mxu0 0
        %563 = vmatmul.mubr.bf16.gmra.mrb[0].mxu0 %v525
        %v564 = vpop.f32.mrb[0].mxu0
        %v565 = vadd.f32 %v501, %v564
        %v566 = vpop.f32.mrb[0].mxu0
        %v567 = vpop.f32.mrb[0].mxu0
        %v568 = vadd.f32 %v501, %v567
        %v569 = vpop.f32.mrb[0].mxu0
        %570 = vmatprep.mubr.bf16.mxu0 0
        %571 = vmatmul.mubr.bf16.gmra.mrb[0].mxu0 %v528
        %v572 = vpop.f32.mrb[0].mxu0
        %v573 = vadd.f32 %v501, %v572
        %v574 = vpop.f32.mrb[0].mxu0
        %v575 = vpop.f32.mrb[0].mxu0
        %v576 = vpop.f32.mrb[0].mxu0
        %577 = vdwg.mxu0
        %v578 = vadd.f32 %v486, %v565
        %v579 = vadd.f32 %v487, %v568
        %v580 = vadd.f32 %v488, %v573
        %v581 = vld [vmem:[%s4] sm:$0x1]
        %v582 = vld [vmem:[%s5] sm:$0x1]
        %v583 = vsel %vm523, %v578, 0.0
        %584 = vadd.xlane.f32.xlu0 %v583
        %v585 = vpop.xlane.xlu0 %584
        %v586 = vsel %vm523, %v579, 0.0
        %587 = vadd.xlane.f32.xlu0 %v586
        %v588 = vpop.xlane.xlu0 %587
        %vm589 = vcmask 253952
        %v590 = vsel %vm589, %v580, 0.0
        %591 = vadd.xlane.f32.xlu0 %v590
        %v592 = vpop.xlane.xlu0 %591
        %v593 = vrcp.pop 32.0
        %v594 = vmul.f32 %v585, %v593
        %v595 = vmul.f32 %v588, %v593
        %v596 = vmul.f32 %v592, %v593
        %v597 = vsub.f32 %v578, %v594
        %v598 = vsub.f32 %v579, %v595
        %v599 = vsub.f32 %v580, %v596
        %v600 = vmul.f32 %v597, %v597
        %v601 = vmul.f32 %v598, %v598
        %v602 = vmul.f32 %v599, %v599
        %v603 = vsel %vm523, %v600, 0.0
        %604 = vadd.xlane.f32.xlu0 %v603
        %v605 = vpop.xlane.xlu0 %604
        %v606 = vsel %vm523, %v601, 0.0
        %607 = vadd.xlane.f32.xlu0 %v606
        %v608 = vpop.xlane.xlu0 %607
        %v609 = vsel %vm589, %v602, 0.0
        %610 = vadd.xlane.f32.xlu0 %v609
        %v611 = vpop.xlane.xlu0 %610
        %v612 = vmul.f32 %v605, %v593
        %v613 = vmul.f32 %v608, %v593
        %v614 = vmul.f32 %v611, %v593
        %v615 = vadd.f32 %v612, 1e-05
        %v616 = vadd.f32 %v613, 1e-05
        %v617 = vadd.f32 %v614, 1e-05
        %v618 = vrsqrt.pop %v615
        %v619 = vrsqrt.pop %v616
        %v620 = vrsqrt.pop %v617
        %v621 = vmul.f32 %v597, %v618
        %v622 = vmul.f32 %v598, %v619
        %v623 = vmul.f32 %v599, %v620
        %v625 = vlaneseq
        %v626 = vshrl.u32 %v625, 7
        %v627 = vsub.s32 0, %v626
        %v628 = vrot.slane %v581, %v627
        %v630 = vmul.f32 %v621, %v628
        %v631 = vmul.f32 %v622, %v628
        %v632 = vmul.f32 %v623, %v628
        %v634 = vlaneseq
        %v635 = vshrl.u32 %v634, 7
        %v636 = vsub.s32 0, %v635
        %v637 = vrot.slane %v582, %v636
        %v639 = vadd.f32 %v630, %v637
        %v640 = vadd.f32 %v631, %v637
        %v641 = vadd.f32 %v632, %v637
        %v642 = vpack.c.bf16 %v640, %v639
        %v643 = vpack.c.bf16 %v641, %v641
        %v644 = vld [vmem:[%s6] sm:$0xf]
        %v645 = vld [vmem:[%s6 + $0x4] sm:$0xf]
        %v646 = vld [vmem:[%s6 + $0x8] sm:$0xf]
        %v647 = vld [vmem:[%s6 + $0xc] sm:$0xf]
        %v648 = vld [vmem:[%s7] sm:$0x1]
        %v650 = vlaneseq
        %v651 = vshrl.u32 %v650, 7
        %v652 = vsub.s32 0, %v651
        %v653 = vrot.slane %v648, %v652
        %v659 = vunpack.c.l.b16 %v644
        %v660 = vunpack.c.l.b16 %v645
        %v661 = vunpack.c.l.b16 %v646
        %v662 = vunpack.c.l.b16 %v647
        %v663 = vpack.c.b16 %v660, %v659
        %v664 = vpack.c.b16 %v662, %v661
        %v668 = vsel %vm523, %v642, 0
        %v671 = vsel %vm523, %v643, 0
        %673 = vmatprep.subr.bf16.mxu0 0
        %674 = vmatpush1.bf16.msra.mxu0 %v663
        %675 = vmatprep.subr.bf16.mxu0 0
        %676 = vmatpush1.bf16.msra.mxu0 %v664
        %677 = vmatprep.subr.bf16.mxu0 0
        %678 = vmatpush1.bf16.msra.mxu0 0
        %679 = vmatprep.subr.bf16.mxu0 0
        %680 = vmatpush1.bf16.msra.mxu0 0
        %681 = vmatprep.subr.bf16.mxu0 0
        %682 = vmatpush1.bf16.msra.mxu0 0
        %683 = vmatprep.subr.bf16.mxu0 0
        %684 = vmatpush1.bf16.msra.mxu0 0
        %685 = vmatprep.subr.bf16.mxu0 0
        %686 = vmatpush1.bf16.msra.mxu0 0
        %687 = vmatprep.subr.bf16.mxu0 0
        %688 = vmatpush1.bf16.msra.mxu0 0
        %689 = vmatprep.subr.bf16.mxu0 0
        %690 = vmatpush1.bf16.msra.mxu0 0
        %691 = vmatprep.subr.bf16.mxu0 0
        %692 = vmatpush1.bf16.msra.mxu0 0
        %693 = vmatprep.subr.bf16.mxu0 0
        %694 = vmatpush1.bf16.msra.mxu0 0
        %695 = vmatprep.subr.bf16.mxu0 0
        %696 = vmatpush1.bf16.msra.mxu0 0
        %697 = vmatprep.subr.bf16.mxu0 0
        %698 = vmatpush1.bf16.msra.mxu0 0
        %699 = vmatprep.subr.bf16.mxu0 0
        %700 = vmatpush1.bf16.msra.mxu0 0
        %701 = vmatprep.subr.bf16.mxu0 0
        %702 = vmatpush1.bf16.msra.mxu0 0
        %703 = vmatprep.subr.bf16.mxu0 0
        %704 = vmatpush1.bf16.msra.mxu0 0
        %705 = vmatprep.mubr.bf16.mxu0 0
        %706 = vmatmul.mubr.bf16.gmra.mrb[0].mxu0 %v668
        %v707 = vpop.f32.mrb[0].mxu0
        %v708 = vadd.f32 %v653, %v707
        %v709 = vpop.f32.mrb[0].mxu0
        %v710 = vpop.f32.mrb[0].mxu0
        %v711 = vadd.f32 %v653, %v710
        %v712 = vpop.f32.mrb[0].mxu0
        %713 = vmatprep.mubr.bf16.mxu0 0
        %714 = vmatmul.mubr.bf16.gmra.mrb[0].mxu0 %v671
        %v715 = vpop.f32.mrb[0].mxu0
        %v716 = vadd.f32 %v653, %v715
        %v717 = vpop.f32.mrb[0].mxu0
        %v718 = vpop.f32.mrb[0].mxu0
        %v719 = vpop.f32.mrb[0].mxu0
        %720 = vdwg.mxu0
        %v721 = vmul.f32 %v708, 0.5
        %v722 = vmul.f32 %v711, 0.5
        %v723 = vmul.f32 %v716, 0.5
        %v724 = vmul.f32 %v708, 0.70710677
        %v725 = vmul.f32 %v711, 0.70710677
        %v726 = vmul.f32 %v716, 0.70710677
        %v727 = verf.f32.pop %v724
        %v728 = verf.f32.pop %v725
        %v729 = verf.f32.pop %v726
        %v730 = vadd.f32 %v727, 1.0
        %v731 = vadd.f32 %v728, 1.0
        %v732 = vadd.f32 %v729, 1.0
        %v733 = vmul.f32 %v721, %v730
        %v734 = vmul.f32 %v722, %v731
        %v735 = vmul.f32 %v723, %v732
        %v736 = vpack.c.bf16 %v734, %v733
        %v737 = vpack.c.bf16 %v735, %v735
        %v738 = vld [vmem:[%s8] sm:$0xf]
        %v739 = vld [vmem:[%s8 + $0x4] sm:$0xf]
        %v740 = vld [vmem:[%s8 + $0x8] sm:$0xf]
        %v741 = vld [vmem:[%s8 + $0xc] sm:$0xf]
        %v742 = vld [vmem:[%s8 + $0x10] sm:$0xf]
        %v743 = vld [vmem:[%s8 + $0x14] sm:$0xf]
        %v744 = vld [vmem:[%s8 + $0x18] sm:$0xf]
        %v745 = vld [vmem:[%s8 + $0x1c] sm:$0xf]
        %v746 = vld [vmem:[%s8 + $0x20] sm:$0xf]
        %v747 = vld [vmem:[%s8 + $0x24] sm:$0xf]
        %v748 = vld [vmem:[%s8 + $0x28] sm:$0xf]
        %v749 = vld [vmem:[%s8 + $0x2c] sm:$0xf]
        %v750 = vld [vmem:[%s8 + $0x30] sm:$0xf]
        %v751 = vld [vmem:[%s8 + $0x34] sm:$0xf]
        %v752 = vld [vmem:[%s8 + $0x38] sm:$0xf]
        %v753 = vld [vmem:[%s8 + $0x3c] sm:$0xf]
        %v754 = vld [vmem:[%s9] sm:$0x1]
        %v756 = vlaneseq
        %v757 = vshrl.u32 %v756, 7
        %v758 = vsub.s32 0, %v757
        %v759 = vrot.slane %v754, %v758
        %v777 = vunpack.c.l.b16 %v738
        %v778 = vunpack.c.l.b16 %v739
        %v779 = vunpack.c.l.b16 %v740
        %v780 = vunpack.c.l.b16 %v741
        %v781 = vunpack.c.l.b16 %v742
        %v782 = vunpack.c.l.b16 %v743
        %v783 = vunpack.c.l.b16 %v744
        %v784 = vunpack.c.l.b16 %v745
        %v785 = vunpack.c.l.b16 %v746
        %v786 = vunpack.c.l.b16 %v747
        %v787 = vunpack.c.l.b16 %v748
        %v788 = vunpack.c.l.b16 %v749
        %v789 = vunpack.c.l.b16 %v750
        %v790 = vunpack.c.l.b16 %v751
        %v791 = vunpack.c.l.b16 %v752
        %v792 = vunpack.c.l.b16 %v753
        %v793 = vpack.c.b16 %v778, %v777
        %v794 = vpack.c.b16 %v780, %v779
        %v795 = vpack.c.b16 %v782, %v781
        %v796 = vpack.c.b16 %v784, %v783
        %v797 = vpack.c.b16 %v786, %v785
        %v798 = vpack.c.b16 %v788, %v787
        %v799 = vpack.c.b16 %v790, %v789
        %v800 = vpack.c.b16 %v792, %v791
        %809 = vmatprep.subr.bf16.mxu0 0
        %810 = vmatpush1.bf16.msra.mxu0 %v793
        %811 = vmatprep.subr.bf16.mxu0 0
        %812 = vmatpush1.bf16.msra.mxu0 %v794
        %813 = vmatprep.subr.bf16.mxu0 0
        %814 = vmatpush1.bf16.msra.mxu0 %v795
        %815 = vmatprep.subr.bf16.mxu0 0
        %816 = vmatpush1.bf16.msra.mxu0 %v796
        %817 = vmatprep.subr.bf16.mxu0 0
        %818 = vmatpush1.bf16.msra.mxu0 %v797
        %819 = vmatprep.subr.bf16.mxu0 0
        %820 = vmatpush1.bf16.msra.mxu0 %v798
        %821 = vmatprep.subr.bf16.mxu0 0
        %822 = vmatpush1.bf16.msra.mxu0 %v799
        %823 = vmatprep.subr.bf16.mxu0 0
        %824 = vmatpush1.bf16.msra.mxu0 %v800
        %825 = vmatprep.subr.bf16.mxu0 0
        %826 = vmatpush1.bf16.msra.mxu0 0
        %827 = vmatprep.subr.bf16.mxu0 0
        %828 = vmatpush1.bf16.msra.mxu0 0
        %829 = vmatprep.subr.bf16.mxu0 0
        %830 = vmatpush1.bf16.msra.mxu0 0
        %831 = vmatprep.subr.bf16.mxu0 0
        %832 = vmatpush1.bf16.msra.mxu0 0
        %833 = vmatprep.subr.bf16.mxu0 0
        %834 = vmatpush1.bf16.msra.mxu0 0
        %835 = vmatprep.subr.bf16.mxu0 0
        %836 = vmatpush1.bf16.msra.mxu0 0
        %837 = vmatprep.subr.bf16.mxu0 0
        %838 = vmatpush1.bf16.msra.mxu0 0
        %839 = vmatprep.subr.bf16.mxu0 0
        %840 = vmatpush1.bf16.msra.mxu0 0
        %841 = vmatprep.mubr.bf16.mxu0 0
        %842 = vmatmul.mubr.bf16.gmra.mrb[0].mxu0 %v736
        %v843 = vpop.f32.mrb[0].mxu0
        %v844 = vadd.f32 %v759, %v843
        %v845 = vpop.f32.mrb[0].mxu0
        %v846 = vpop.f32.mrb[0].mxu0
        %v847 = vpop.f32.mrb[0].mxu0
        %848 = vmatprep.mubr.bf16.mxu0 0
        %849 = vmatmul.mubr.bf16.gmra.mrb[0].mxu0 %v737
        %v850 = vpop.f32.mrb[0].mxu0
        %v851 = vpop.f32.mrb[0].mxu0
        %v852 = vpop.f32.mrb[0].mxu0
        %v853 = vpop.f32.mrb[0].mxu0
        %854 = vdwg.mxu0
        %v855 = vadd.f32 %v578, %v844
        %v856 = vld [vmem:[%s10] sm:$0x1]
        %v857 = vld [vmem:[%s11] sm:$0x1]
        %v858 = vsel %vm589, %v855, 0.0
        %859 = vadd.xlane.f32.xlu0 %v858
        %v860 = vpop.xlane.xlu0 %859
        %v861 = vmul.f32 %v860, %v593
        %v862 = vsub.f32 %v855, %v861
        %v863 = vmul.f32 %v862, %v862
        %v864 = vsel %vm589, %v863, 0.0
        %865 = vadd.xlane.f32.xlu0 %v864
        %v866 = vpop.xlane.xlu0 %865
        %v867 = vmul.f32 %v866, %v593
        %v868 = vadd.f32 %v867, 1e-05
        %v869 = vrsqrt.pop %v868
        %v870 = vmul.f32 %v862, %v869
        %v871 = vmul.f32 %v870, %v856
        %v872 = vadd.f32 %v871, %v857
        %v873 = vpack.c.bf16 %v872, %v872
        %v874 = vld [vmem:[%s12] sm:$0xf]
        %v875 = vld [vmem:[%s12 + $0x4] sm:$0xf]
        %v876 = vld [vmem:[%s12 + $0x8] sm:$0xf]
        %v877 = vld [vmem:[%s12 + $0xc] sm:$0xf]
        %v878 = vld [vmem:[%s13] sm:$0x1]
        %v883 = vunpack.c.l.b16 %v874
        %v884 = vunpack.c.l.b16 %v875
        %v885 = vunpack.c.l.b16 %v876
        %v886 = vunpack.c.l.b16 %v877
        %v887 = vpack.c.b16 %v884, %v883
        %v888 = vpack.c.b16 %v886, %v885
        %v892 = vsel %vm523, %v873, 0
        %894 = vmatprep.subr.bf16.mxu0 0
        %895 = vmatpush1.bf16.msra.mxu0 %v887
        %896 = vmatprep.subr.bf16.mxu0 0
        %897 = vmatpush1.bf16.msra.mxu0 %v888
        %898 = vmatprep.subr.bf16.mxu0 0
        %899 = vmatpush1.bf16.msra.mxu0 0
        %900 = vmatprep.subr.bf16.mxu0 0
        %901 = vmatpush1.bf16.msra.mxu0 0
        %902 = vmatprep.subr.bf16.mxu0 0
        %903 = vmatpush1.bf16.msra.mxu0 0
        %904 = vmatprep.subr.bf16.mxu0 0
        %905 = vmatpush1.bf16.msra.mxu0 0
        %906 = vmatprep.subr.bf16.mxu0 0
        %907 = vmatpush1.bf16.msra.mxu0 0
        %908 = vmatprep.subr.bf16.mxu0 0
        %909 = vmatpush1.bf16.msra.mxu0 0
        %910 = vmatprep.subr.bf16.mxu0 0
        %911 = vmatpush1.bf16.msra.mxu0 0
        %912 = vmatprep.subr.bf16.mxu0 0
        %913 = vmatpush1.bf16.msra.mxu0 0
        %914 = vmatprep.subr.bf16.mxu0 0
        %915 = vmatpush1.bf16.msra.mxu0 0
        %916 = vmatprep.subr.bf16.mxu0 0
        %917 = vmatpush1.bf16.msra.mxu0 0
        %918 = vmatprep.subr.bf16.mxu0 0
        %919 = vmatpush1.bf16.msra.mxu0 0
        %920 = vmatprep.subr.bf16.mxu0 0
        %921 = vmatpush1.bf16.msra.mxu0 0
        %922 = vmatprep.subr.bf16.mxu0 0
        %923 = vmatpush1.bf16.msra.mxu0 0
        %924 = vmatprep.subr.bf16.mxu0 0
        %925 = vmatpush1.bf16.msra.mxu0 0
        %926 = vmatprep.mubr.bf16.mxu0 0
        %927 = vmatmul.mubr.bf16.gmra.mrb[0].mxu0 %v892
        %v928 = vpop.f32.mrb[0].mxu0
        %v929 = vadd.f32 %v878, %v928
        %v930 = vpop.f32.mrb[0].mxu0
        %v931 = vpop.f32.mrb[0].mxu0
        %v932 = vpop.f32.mrb[0].mxu0
        %933 = vdwg.mxu0
        %vm934 = vcmask 73728
        %935 = vst.msk [vmem:[%s474] sm:$0x1] %vm934, %v929
        %s936 = sand.u32 %s340, 1
        %s937 = scalar_lea.sflag [#allocation3], %s936
        %s938 = sand.u32 %s340, 1
        %s939 = scalar_lea.vmem [#allocation2], %s938
        // Predicated region
        $region77: #{vit_forward.5} parent=75 // pred_check
          %p940 = pneg %p350
        $region78: #{vit_forward.5} parent=75 // pred_check_branch
          %942 = sbr.rel (%p940) target = $region80
        $region79: #{vit_forward.5} parent=75 // pred_region
          %s944 = ssub.s32 16, 16
          %945 = vsyncadd %s937, %s944
          %s946 = smul.addr %s28, 16
          %s947 = scalar_lea.hbm %s14, %s946
          %s949 = sshll.u32 %s939, 4
          %s950 = int_to_ptr.vmem [resolvable:$true] %s949
          %952 = dma.vmem_to_hbm [thread:$0]  %s950, 16, %s947, %s937
        $region80: #{vit_forward.5} parent=75 // pred_fallthru
          _
      $region76: #{vit_forward.5} parent=5 // pred_fallthru
        _
      %p953 = scmp.le.s32.totalorder 2, %s23
      // Predicated region
      $region81: #{vit_forward.5} parent=5 // pred_check
        %p954 = pneg %p953
      $region82: #{vit_forward.5} parent=5 // pred_check_branch
        %956 = sbr.rel (%p954) target = $region84
      $region83: #{vit_forward.5} parent=5 // pred_region
        %s957 = ssub.s32 %s23, 2
        // Predicated region
        $region85: #{vit_forward.5} parent=83 // pred_check
          %p958 = pneg %p356
        $region86: #{vit_forward.5} parent=83 // pred_check_branch
          %960 = sbr.rel (%p958) target = $region88
        $region87: #{vit_forward.5} parent=83 // pred_region
          %s961 = sand.u32 %s341, 1
          %s962 = scalar_lea.sflag [#allocation3], %s961
          %s963 = sand.u32 %s341, 1
          %s964 = scalar_lea.vmem [#allocation2], %s963
          %965 = dma.done %s962, 16
        $region88: #{vit_forward.5} parent=83 // pred_fallthru
          _
      $region84: #{vit_forward.5} parent=5 // pred_fallthru
        _
    $region6: #{vit_forward.5} parent=1 // loop_footer
      %s27 = sadd.s32 1, %s23
    $region7: #{vit_forward.5} parent=1 // loop_footer_branch
      %22 = sbr.rel target = $region3
    $region8: #{vit_forward.5} parent=1 // loop_exit
      _
    %966 = vsyncpa [#allocation3], 1
    %s967 = scalar_lea.sflag [#allocation3], 1
    %968 = vsyncpa %s967, 1

// kernel: vit_forward.4
$region0: #{vit_forward.4}
  #allocation0 [shape = 'u32[]', space=smem, size = 0x4, offset = 0x4, fixed_abs, tag = 'smem constant byte address 0x4 - core index']
  #allocation1 [shape = 'u32[144,128]{1,0:T(1,128)}', space=vmem, size = 0x12000, scoped, tag = 'internal scratch']
  %s0 = inlined_call_operand.vmem [shape: f32[2,17,32], index: 0, kind: input, shape index: {}, may-alias: {0,18}]
  %s1 = inlined_call_operand.vmem [shape: bf16[2,17,32], index: 1, kind: input, shape index: {}]
  %s2 = inlined_call_operand.vmem [shape: bf16[32,32], index: 2, kind: input, shape index: {}]
  %s3 = inlined_call_operand.vmem [shape: f32[1,32], index: 3, kind: input, shape index: {}]
  %s4 = inlined_call_operand.vmem [shape: f32[1,32], index: 4, kind: input, shape index: {}]
  %s5 = inlined_call_operand.vmem [shape: f32[1,32], index: 5, kind: input, shape index: {}]
  %s6 = inlined_call_operand.vmem [shape: bf16[32,128], index: 6, kind: input, shape index: {}]
  %s7 = inlined_call_operand.vmem [shape: f32[1,128], index: 7, kind: input, shape index: {}]
  %s8 = inlined_call_operand.vmem [shape: bf16[128,32], index: 8, kind: input, shape index: {}]
  %s9 = inlined_call_operand.vmem [shape: f32[1,32], index: 9, kind: input, shape index: {}]
  %s10 = inlined_call_operand.vmem [shape: f32[1,32], index: 10, kind: input, shape index: {}]
  %s11 = inlined_call_operand.vmem [shape: f32[1,32], index: 11, kind: input, shape index: {}]
  %s12 = inlined_call_operand.vmem [shape: bf16[32,32], index: 12, kind: input, shape index: {}]
  %s13 = inlined_call_operand.vmem [shape: f32[1,32], index: 13, kind: input, shape index: {}]
  %s14 = inlined_call_operand.vmem [shape: bf16[32,32], index: 14, kind: input, shape index: {}]
  %s15 = inlined_call_operand.vmem [shape: f32[1,32], index: 15, kind: input, shape index: {}]
  %s16 = inlined_call_operand.vmem [shape: bf16[32,32], index: 16, kind: input, shape index: {}]
  %s17 = inlined_call_operand.vmem [shape: f32[1,32], index: 17, kind: input, shape index: {}]
  %s18 = inlined_call_operand.vmem [shape: f32[2,17,32], index: 18, kind: output, shape index: {0}, may-alias: {0,18}]
  %s19 = inlined_call_operand.vmem [shape: bf16[2,17,32], index: 19, kind: output, shape index: {1}]
  %20 = xla_tuple %s18, %s19
  %s21 = sld [smem:[#allocation0]]
  $region113: #{vit_forward.4} parent=0
    _
  %s23 = ssub.s32 1, %s21
  %s24 = scalar_select 0, %s23, %s21
  loop: start=0, step=1, limit=4
  $region2: #{vit_forward.4} parent=0 // loop_pre_header
    _
  $region3: #{vit_forward.4} parent=0 // loop_header
    %s26 = sphi 0, %s30
    %p27 = scmp.ge.s32.totalorder %s26, 4
    %s36 = sphi 0, %s38
    %s39 = sphi 0, %s36
    %s40 = sphi 0, %s39
    %s56 = sphi 0, %s40
    %s62 = sphi 0, %s64
    %s65 = sphi 0, %s62
    %s66 = sphi 0, %s65
    %s82 = sphi 0, %s66
    %s86 = sphi 0, %s86
    %s88 = sphi 0, %s86
    %s89 = sphi 0, %s88
    %s103 = sphi 0, %s89
    %s107 = sphi 0, %s107
    %s109 = sphi 0, %s107
    %s110 = sphi 0, %s109
    %s124 = sphi 0, %s110
    %s128 = sphi 0, %s128
    %s130 = sphi 0, %s128
    %s131 = sphi 0, %s130
    %s145 = sphi 0, %s131
    %s149 = sphi 0, %s149
    %s151 = sphi 0, %s149
    %s152 = sphi 0, %s151
    %s166 = sphi 0, %s152
    %s170 = sphi 0, %s170
    %s172 = sphi 0, %s170
    %s173 = sphi 0, %s172
    %s187 = sphi 0, %s173
    %s191 = sphi 0, %s191
    %s193 = sphi 0, %s191
    %s194 = sphi 0, %s193
    %s208 = sphi 0, %s194
    %s212 = sphi 0, %s212
    %s214 = sphi 0, %s212
    %s215 = sphi 0, %s214
    %s229 = sphi 0, %s215
    %s233 = sphi 0, %s233
    %s235 = sphi 0, %s233
    %s236 = sphi 0, %s235
    %s250 = sphi 0, %s236
    %s254 = sphi 0, %s254
    %s256 = sphi 0, %s254
    %s257 = sphi 0, %s256
    %s271 = sphi 0, %s257
    %s275 = sphi 0, %s275
    %s277 = sphi 0, %s275
    %s278 = sphi 0, %s277
    %s292 = sphi 0, %s278
    %s296 = sphi 0, %s296
    %s298 = sphi 0, %s296
    %s299 = sphi 0, %s298
    %s313 = sphi 0, %s299
    %s317 = sphi 0, %s317
    %s319 = sphi 0, %s317
    %s320 = sphi 0, %s319
    %s334 = sphi 0, %s320
    %s338 = sphi 0, %s338
    %s340 = sphi 0, %s338
    %s341 = sphi 0, %s340
    %s355 = sphi 0, %s341
    %s359 = sphi 0, %s359
    %s361 = sphi 0, %s359
    %s362 = sphi 0, %s361
    %s376 = sphi 0, %s362
    %s380 = sphi 0, %s380
    %s382 = sphi 0, %s380
    %s383 = sphi 0, %s382
    %s397 = sphi 0, %s383
    %s401 = sphi 0, %s401
    %s403 = sphi 0, %s401
    %s404 = sphi 0, %s403
    %s418 = sphi 0, %s404
    %s424 = sphi 0, %s426
    %s427 = sphi 0, %s424
    %s428 = sphi 0, %s427
    %s444 = sphi 0, %s428
    %s450 = sphi 0, %s452
    %s453 = sphi 0, %s450
    %s454 = sphi 0, %s453
    %s470 = sphi 0, %s454
  $region4: #{vit_forward.4} parent=0 // loop_header_branch
    %29 = sbr.rel (%p27) target = $region8
  $region5: #{vit_forward.4} parent=0 // loop_body
    %s31 = ssub.s32 %s26, 1
    %s32 = ssub.s32 %s26, 2
    %s33 = sadd.s32 %s26, 1
    %s34 = ssub.s32 %s26, %s33
    %p35 = scmp.eq.s32.totalorder %s34, 0
    %s37 = sadd.s32 %s36, 1
    %s38 = scalar_select %p35, %s36, %s37
    %p41 = pneg %p35
    %p42 = scmp.eq.s32.totalorder %s26, 1
    %p43 = por %p41, %p42
    %p44 = scmp.ne.s32.totalorder %s36, %s39
    %p45 = scmp.eq.s32.totalorder %s26, 0
    %p46 = por %p44, %p45
    %p47 = scmp.ne.s32.totalorder %s36, %s39
    %p48 = scmp.eq.s32.totalorder %s31, 1
    %p49 = por %p47, %p48
    %p50 = scmp.ne.s32.totalorder %s39, %s40
    %p51 = scmp.eq.s32.totalorder %s31, 0
    %p52 = por %p50, %p51
    %p53 = scmp.ne.s32.totalorder %s39, %s40
    %p54 = scmp.eq.s32.totalorder %s32, 1
    %p55 = por %p53, %p54
    %p57 = scmp.ne.s32.totalorder %s40, %s56
    %p58 = scmp.eq.s32.totalorder %s32, 0
    %p59 = por %p57, %p58
    %s60 = ssub.s32 %s26, %s33
    %p61 = scmp.eq.s32.totalorder %s60, 0
    %s63 = sadd.s32 %s62, 1
    %s64 = scalar_select %p61, %s62, %s63
    %p67 = pneg %p61
    %p68 = scmp.eq.s32.totalorder %s26, 1
    %p69 = por %p67, %p68
    %p70 = scmp.ne.s32.totalorder %s62, %s65
    %p71 = scmp.eq.s32.totalorder %s26, 0
    %p72 = por %p70, %p71
    %p73 = scmp.ne.s32.totalorder %s62, %s65
    %p74 = scmp.eq.s32.totalorder %s31, 1
    %p75 = por %p73, %p74
    %p76 = scmp.ne.s32.totalorder %s65, %s66
    %p77 = scmp.eq.s32.totalorder %s31, 0
    %p78 = por %p76, %p77
    %p79 = scmp.ne.s32.totalorder %s65, %s66
    %p80 = scmp.eq.s32.totalorder %s32, 1
    %p81 = por %p79, %p80
    %p83 = scmp.ne.s32.totalorder %s66, %s82
    %p84 = scmp.eq.s32.totalorder %s32, 0
    %p85 = por %p83, %p84
    %s87 = sadd.s32 %s86, 1
    %p90 = scmp.eq.s32.totalorder %s26, 1
    %p91 = scmp.ne.s32.totalorder %s86, %s88
    %p92 = scmp.eq.s32.totalorder %s26, 0
    %p93 = por %p91, %p92
    %p94 = scmp.ne.s32.totalorder %s86, %s88
    %p95 = scmp.eq.s32.totalorder %s31, 1
    %p96 = por %p94, %p95
    %p97 = scmp.ne.s32.totalorder %s88, %s89
    %p98 = scmp.eq.s32.totalorder %s31, 0
    %p99 = por %p97, %p98
    %p100 = scmp.ne.s32.totalorder %s88, %s89
    %p101 = scmp.eq.s32.totalorder %s32, 1
    %p102 = por %p100, %p101
    %p104 = scmp.ne.s32.totalorder %s89, %s103
    %p105 = scmp.eq.s32.totalorder %s32, 0
    %p106 = por %p104, %p105
    %s108 = sadd.s32 %s107, 1
    %p111 = scmp.eq.s32.totalorder %s26, 1
    %p112 = scmp.ne.s32.totalorder %s107, %s109
    %p113 = scmp.eq.s32.totalorder %s26, 0
    %p114 = por %p112, %p113
    %p115 = scmp.ne.s32.totalorder %s107, %s109
    %p116 = scmp.eq.s32.totalorder %s31, 1
    %p117 = por %p115, %p116
    %p118 = scmp.ne.s32.totalorder %s109, %s110
    %p119 = scmp.eq.s32.totalorder %s31, 0
    %p120 = por %p118, %p119
    %p121 = scmp.ne.s32.totalorder %s109, %s110
    %p122 = scmp.eq.s32.totalorder %s32, 1
    %p123 = por %p121, %p122
    %p125 = scmp.ne.s32.totalorder %s110, %s124
    %p126 = scmp.eq.s32.totalorder %s32, 0
    %p127 = por %p125, %p126
    %s129 = sadd.s32 %s128, 1
    %p132 = scmp.eq.s32.totalorder %s26, 1
    %p133 = scmp.ne.s32.totalorder %s128, %s130
    %p134 = scmp.eq.s32.totalorder %s26, 0
    %p135 = por %p133, %p134
    %p136 = scmp.ne.s32.totalorder %s128, %s130
    %p137 = scmp.eq.s32.totalorder %s31, 1
    %p138 = por %p136, %p137
    %p139 = scmp.ne.s32.totalorder %s130, %s131
    %p140 = scmp.eq.s32.totalorder %s31, 0
    %p141 = por %p139, %p140
    %p142 = scmp.ne.s32.totalorder %s130, %s131
    %p143 = scmp.eq.s32.totalorder %s32, 1
    %p144 = por %p142, %p143
    %p146 = scmp.ne.s32.totalorder %s131, %s145
    %p147 = scmp.eq.s32.totalorder %s32, 0
    %p148 = por %p146, %p147
    %s150 = sadd.s32 %s149, 1
    %p153 = scmp.eq.s32.totalorder %s26, 1
    %p154 = scmp.ne.s32.totalorder %s149, %s151
    %p155 = scmp.eq.s32.totalorder %s26, 0
    %p156 = por %p154, %p155
    %p157 = scmp.ne.s32.totalorder %s149, %s151
    %p158 = scmp.eq.s32.totalorder %s31, 1
    %p159 = por %p157, %p158
    %p160 = scmp.ne.s32.totalorder %s151, %s152
    %p161 = scmp.eq.s32.totalorder %s31, 0
    %p162 = por %p160, %p161
    %p163 = scmp.ne.s32.totalorder %s151, %s152
    %p164 = scmp.eq.s32.totalorder %s32, 1
    %p165 = por %p163, %p164
    %p167 = scmp.ne.s32.totalorder %s152, %s166
    %p168 = scmp.eq.s32.totalorder %s32, 0
    %p169 = por %p167, %p168
    %s171 = sadd.s32 %s170, 1
    %p174 = scmp.eq.s32.totalorder %s26, 1
    %p175 = scmp.ne.s32.totalorder %s170, %s172
    %p176 = scmp.eq.s32.totalorder %s26, 0
    %p177 = por %p175, %p176
    %p178 = scmp.ne.s32.totalorder %s170, %s172
    %p179 = scmp.eq.s32.totalorder %s31, 1
    %p180 = por %p178, %p179
    %p181 = scmp.ne.s32.totalorder %s172, %s173
    %p182 = scmp.eq.s32.totalorder %s31, 0
    %p183 = por %p181, %p182
    %p184 = scmp.ne.s32.totalorder %s172, %s173
    %p185 = scmp.eq.s32.totalorder %s32, 1
    %p186 = por %p184, %p185
    %p188 = scmp.ne.s32.totalorder %s173, %s187
    %p189 = scmp.eq.s32.totalorder %s32, 0
    %p190 = por %p188, %p189
    %s192 = sadd.s32 %s191, 1
    %p195 = scmp.eq.s32.totalorder %s26, 1
    %p196 = scmp.ne.s32.totalorder %s191, %s193
    %p197 = scmp.eq.s32.totalorder %s26, 0
    %p198 = por %p196, %p197
    %p199 = scmp.ne.s32.totalorder %s191, %s193
    %p200 = scmp.eq.s32.totalorder %s31, 1
    %p201 = por %p199, %p200
    %p202 = scmp.ne.s32.totalorder %s193, %s194
    %p203 = scmp.eq.s32.totalorder %s31, 0
    %p204 = por %p202, %p203
    %p205 = scmp.ne.s32.totalorder %s193, %s194
    %p206 = scmp.eq.s32.totalorder %s32, 1
    %p207 = por %p205, %p206
    %p209 = scmp.ne.s32.totalorder %s194, %s208
    %p210 = scmp.eq.s32.totalorder %s32, 0
    %p211 = por %p209, %p210
    %s213 = sadd.s32 %s212, 1
    %p216 = scmp.eq.s32.totalorder %s26, 1
    %p217 = scmp.ne.s32.totalorder %s212, %s214
    %p218 = scmp.eq.s32.totalorder %s26, 0
    %p219 = por %p217, %p218
    %p220 = scmp.ne.s32.totalorder %s212, %s214
    %p221 = scmp.eq.s32.totalorder %s31, 1
    %p222 = por %p220, %p221
    %p223 = scmp.ne.s32.totalorder %s214, %s215
    %p224 = scmp.eq.s32.totalorder %s31, 0
    %p225 = por %p223, %p224
    %p226 = scmp.ne.s32.totalorder %s214, %s215
    %p227 = scmp.eq.s32.totalorder %s32, 1
    %p228 = por %p226, %p227
    %p230 = scmp.ne.s32.totalorder %s215, %s229
    %p231 = scmp.eq.s32.totalorder %s32, 0
    %p232 = por %p230, %p231
    %s234 = sadd.s32 %s233, 1
    %p237 = scmp.eq.s32.totalorder %s26, 1
    %p238 = scmp.ne.s32.totalorder %s233, %s235
    %p239 = scmp.eq.s32.totalorder %s26, 0
    %p240 = por %p238, %p239
    %p241 = scmp.ne.s32.totalorder %s233, %s235
    %p242 = scmp.eq.s32.totalorder %s31, 1
    %p243 = por %p241, %p242
    %p244 = scmp.ne.s32.totalorder %s235, %s236
    %p245 = scmp.eq.s32.totalorder %s31, 0
    %p246 = por %p244, %p245
    %p247 = scmp.ne.s32.totalorder %s235, %s236
    %p248 = scmp.eq.s32.totalorder %s32, 1
    %p249 = por %p247, %p248
    %p251 = scmp.ne.s32.totalorder %s236, %s250
    %p252 = scmp.eq.s32.totalorder %s32, 0
    %p253 = por %p251, %p252
    %s255 = sadd.s32 %s254, 1
    %p258 = scmp.eq.s32.totalorder %s26, 1
    %p259 = scmp.ne.s32.totalorder %s254, %s256
    %p260 = scmp.eq.s32.totalorder %s26, 0
    %p261 = por %p259, %p260
    %p262 = scmp.ne.s32.totalorder %s254, %s256
    %p263 = scmp.eq.s32.totalorder %s31, 1
    %p264 = por %p262, %p263
    %p265 = scmp.ne.s32.totalorder %s256, %s257
    %p266 = scmp.eq.s32.totalorder %s31, 0
    %p267 = por %p265, %p266
    %p268 = scmp.ne.s32.totalorder %s256, %s257
    %p269 = scmp.eq.s32.totalorder %s32, 1
    %p270 = por %p268, %p269
    %p272 = scmp.ne.s32.totalorder %s257, %s271
    %p273 = scmp.eq.s32.totalorder %s32, 0
    %p274 = por %p272, %p273
    %s276 = sadd.s32 %s275, 1
    %p279 = scmp.eq.s32.totalorder %s26, 1
    %p280 = scmp.ne.s32.totalorder %s275, %s277
    %p281 = scmp.eq.s32.totalorder %s26, 0
    %p282 = por %p280, %p281
    %p283 = scmp.ne.s32.totalorder %s275, %s277
    %p284 = scmp.eq.s32.totalorder %s31, 1
    %p285 = por %p283, %p284
    %p286 = scmp.ne.s32.totalorder %s277, %s278
    %p287 = scmp.eq.s32.totalorder %s31, 0
    %p288 = por %p286, %p287
    %p289 = scmp.ne.s32.totalorder %s277, %s278
    %p290 = scmp.eq.s32.totalorder %s32, 1
    %p291 = por %p289, %p290
    %p293 = scmp.ne.s32.totalorder %s278, %s292
    %p294 = scmp.eq.s32.totalorder %s32, 0
    %p295 = por %p293, %p294
    %s297 = sadd.s32 %s296, 1
    %p300 = scmp.eq.s32.totalorder %s26, 1
    %p301 = scmp.ne.s32.totalorder %s296, %s298
    %p302 = scmp.eq.s32.totalorder %s26, 0
    %p303 = por %p301, %p302
    %p304 = scmp.ne.s32.totalorder %s296, %s298
    %p305 = scmp.eq.s32.totalorder %s31, 1
    %p306 = por %p304, %p305
    %p307 = scmp.ne.s32.totalorder %s298, %s299
    %p308 = scmp.eq.s32.totalorder %s31, 0
    %p309 = por %p307, %p308
    %p310 = scmp.ne.s32.totalorder %s298, %s299
    %p311 = scmp.eq.s32.totalorder %s32, 1
    %p312 = por %p310, %p311
    %p314 = scmp.ne.s32.totalorder %s299, %s313
    %p315 = scmp.eq.s32.totalorder %s32, 0
    %p316 = por %p314, %p315
    %s318 = sadd.s32 %s317, 1
    %p321 = scmp.eq.s32.totalorder %s26, 1
    %p322 = scmp.ne.s32.totalorder %s317, %s319
    %p323 = scmp.eq.s32.totalorder %s26, 0
    %p324 = por %p322, %p323
    %p325 = scmp.ne.s32.totalorder %s317, %s319
    %p326 = scmp.eq.s32.totalorder %s31, 1
    %p327 = por %p325, %p326
    %p328 = scmp.ne.s32.totalorder %s319, %s320
    %p329 = scmp.eq.s32.totalorder %s31, 0
    %p330 = por %p328, %p329
    %p331 = scmp.ne.s32.totalorder %s319, %s320
    %p332 = scmp.eq.s32.totalorder %s32, 1
    %p333 = por %p331, %p332
    %p335 = scmp.ne.s32.totalorder %s320, %s334
    %p336 = scmp.eq.s32.totalorder %s32, 0
    %p337 = por %p335, %p336
    %s339 = sadd.s32 %s338, 1
    %p342 = scmp.eq.s32.totalorder %s26, 1
    %p343 = scmp.ne.s32.totalorder %s338, %s340
    %p344 = scmp.eq.s32.totalorder %s26, 0
    %p345 = por %p343, %p344
    %p346 = scmp.ne.s32.totalorder %s338, %s340
    %p347 = scmp.eq.s32.totalorder %s31, 1
    %p348 = por %p346, %p347
    %p349 = scmp.ne.s32.totalorder %s340, %s341
    %p350 = scmp.eq.s32.totalorder %s31, 0
    %p351 = por %p349, %p350
    %p352 = scmp.ne.s32.totalorder %s340, %s341
    %p353 = scmp.eq.s32.totalorder %s32, 1
    %p354 = por %p352, %p353
    %p356 = scmp.ne.s32.totalorder %s341, %s355
    %p357 = scmp.eq.s32.totalorder %s32, 0
    %p358 = por %p356, %p357
    %s360 = sadd.s32 %s359, 1
    %p363 = scmp.eq.s32.totalorder %s26, 1
    %p364 = scmp.ne.s32.totalorder %s359, %s361
    %p365 = scmp.eq.s32.totalorder %s26, 0
    %p366 = por %p364, %p365
    %p367 = scmp.ne.s32.totalorder %s359, %s361
    %p368 = scmp.eq.s32.totalorder %s31, 1
    %p369 = por %p367, %p368
    %p370 = scmp.ne.s32.totalorder %s361, %s362
    %p371 = scmp.eq.s32.totalorder %s31, 0
    %p372 = por %p370, %p371
    %p373 = scmp.ne.s32.totalorder %s361, %s362
    %p374 = scmp.eq.s32.totalorder %s32, 1
    %p375 = por %p373, %p374
    %p377 = scmp.ne.s32.totalorder %s362, %s376
    %p378 = scmp.eq.s32.totalorder %s32, 0
    %p379 = por %p377, %p378
    %s381 = sadd.s32 %s380, 1
    %p384 = scmp.eq.s32.totalorder %s26, 1
    %p385 = scmp.ne.s32.totalorder %s380, %s382
    %p386 = scmp.eq.s32.totalorder %s26, 0
    %p387 = por %p385, %p386
    %p388 = scmp.ne.s32.totalorder %s380, %s382
    %p389 = scmp.eq.s32.totalorder %s31, 1
    %p390 = por %p388, %p389
    %p391 = scmp.ne.s32.totalorder %s382, %s383
    %p392 = scmp.eq.s32.totalorder %s31, 0
    %p393 = por %p391, %p392
    %p394 = scmp.ne.s32.totalorder %s382, %s383
    %p395 = scmp.eq.s32.totalorder %s32, 1
    %p396 = por %p394, %p395
    %p398 = scmp.ne.s32.totalorder %s383, %s397
    %p399 = scmp.eq.s32.totalorder %s32, 0
    %p400 = por %p398, %p399
    %s402 = sadd.s32 %s401, 1
    %p405 = scmp.eq.s32.totalorder %s26, 1
    %p406 = scmp.ne.s32.totalorder %s401, %s403
    %p407 = scmp.eq.s32.totalorder %s26, 0
    %p408 = por %p406, %p407
    %p409 = scmp.ne.s32.totalorder %s401, %s403
    %p410 = scmp.eq.s32.totalorder %s31, 1
    %p411 = por %p409, %p410
    %p412 = scmp.ne.s32.totalorder %s403, %s404
    %p413 = scmp.eq.s32.totalorder %s31, 0
    %p414 = por %p412, %p413
    %p415 = scmp.ne.s32.totalorder %s403, %s404
    %p416 = scmp.eq.s32.totalorder %s32, 1
    %p417 = por %p415, %p416
    %p419 = scmp.ne.s32.totalorder %s404, %s418
    %p420 = scmp.eq.s32.totalorder %s32, 0
    %p421 = por %p419, %p420
    %s422 = ssub.s32 %s26, %s33
    %p423 = scmp.eq.s32.totalorder %s422, 0
    %s425 = sadd.s32 %s424, 1
    %s426 = scalar_select %p423, %s424, %s425
    %p429 = pneg %p423
    %p430 = scmp.eq.s32.totalorder %s26, 1
    %p431 = por %p429, %p430
    %p432 = scmp.ne.s32.totalorder %s424, %s427
    %p433 = scmp.eq.s32.totalorder %s26, 0
    %p434 = por %p432, %p433
    %p435 = scmp.ne.s32.totalorder %s424, %s427
    %p436 = scmp.eq.s32.totalorder %s31, 1
    %p437 = por %p435, %p436
    %p438 = scmp.ne.s32.totalorder %s427, %s428
    %p439 = scmp.eq.s32.totalorder %s31, 0
    %p440 = por %p438, %p439
    %p441 = scmp.ne.s32.totalorder %s427, %s428
    %p442 = scmp.eq.s32.totalorder %s32, 1
    %p443 = por %p441, %p442
    %p445 = scmp.ne.s32.totalorder %s428, %s444
    %p446 = scmp.eq.s32.totalorder %s32, 0
    %p447 = por %p445, %p446
    %s448 = ssub.s32 %s26, %s33
    %p449 = scmp.eq.s32.totalorder %s448, 0
    %s451 = sadd.s32 %s450, 1
    %s452 = scalar_select %p449, %s450, %s451
    %p455 = pneg %p449
    %p456 = scmp.eq.s32.totalorder %s26, 1
    %p457 = por %p455, %p456
    %p458 = scmp.ne.s32.totalorder %s450, %s453
    %p459 = scmp.eq.s32.totalorder %s26, 0
    %p460 = por %p458, %p459
    %p461 = scmp.ne.s32.totalorder %s450, %s453
    %p462 = scmp.eq.s32.totalorder %s31, 1
    %p463 = por %p461, %p462
    %p464 = scmp.ne.s32.totalorder %s453, %s454
    %p465 = scmp.eq.s32.totalorder %s31, 0
    %p466 = por %p464, %p465
    %p467 = scmp.ne.s32.totalorder %s453, %s454
    %p468 = scmp.eq.s32.totalorder %s32, 1
    %p469 = por %p467, %p468
    %p471 = scmp.ne.s32.totalorder %s454, %s470
    %p472 = scmp.eq.s32.totalorder %s32, 0
    %p473 = por %p471, %p472
    %p474 = scmp.le.s32.totalorder 1, %s26
    %p475 = scmp.lt.s32.totalorder %s26, 3
    %p476 = pnand %p474, %p475
    %p477 = pneg %p476
    // Predicated region
    $region9: #{vit_forward.4} parent=5 // pred_check
      _
    $region10: #{vit_forward.4} parent=5 // pred_check_branch
      %479 = sbr.rel (%p476) target = $region12
    $region11: #{vit_forward.4} parent=5 // pred_region
      %s480 = ssub.s32 %s26, 1
      // Predicated region
      $region13: #{vit_forward.4} parent=11 // pred_check
        %p481 = pneg %p99
      $region14: #{vit_forward.4} parent=11 // pred_check_branch
        %483 = sbr.rel (%p481) target = $region16
      $region15: #{vit_forward.4} parent=11 // pred_region
        _
      $region16: #{vit_forward.4} parent=11 // pred_fallthru
        _
      // Predicated region
      $region17: #{vit_forward.4} parent=11 // pred_check
        %p484 = pneg %p120
      $region18: #{vit_forward.4} parent=11 // pred_check_branch
        %486 = sbr.rel (%p484) target = $region20
      $region19: #{vit_forward.4} parent=11 // pred_region
        _
      $region20: #{vit_forward.4} parent=11 // pred_fallthru
        _
      // Predicated region
      $region21: #{vit_forward.4} parent=11 // pred_check
        %p487 = pneg %p141
      $region22: #{vit_forward.4} parent=11 // pred_check_branch
        %489 = sbr.rel (%p487) target = $region24
      $region23: #{vit_forward.4} parent=11 // pred_region
        _
      $region24: #{vit_forward.4} parent=11 // pred_fallthru
        _
      // Predicated region
      $region25: #{vit_forward.4} parent=11 // pred_check
        %p490 = pneg %p162
      $region26: #{vit_forward.4} parent=11 // pred_check_branch
        %492 = sbr.rel (%p490) target = $region28
      $region27: #{vit_forward.4} parent=11 // pred_region
        _
      $region28: #{vit_forward.4} parent=11 // pred_fallthru
        _
      // Predicated region
      $region29: #{vit_forward.4} parent=11 // pred_check
        %p493 = pneg %p183
      $region30: #{vit_forward.4} parent=11 // pred_check_branch
        %495 = sbr.rel (%p493) target = $region32
      $region31: #{vit_forward.4} parent=11 // pred_region
        _
      $region32: #{vit_forward.4} parent=11 // pred_fallthru
        _
      // Predicated region
      $region33: #{vit_forward.4} parent=11 // pred_check
        %p496 = pneg %p204
      $region34: #{vit_forward.4} parent=11 // pred_check_branch
        %498 = sbr.rel (%p496) target = $region36
      $region35: #{vit_forward.4} parent=11 // pred_region
        _
      $region36: #{vit_forward.4} parent=11 // pred_fallthru
        _
      // Predicated region
      $region37: #{vit_forward.4} parent=11 // pred_check
        %p499 = pneg %p225
      $region38: #{vit_forward.4} parent=11 // pred_check_branch
        %501 = sbr.rel (%p499) target = $region40
      $region39: #{vit_forward.4} parent=11 // pred_region
        _
      $region40: #{vit_forward.4} parent=11 // pred_fallthru
        _
      // Predicated region
      $region41: #{vit_forward.4} parent=11 // pred_check
        %p502 = pneg %p246
      $region42: #{vit_forward.4} parent=11 // pred_check_branch
        %504 = sbr.rel (%p502) target = $region44
      $region43: #{vit_forward.4} parent=11 // pred_region
        _
      $region44: #{vit_forward.4} parent=11 // pred_fallthru
        _
      // Predicated region
      $region45: #{vit_forward.4} parent=11 // pred_check
        %p505 = pneg %p267
      $region46: #{vit_forward.4} parent=11 // pred_check_branch
        %507 = sbr.rel (%p505) target = $region48
      $region47: #{vit_forward.4} parent=11 // pred_region
        _
      $region48: #{vit_forward.4} parent=11 // pred_fallthru
        _
      // Predicated region
      $region49: #{vit_forward.4} parent=11 // pred_check
        %p508 = pneg %p288
      $region50: #{vit_forward.4} parent=11 // pred_check_branch
        %510 = sbr.rel (%p508) target = $region52
      $region51: #{vit_forward.4} parent=11 // pred_region
        _
      $region52: #{vit_forward.4} parent=11 // pred_fallthru
        _
      // Predicated region
      $region53: #{vit_forward.4} parent=11 // pred_check
        %p511 = pneg %p309
      $region54: #{vit_forward.4} parent=11 // pred_check_branch
        %513 = sbr.rel (%p511) target = $region56
      $region55: #{vit_forward.4} parent=11 // pred_region
        _
      $region56: #{vit_forward.4} parent=11 // pred_fallthru
        _
      // Predicated region
      $region57: #{vit_forward.4} parent=11 // pred_check
        %p514 = pneg %p330
      $region58: #{vit_forward.4} parent=11 // pred_check_branch
        %516 = sbr.rel (%p514) target = $region60
      $region59: #{vit_forward.4} parent=11 // pred_region
        _
      $region60: #{vit_forward.4} parent=11 // pred_fallthru
        _
      // Predicated region
      $region61: #{vit_forward.4} parent=11 // pred_check
        %p517 = pneg %p351
      $region62: #{vit_forward.4} parent=11 // pred_check_branch
        %519 = sbr.rel (%p517) target = $region64
      $region63: #{vit_forward.4} parent=11 // pred_region
        _
      $region64: #{vit_forward.4} parent=11 // pred_fallthru
        _
      // Predicated region
      $region65: #{vit_forward.4} parent=11 // pred_check
        %p520 = pneg %p372
      $region66: #{vit_forward.4} parent=11 // pred_check_branch
        %522 = sbr.rel (%p520) target = $region68
      $region67: #{vit_forward.4} parent=11 // pred_region
        _
      $region68: #{vit_forward.4} parent=11 // pred_fallthru
        _
      // Predicated region
      $region69: #{vit_forward.4} parent=11 // pred_check
        %p523 = pneg %p393
      $region70: #{vit_forward.4} parent=11 // pred_check_branch
        %525 = sbr.rel (%p523) target = $region72
      $region71: #{vit_forward.4} parent=11 // pred_region
        _
      $region72: #{vit_forward.4} parent=11 // pred_fallthru
        _
      // Predicated region
      $region73: #{vit_forward.4} parent=11 // pred_check
        %p526 = pneg %p414
      $region74: #{vit_forward.4} parent=11 // pred_check_branch
        %528 = sbr.rel (%p526) target = $region76
      $region75: #{vit_forward.4} parent=11 // pred_region
        _
      $region76: #{vit_forward.4} parent=11 // pred_fallthru
        _
    $region12: #{vit_forward.4} parent=5 // pred_fallthru
      _
    %p529 = scmp.lt.s32.totalorder %s26, 2
    // Predicated region
    $region77: #{vit_forward.4} parent=5 // pred_check
      %p530 = pneg %p529
    $region78: #{vit_forward.4} parent=5 // pred_check_branch
      %532 = sbr.rel (%p530) target = $region80
    $region79: #{vit_forward.4} parent=5 // pred_region
      // Predicated region
      $region81: #{vit_forward.4} parent=79 // pred_check
        %p533 = pneg %p46
      $region82: #{vit_forward.4} parent=79 // pred_check_branch
        %535 = sbr.rel (%p533) target = $region84
      $region83: #{vit_forward.4} parent=79 // pred_region
        %p536 = scmp.lt.s32.totalorder %s26, 1
        %s537 = scalar_select %p536, %s26, 1
        %s538 = smul.addr %s537, 3
        %s539 = smul.addr %s538, 8
        %s540 = scalar_lea.vmem %s0, %s539
      $region84: #{vit_forward.4} parent=79 // pred_fallthru
        _
      // Predicated region
      $region85: #{vit_forward.4} parent=79 // pred_check
        %p541 = pneg %p72
      $region86: #{vit_forward.4} parent=79 // pred_check_branch
        %543 = sbr.rel (%p541) target = $region88
      $region87: #{vit_forward.4} parent=79 // pred_region
        %p544 = scmp.lt.s32.totalorder %s26, 1
        %s545 = scalar_select %p544, %s26, 1
        %s546 = smul.addr %s545, 3
        %s547 = smul.addr %s546, 4
        %s548 = scalar_lea.vmem %s1, %s547
      $region88: #{vit_forward.4} parent=79 // pred_fallthru
        _
    $region80: #{vit_forward.4} parent=5 // pred_fallthru
      _
    %p549 = scmp.le.s32.totalorder 1, %s26
    %p550 = scmp.lt.s32.totalorder %s26, 3
    %p551 = pnand %p549, %p550
    %p552 = pneg %p551
    // Predicated region
    $region89: #{vit_forward.4} parent=5 // pred_check
      _
    $region90: #{vit_forward.4} parent=5 // pred_check_branch
      %554 = sbr.rel (%p551) target = $region92
    $region91: #{vit_forward.4} parent=5 // pred_region
      %s555 = ssub.s32 %s26, 1
      %p556 = scmp.lt.s32.totalorder %s31, 1
      %s557 = scalar_select %p556, %s31, 1
      %s558 = smul.addr %s557, 3
      %s559 = smul.addr %s558, 8
      %s560 = scalar_lea.vmem %s0, %s559
      %p561 = pneg %p52
      %p562 = pneg %p49
      %p563 = scmp.lt.s32.totalorder %s31, 1
      %s564 = scalar_select %p563, %s31, 1
      %s565 = smul.addr %s564, 3
      %s566 = smul.addr %s565, 4
      %s567 = scalar_lea.vmem %s1, %s566
      %p568 = pneg %p78
      %p569 = pneg %p75
      %p570 = pneg %p99
      %p571 = pneg %p96
      %p572 = pneg %p120
      %p573 = pneg %p117
      %p574 = pneg %p141
      %p575 = pneg %p138
      %p576 = pneg %p162
      %p577 = pneg %p159
      %p578 = pneg %p183
      %p579 = pneg %p180
      %p580 = pneg %p204
      %p581 = pneg %p201
      %p582 = pneg %p225
      %p583 = pneg %p222
      %p584 = pneg %p246
      %p585 = pneg %p243
      %p586 = pneg %p267
      %p587 = pneg %p264
      %p588 = pneg %p288
      %p589 = pneg %p285
      %p590 = pneg %p309
      %p591 = pneg %p306
      %p592 = pneg %p330
      %p593 = pneg %p327
      %p594 = pneg %p351
      %p595 = pneg %p348
      %p596 = pneg %p372
      %p597 = pneg %p369
      %p598 = pneg %p393
      %p599 = pneg %p390
      %p600 = pneg %p414
      %p601 = pneg %p411
      %p602 = pneg %p440
      %p603 = pneg %p437
      %p604 = scmp.lt.s32.totalorder %s31, 1
      %s605 = scalar_select %p604, %s31, 1
      %s606 = smul.addr %s605, 3
      %s607 = smul.addr %s606, 8
      %s608 = scalar_lea.vmem %s18, %s607
      %p609 = pneg %p466
      %p610 = pneg %p463
      %p611 = scmp.lt.s32.totalorder %s31, 1
      %s612 = scalar_select %p611, %s31, 1
      %s613 = smul.addr %s612, 3
      %s614 = smul.addr %s613, 4
      %s615 = scalar_lea.vmem %s19, %s614
      %p616 = scmp.lt.s32.totalorder %s31, 1
      %s617 = scalar_select %p616, %s31, 1
      %s618 = smul.addr %s617, 3
      %s619 = smul.addr %s618, 8
      %s620 = scalar_lea.vmem %s0, %s619
      %p621 = scmp.lt.s32.totalorder %s31, 1
      %s622 = scalar_select %p621, %s31, 1
      %s623 = smul.addr %s622, 3
      %s624 = smul.addr %s623, 4
      %s625 = scalar_lea.vmem %s1, %s624
      %p626 = scmp.lt.s32.totalorder %s31, 1
      %s627 = scalar_select %p626, %s31, 1
      %s628 = smul.addr %s627, 3
      %s629 = smul.addr %s628, 8
      %s630 = scalar_lea.vmem %s18, %s629
      %p631 = scmp.lt.s32.totalorder %s31, 1
      %s632 = scalar_select %p631, %s31, 1
      %s633 = smul.addr %s632, 3
      %s634 = smul.addr %s633, 4
      %s635 = scalar_lea.vmem %s19, %s634
      %v637 = vld [vmem:[%s620] sm:$0xff]
      %v638 = vld [vmem:[%s620 + $0x8] sm:$0xff]
      %v639 = vld [vmem:[%s620 + $0x10] sm:$0x1]
      %v640 = vld [vmem:[%s625] sm:$0xf]
      %v641 = vld [vmem:[%s625 + $0x4] sm:$0xf]
      %v642 = vld [vmem:[%s625 + $0x8] sm:$0x1]
      %v643 = vld [vmem:[%s2] sm:$0xf]
      %v644 = vld [vmem:[%s2 + $0x4] sm:$0xf]
      %v645 = vld [vmem:[%s2 + $0x8] sm:$0xf]
      %v646 = vld [vmem:[%s2 + $0xc] sm:$0xf]
      %v647 = vld [vmem:[%s3] sm:$0x1]
      %v649 = vlaneseq
      %v650 = vshrl.u32 %v649, 7
      %v651 = vsub.s32 0, %v650
      %v652 = vrot.slane %v647, %v651
      %v657 = vunpack.c.l.b16 %v640
      %v658 = vunpack.c.l.b16 %v641
      %v659 = vunpack.c.l.b16 %v642
      %v660 = vpack.c.b16 %v658, %v657
      %v661 = vpack.c.b16 %v659, %v659
      %v666 = vunpack.c.l.b16 %v643
      %v667 = vunpack.c.l.b16 %v644
      %v668 = vunpack.c.l.b16 %v645
      %v669 = vunpack.c.l.b16 %v646
      %v670 = vpack.c.b16 %v667, %v666
      %v671 = vpack.c.b16 %v669, %v668
      %vm674 = vcmask 261120
      %v676 = vsel %vm674, %v660, 0
      %v679 = vsel %vm674, %v661, 0
      %681 = vmatprep.subr.bf16.mxu0 0
      %682 = vmatpush1.bf16.msra.mxu0 %v670
      %683 = vmatprep.subr.bf16.mxu0 0
      %684 = vmatpush1.bf16.msra.mxu0 %v671
      %685 = vmatprep.subr.bf16.mxu0 0
      %686 = vmatpush1.bf16.msra.mxu0 0
      %687 = vmatprep.subr.bf16.mxu0 0
      %688 = vmatpush1.bf16.msra.mxu0 0
      %689 = vmatprep.subr.bf16.mxu0 0
      %690 = vmatpush1.bf16.msra.mxu0 0
      %691 = vmatprep.subr.bf16.mxu0 0
      %692 = vmatpush1.bf16.msra.mxu0 0
      %693 = vmatprep.subr.bf16.mxu0 0
      %694 = vmatpush1.bf16.msra.mxu0 0
      %695 = vmatprep.subr.bf16.mxu0 0
      %696 = vmatpush1.bf16.msra.mxu0 0
      %697 = vmatprep.subr.bf16.mxu0 0
      %698 = vmatpush1.bf16.msra.mxu0 0
      %699 = vmatprep.subr.bf16.mxu0 0
      %700 = vmatpush1.bf16.msra.mxu0 0
      %701 = vmatprep.subr.bf16.mxu0 0
      %702 = vmatpush1.bf16.msra.mxu0 0
      %703 = vmatprep.subr.bf16.mxu0 0
      %704 = vmatpush1.bf16.msra.mxu0 0
      %705 = vmatprep.subr.bf16.mxu0 0
      %706 = vmatpush1.bf16.msra.mxu0 0
      %707 = vmatprep.subr.bf16.mxu0 0
      %708 = vmatpush1.bf16.msra.mxu0 0
      %709 = vmatprep.subr.bf16.mxu0 0
      %710 = vmatpush1.bf16.msra.mxu0 0
      %711 = vmatprep.subr.bf16.mxu0 0
      %712 = vmatpush1.bf16.msra.mxu0 0
      %713 = vmatprep.mubr.bf16.mxu0 0
      %714 = vmatmul.mubr.bf16.gmra.mrb[0].mxu0 %v676
      %v715 = vpop.f32.mrb[0].mxu0
      %v716 = vadd.f32 %v652, %v715
      %v717 = vpop.f32.mrb[0].mxu0
      %v718 = vpop.f32.mrb[0].mxu0
      %v719 = vadd.f32 %v652, %v718
      %v720 = vpop.f32.mrb[0].mxu0
      %721 = vmatprep.mubr.bf16.mxu0 0
      %722 = vmatmul.mubr.bf16.gmra.mrb[0].mxu0 %v679
      %v723 = vpop.f32.mrb[0].mxu0
      %v724 = vadd.f32 %v652, %v723
      %v725 = vpop.f32.mrb[0].mxu0
      %v726 = vpop.f32.mrb[0].mxu0
      %v727 = vpop.f32.mrb[0].mxu0
      %728 = vdwg.mxu0
      %v729 = vadd.f32 %v637, %v716
      %v730 = vadd.f32 %v638, %v719
      %v731 = vadd.f32 %v639, %v724
      %v732 = vld [vmem:[%s4] sm:$0x1]
      %v733 = vld [vmem:[%s5] sm:$0x1]
      %v734 = vsel %vm674, %v729, 0.0
      %735 = vadd.xlane.f32.xlu0 %v734
      %v736 = vpop.xlane.xlu0 %735
      %v737 = vsel %vm674, %v730, 0.0
      %738 = vadd.xlane.f32.xlu0 %v737
      %v739 = vpop.xlane.xlu0 %738
      %vm740 = vcmask 253952
      %v741 = vsel %vm740, %v731, 0.0
      %742 = vadd.xlane.f32.xlu0 %v741
      %v743 = vpop.xlane.xlu0 %742
      %v744 = vrcp.pop 32.0
      %v745 = vmul.f32 %v736, %v744
      %v746 = vmul.f32 %v739, %v744
      %v747 = vmul.f32 %v743, %v744
      %v748 = vsub.f32 %v729, %v745
      %v749 = vsub.f32 %v730, %v746
      %v750 = vsub.f32 %v731, %v747
      %v751 = vmul.f32 %v748, %v748
      %v752 = vmul.f32 %v749, %v749
      %v753 = vmul.f32 %v750, %v750
      %v754 = vsel %vm674, %v751, 0.0
      %755 = vadd.xlane.f32.xlu0 %v754
      %v756 = vpop.xlane.xlu0 %755
      %v757 = vsel %vm674, %v752, 0.0
      %758 = vadd.xlane.f32.xlu0 %v757
      %v759 = vpop.xlane.xlu0 %758
      %v760 = vsel %vm740, %v753, 0.0
      %761 = vadd.xlane.f32.xlu0 %v760
      %v762 = vpop.xlane.xlu0 %761
      %v763 = vmul.f32 %v756, %v744
      %v764 = vmul.f32 %v759, %v744
      %v765 = vmul.f32 %v762, %v744
      %v766 = vadd.f32 %v763, 1e-05
      %v767 = vadd.f32 %v764, 1e-05
      %v768 = vadd.f32 %v765, 1e-05
      %v769 = vrsqrt.pop %v766
      %v770 = vrsqrt.pop %v767
      %v771 = vrsqrt.pop %v768
      %v772 = vmul.f32 %v748, %v769
      %v773 = vmul.f32 %v749, %v770
      %v774 = vmul.f32 %v750, %v771
      %v776 = vlaneseq
      %v777 = vshrl.u32 %v776, 7
      %v778 = vsub.s32 0, %v777
      %v779 = vrot.slane %v732, %v778
      %v781 = vmul.f32 %v772, %v779
      %v782 = vmul.f32 %v773, %v779
      %v783 = vmul.f32 %v774, %v779
      %v785 = vlaneseq
      %v786 = vshrl.u32 %v785, 7
      %v787 = vsub.s32 0, %v786
      %v788 = vrot.slane %v733, %v787
      %v790 = vadd.f32 %v781, %v788
      %v791 = vadd.f32 %v782, %v788
      %v792 = vadd.f32 %v783, %v788
      %v793 = vpack.c.bf16 %v791, %v790
      %v794 = vpack.c.bf16 %v792, %v792
      %v795 = vld [vmem:[%s6] sm:$0xf]
      %v796 = vld [vmem:[%s6 + $0x4] sm:$0xf]
      %v797 = vld [vmem:[%s6 + $0x8] sm:$0xf]
      %v798 = vld [vmem:[%s6 + $0xc] sm:$0xf]
      %v799 = vld [vmem:[%s7] sm:$0x1]
      %v801 = vlaneseq
      %v802 = vshrl.u32 %v801, 7
      %v803 = vsub.s32 0, %v802
      %v804 = vrot.slane %v799, %v803
      %v810 = vunpack.c.l.b16 %v795
      %v811 = vunpack.c.l.b16 %v796
      %v812 = vunpack.c.l.b16 %v797
      %v813 = vunpack.c.l.b16 %v798
      %v814 = vpack.c.b16 %v811, %v810
      %v815 = vpack.c.b16 %v813, %v812
      %v819 = vsel %vm674, %v793, 0
      %v822 = vsel %vm674, %v794, 0
      %824 = vmatprep.subr.bf16.mxu0 0
      %825 = vmatpush1.bf16.msra.mxu0 %v814
      %826 = vmatprep.subr.bf16.mxu0 0
      %827 = vmatpush1.bf16.msra.mxu0 %v815
      %828 = vmatprep.subr.bf16.mxu0 0
      %829 = vmatpush1.bf16.msra.mxu0 0
      %830 = vmatprep.subr.bf16.mxu0 0
      %831 = vmatpush1.bf16.msra.mxu0 0
      %832 = vmatprep.subr.bf16.mxu0 0
      %833 = vmatpush1.bf16.msra.mxu0 0
      %834 = vmatprep.subr.bf16.mxu0 0
      %835 = vmatpush1.bf16.msra.mxu0 0
      %836 = vmatprep.subr.bf16.mxu0 0
      %837 = vmatpush1.bf16.msra.mxu0 0
      %838 = vmatprep.subr.bf16.mxu0 0
      %839 = vmatpush1.bf16.msra.mxu0 0
      %840 = vmatprep.subr.bf16.mxu0 0
      %841 = vmatpush1.bf16.msra.mxu0 0
      %842 = vmatprep.subr.bf16.mxu0 0
      %843 = vmatpush1.bf16.msra.mxu0 0
      %844 = vmatprep.subr.bf16.mxu0 0
      %845 = vmatpush1.bf16.msra.mxu0 0
      %846 = vmatprep.subr.bf16.mxu0 0
      %847 = vmatpush1.bf16.msra.mxu0 0
      %848 = vmatprep.subr.bf16.mxu0 0
      %849 = vmatpush1.bf16.msra.mxu0 0
      %850 = vmatprep.subr.bf16.mxu0 0
      %851 = vmatpush1.bf16.msra.mxu0 0
      %852 = vmatprep.subr.bf16.mxu0 0
      %853 = vmatpush1.bf16.msra.mxu0 0
      %854 = vmatprep.subr.bf16.mxu0 0
      %855 = vmatpush1.bf16.msra.mxu0 0
      %856 = vmatprep.mubr.bf16.mxu0 0
      %857 = vmatmul.mubr.bf16.gmra.mrb[0].mxu0 %v819
      %v858 = vpop.f32.mrb[0].mxu0
      %v859 = vadd.f32 %v804, %v858
      %v860 = vpop.f32.mrb[0].mxu0
      %v861 = vpop.f32.mrb[0].mxu0
      %v862 = vadd.f32 %v804, %v861
      %v863 = vpop.f32.mrb[0].mxu0
      %864 = vmatprep.mubr.bf16.mxu0 0
      %865 = vmatmul.mubr.bf16.gmra.mrb[0].mxu0 %v822
      %v866 = vpop.f32.mrb[0].mxu0
      %v867 = vadd.f32 %v804, %v866
      %v868 = vpop.f32.mrb[0].mxu0
      %v869 = vpop.f32.mrb[0].mxu0
      %v870 = vpop.f32.mrb[0].mxu0
      %871 = vdwg.mxu0
      %v872 = vmul.f32 %v859, 0.5
      %v873 = vmul.f32 %v862, 0.5
      %v874 = vmul.f32 %v867, 0.5
      %v875 = vmul.f32 %v859, 0.70710677
      %v876 = vmul.f32 %v862, 0.70710677
      %v877 = vmul.f32 %v867, 0.70710677
      %v878 = verf.f32.pop %v875
      %v879 = verf.f32.pop %v876
      %v880 = verf.f32.pop %v877
      %v881 = vadd.f32 %v878, 1.0
      %v882 = vadd.f32 %v879, 1.0
      %v883 = vadd.f32 %v880, 1.0
      %v884 = vmul.f32 %v872, %v881
      %v885 = vmul.f32 %v873, %v882
      %v886 = vmul.f32 %v874, %v883
      %v887 = vpack.c.bf16 %v885, %v884
      %v888 = vpack.c.bf16 %v886, %v886
      %v889 = vld [vmem:[%s8] sm:$0xf]
      %v890 = vld [vmem:[%s8 + $0x4] sm:$0xf]
      %v891 = vld [vmem:[%s8 + $0x8] sm:$0xf]
      %v892 = vld [vmem:[%s8 + $0xc] sm:$0xf]
      %v893 = vld [vmem:[%s8 + $0x10] sm:$0xf]
      %v894 = vld [vmem:[%s8 + $0x14] sm:$0xf]
      %v895 = vld [vmem:[%s8 + $0x18] sm:$0xf]
      %v896 = vld [vmem:[%s8 + $0x1c] sm:$0xf]
      %v897 = vld [vmem:[%s8 + $0x20] sm:$0xf]
      %v898 = vld [vmem:[%s8 + $0x24] sm:$0xf]
      %v899 = vld [vmem:[%s8 + $0x28] sm:$0xf]
      %v900 = vld [vmem:[%s8 + $0x2c] sm:$0xf]
      %v901 = vld [vmem:[%s8 + $0x30] sm:$0xf]
      %v902 = vld [vmem:[%s8 + $0x34] sm:$0xf]
      %v903 = vld [vmem:[%s8 + $0x38] sm:$0xf]
      %v904 = vld [vmem:[%s8 + $0x3c] sm:$0xf]
      %v905 = vld [vmem:[%s9] sm:$0x1]
      %v907 = vlaneseq
      %v908 = vshrl.u32 %v907, 7
      %v909 = vsub.s32 0, %v908
      %v910 = vrot.slane %v905, %v909
      %v928 = vunpack.c.l.b16 %v889
      %v929 = vunpack.c.l.b16 %v890
      %v930 = vunpack.c.l.b16 %v891
      %v931 = vunpack.c.l.b16 %v892
      %v932 = vunpack.c.l.b16 %v893
      %v933 = vunpack.c.l.b16 %v894
      %v934 = vunpack.c.l.b16 %v895
      %v935 = vunpack.c.l.b16 %v896
      %v936 = vunpack.c.l.b16 %v897
      %v937 = vunpack.c.l.b16 %v898
      %v938 = vunpack.c.l.b16 %v899
      %v939 = vunpack.c.l.b16 %v900
      %v940 = vunpack.c.l.b16 %v901
      %v941 = vunpack.c.l.b16 %v902
      %v942 = vunpack.c.l.b16 %v903
      %v943 = vunpack.c.l.b16 %v904
      %v944 = vpack.c.b16 %v929, %v928
      %v945 = vpack.c.b16 %v931, %v930
      %v946 = vpack.c.b16 %v933, %v932
      %v947 = vpack.c.b16 %v935, %v934
      %v948 = vpack.c.b16 %v937, %v936
      %v949 = vpack.c.b16 %v939, %v938
      %v950 = vpack.c.b16 %v941, %v940
      %v951 = vpack.c.b16 %v943, %v942
      %960 = vmatprep.subr.bf16.mxu0 0
      %961 = vmatpush1.bf16.msra.mxu0 %v944
      %962 = vmatprep.subr.bf16.mxu0 0
      %963 = vmatpush1.bf16.msra.mxu0 %v945
      %964 = vmatprep.subr.bf16.mxu0 0
      %965 = vmatpush1.bf16.msra.mxu0 %v946
      %966 = vmatprep.subr.bf16.mxu0 0
      %967 = vmatpush1.bf16.msra.mxu0 %v947
      %968 = vmatprep.subr.bf16.mxu0 0
      %969 = vmatpush1.bf16.msra.mxu0 %v948
      %970 = vmatprep.subr.bf16.mxu0 0
      %971 = vmatpush1.bf16.msra.mxu0 %v949
      %972 = vmatprep.subr.bf16.mxu0 0
      %973 = vmatpush1.bf16.msra.mxu0 %v950
      %974 = vmatprep.subr.bf16.mxu0 0
      %975 = vmatpush1.bf16.msra.mxu0 %v951
      %976 = vmatprep.subr.bf16.mxu0 0
      %977 = vmatpush1.bf16.msra.mxu0 0
      %978 = vmatprep.subr.bf16.mxu0 0
      %979 = vmatpush1.bf16.msra.mxu0 0
      %980 = vmatprep.subr.bf16.mxu0 0
      %981 = vmatpush1.bf16.msra.mxu0 0
      %982 = vmatprep.subr.bf16.mxu0 0
      %983 = vmatpush1.bf16.msra.mxu0 0
      %984 = vmatprep.subr.bf16.mxu0 0
      %985 = vmatpush1.bf16.msra.mxu0 0
      %986 = vmatprep.subr.bf16.mxu0 0
      %987 = vmatpush1.bf16.msra.mxu0 0
      %988 = vmatprep.subr.bf16.mxu0 0
      %989 = vmatpush1.bf16.msra.mxu0 0
      %990 = vmatprep.subr.bf16.mxu0 0
      %991 = vmatpush1.bf16.msra.mxu0 0
      %992 = vmatprep.mubr.bf16.mxu0 0
      %993 = vmatmul.mubr.bf16.gmra.mrb[0].mxu0 %v887
      %v994 = vpop.f32.mrb[0].mxu0
      %v995 = vadd.f32 %v910, %v994
      %v996 = vpop.f32.mrb[0].mxu0
      %v997 = vpop.f32.mrb[0].mxu0
      %v998 = vadd.f32 %v910, %v997
      %v999 = vpop.f32.mrb[0].mxu0
      %1000 = vmatprep.mubr.bf16.mxu0 0
      %1001 = vmatmul.mubr.bf16.gmra.mrb[0].mxu0 %v888
      %v1002 = vpop.f32.mrb[0].mxu0
      %v1003 = vadd.f32 %v910, %v1002
      %v1004 = vpop.f32.mrb[0].mxu0
      %v1005 = vpop.f32.mrb[0].mxu0
      %v1006 = vpop.f32.mrb[0].mxu0
      %1007 = vdwg.mxu0
      %v1008 = vadd.f32 %v729, %v995
      %v1009 = vadd.f32 %v730, %v998
      %v1010 = vadd.f32 %v731, %v1003
      %1011 = vst.msk [vmem:[%s630] sm:$0xff] %vm674, %v1008
      %1012 = vst.msk [vmem:[%s630 + $0x8] sm:$0xff] %vm674, %v1009
      %1013 = vst.msk [vmem:[%s630 + $0x10] sm:$0x1] %vm740, %v1010
      %v1014 = vld [vmem:[%s10] sm:$0x1]
      %v1015 = vld [vmem:[%s11] sm:$0x1]
      %v1016 = vsel %vm674, %v1008, 0.0
      %1017 = vadd.xlane.f32.xlu0 %v1016
      %v1018 = vpop.xlane.xlu0 %1017
      %v1019 = vsel %vm674, %v1009, 0.0
      %1020 = vadd.xlane.f32.xlu0 %v1019
      %v1021 = vpop.xlane.xlu0 %1020
      %v1022 = vsel %vm740, %v1010, 0.0
      %1023 = vadd.xlane.f32.xlu0 %v1022
      %v1024 = vpop.xlane.xlu0 %1023
      %v1025 = vmul.f32 %v1018, %v744
      %v1026 = vmul.f32 %v1021, %v744
      %v1027 = vmul.f32 %v1024, %v744
      %v1028 = vsub.f32 %v1008, %v1025
      %v1029 = vsub.f32 %v1009, %v1026
      %v1030 = vsub.f32 %v1010, %v1027
      %v1031 = vmul.f32 %v1028, %v1028
      %v1032 = vmul.f32 %v1029, %v1029
      %v1033 = vmul.f32 %v1030, %v1030
      %v1034 = vsel %vm674, %v1031, 0.0
      %1035 = vadd.xlane.f32.xlu0 %v1034
      %v1036 = vpop.xlane.xlu0 %1035
      %v1037 = vsel %vm674, %v1032, 0.0
      %1038 = vadd.xlane.f32.xlu0 %v1037
      %v1039 = vpop.xlane.xlu0 %1038
      %v1040 = vsel %vm740, %v1033, 0.0
      %1041 = vadd.xlane.f32.xlu0 %v1040
      %v1042 = vpop.xlane.xlu0 %1041
      %v1043 = vmul.f32 %v1036, %v744
      %v1044 = vmul.f32 %v1039, %v744
      %v1045 = vmul.f32 %v1042, %v744
      %v1046 = vadd.f32 %v1043, 1e-05
      %v1047 = vadd.f32 %v1044, 1e-05
      %v1048 = vadd.f32 %v1045, 1e-05
      %v1049 = vrsqrt.pop %v1046
      %v1050 = vrsqrt.pop %v1047
      %v1051 = vrsqrt.pop %v1048
      %v1052 = vmul.f32 %v1028, %v1049
      %v1053 = vmul.f32 %v1029, %v1050
      %v1054 = vmul.f32 %v1030, %v1051
      %v1056 = vlaneseq
      %v1057 = vshrl.u32 %v1056, 7
      %v1058 = vsub.s32 0, %v1057
      %v1059 = vrot.slane %v1014, %v1058
      %v1061 = vmul.f32 %v1052, %v1059
      %v1062 = vmul.f32 %v1053, %v1059
      %v1063 = vmul.f32 %v1054, %v1059
      %v1065 = vlaneseq
      %v1066 = vshrl.u32 %v1065, 7
      %v1067 = vsub.s32 0, %v1066
      %v1068 = vrot.slane %v1015, %v1067
      %v1070 = vadd.f32 %v1061, %v1068
      %v1071 = vadd.f32 %v1062, %v1068
      %v1072 = vadd.f32 %v1063, %v1068
      %v1073 = vpack.c.bf16 %v1071, %v1070
      %v1074 = vpack.c.bf16 %v1072, %v1072
      %v1075 = vld [vmem:[%s12] sm:$0xf]
      %v1076 = vld [vmem:[%s12 + $0x4] sm:$0xf]
      %v1077 = vld [vmem:[%s12 + $0x8] sm:$0xf]
      %v1078 = vld [vmem:[%s12 + $0xc] sm:$0xf]
      %v1079 = vld [vmem:[%s13] sm:$0x1]
      %v1081 = vlaneseq
      %v1082 = vshrl.u32 %v1081, 7
      %v1083 = vsub.s32 0, %v1082
      %v1084 = vrot.slane %v1079, %v1083
      %v1090 = vunpack.c.l.b16 %v1075
      %v1091 = vunpack.c.l.b16 %v1076
      %v1092 = vunpack.c.l.b16 %v1077
      %v1093 = vunpack.c.l.b16 %v1078
      %v1094 = vpack.c.b16 %v1091, %v1090
      %v1095 = vpack.c.b16 %v1093, %v1092
      %v1099 = vsel %vm674, %v1073, 0
      %v1102 = vsel %vm674, %v1074, 0
      %1104 = vmatprep.subr.bf16.mxu0 0
      %1105 = vmatpush1.bf16.msra.mxu0 %v1094
      %1106 = vmatprep.subr.bf16.mxu0 0
      %1107 = vmatpush1.bf16.msra.mxu0 %v1095
      %1108 = vmatprep.subr.bf16.mxu0 0
      %1109 = vmatpush1.bf16.msra.mxu0 0
      %1110 = vmatprep.subr.bf16.mxu0 0
      %1111 = vmatpush1.bf16.msra.mxu0 0
      %1112 = vmatprep.subr.bf16.mxu0 0
      %1113 = vmatpush1.bf16.msra.mxu0 0
      %1114 = vmatprep.subr.bf16.mxu0 0
      %1115 = vmatpush1.bf16.msra.mxu0 0
      %1116 = vmatprep.subr.bf16.mxu0 0
      %1117 = vmatpush1.bf16.msra.mxu0 0
      %1118 = vmatprep.subr.bf16.mxu0 0
      %1119 = vmatpush1.bf16.msra.mxu0 0
      %1120 = vmatprep.subr.bf16.mxu0 0
      %1121 = vmatpush1.bf16.msra.mxu0 0
      %1122 = vmatprep.subr.bf16.mxu0 0
      %1123 = vmatpush1.bf16.msra.mxu0 0
      %1124 = vmatprep.subr.bf16.mxu0 0
      %1125 = vmatpush1.bf16.msra.mxu0 0
      %1126 = vmatprep.subr.bf16.mxu0 0
      %1127 = vmatpush1.bf16.msra.mxu0 0
      %1128 = vmatprep.subr.bf16.mxu0 0
      %1129 = vmatpush1.bf16.msra.mxu0 0
      %1130 = vmatprep.subr.bf16.mxu0 0
      %1131 = vmatpush1.bf16.msra.mxu0 0
      %1132 = vmatprep.subr.bf16.mxu0 0
      %1133 = vmatpush1.bf16.msra.mxu0 0
      %1134 = vmatprep.subr.bf16.mxu0 0
      %1135 = vmatpush1.bf16.msra.mxu0 0
      %1136 = vmatprep.mubr.bf16.mxu0 0
      %1137 = vmatmul.mubr.bf16.gmra.mrb[0].mxu0 %v1099
      %v1138 = vpop.f32.mrb[0].mxu0
      %v1139 = vadd.f32 %v1084, %v1138
      %v1140 = vpop.f32.mrb[0].mxu0
      %v1141 = vpop.f32.mrb[0].mxu0
      %v1142 = vadd.f32 %v1084, %v1141
      %v1143 = vpop.f32.mrb[0].mxu0
      %1144 = vmatprep.mubr.bf16.mxu0 0
      %1145 = vmatmul.mubr.bf16.gmra.mrb[0].mxu0 %v1102
      %v1146 = vpop.f32.mrb[0].mxu0
      %v1147 = vadd.f32 %v1084, %v1146
      %v1148 = vpop.f32.mrb[0].mxu0
      %v1149 = vpop.f32.mrb[0].mxu0
      %v1150 = vpop.f32.mrb[0].mxu0
      %1151 = vdwg.mxu0
      %v1152 = vld [vmem:[%s14] sm:$0xf]
      %v1153 = vld [vmem:[%s14 + $0x4] sm:$0xf]
      %v1154 = vld [vmem:[%s14 + $0x8] sm:$0xf]
      %v1155 = vld [vmem:[%s14 + $0xc] sm:$0xf]
      %v1156 = vld [vmem:[%s15] sm:$0x1]
      %v1158 = vlaneseq
      %v1159 = vshrl.u32 %v1158, 7
      %v1160 = vsub.s32 0, %v1159
      %v1161 = vrot.slane %v1156, %v1160
      %v1167 = vunpack.c.l.b16 %v1152
      %v1168 = vunpack.c.l.b16 %v1153
      %v1169 = vunpack.c.l.b16 %v1154
      %v1170 = vunpack.c.l.b16 %v1155
      %v1171 = vpack.c.b16 %v1168, %v1167
      %v1172 = vpack.c.b16 %v1170, %v1169
      %1175 = vmatprep.subr.bf16.mxu0 0
      %1176 = vmatpush1.bf16.msra.mxu0 %v1171
      %1177 = vmatprep.subr.bf16.mxu0 0
      %1178 = vmatpush1.bf16.msra.mxu0 %v1172
      %1179 = vmatprep.subr.bf16.mxu0 0
      %1180 = vmatpush1.bf16.msra.mxu0 0
      %1181 = vmatprep.subr.bf16.mxu0 0
      %1182 = vmatpush1.bf16.msra.mxu0 0
      %1183 = vmatprep.subr.bf16.mxu0 0
      %1184 = vmatpush1.bf16.msra.mxu0 0
      %1185 = vmatprep.subr.bf16.mxu0 0
      %1186 = vmatpush1.bf16.msra.mxu0 0
      %1187 = vmatprep.subr.bf16.mxu0 0
      %1188 = vmatpush1.bf16.msra.mxu0 0
      %1189 = vmatprep.subr.bf16.mxu0 0
      %1190 = vmatpush1.bf16.msra.mxu0 0
      %1191 = vmatprep.subr.bf16.mxu0 0
      %1192 = vmatpush1.bf16.msra.mxu0 0
      %1193 = vmatprep.subr.bf16.mxu0 0
      %1194 = vmatpush1.bf16.msra.mxu0 0
      %1195 = vmatprep.subr.bf16.mxu0 0
      %1196 = vmatpush1.bf16.msra.mxu0 0
      %1197 = vmatprep.subr.bf16.mxu0 0
      %1198 = vmatpush1.bf16.msra.mxu0 0
      %1199 = vmatprep.subr.bf16.mxu0 0
      %1200 = vmatpush1.bf16.msra.mxu0 0
      %1201 = vmatprep.subr.bf16.mxu0 0
      %1202 = vmatpush1.bf16.msra.mxu0 0
      %1203 = vmatprep.subr.bf16.mxu0 0
      %1204 = vmatpush1.bf16.msra.mxu0 0
      %1205 = vmatprep.subr.bf16.mxu0 0
      %1206 = vmatpush1.bf16.msra.mxu0 0
      %1207 = vmatprep.mubr.bf16.mxu0 0
      %1208 = vmatmul.mubr.bf16.gmra.mrb[0].mxu0 %v1099
      %v1209 = vpop.f32.mrb[0].mxu0
      %v1210 = vadd.f32 %v1161, %v1209
      %v1211 = vpop.f32.mrb[0].mxu0
      %v1212 = vpop.f32.mrb[0].mxu0
      %v1213 = vadd.f32 %v1161, %v1212
      %v1214 = vpop.f32.mrb[0].mxu0
      %1215 = vmatprep.mubr.bf16.mxu0 0
      %1216 = vmatmul.mubr.bf16.gmra.mrb[0].mxu0 %v1102
      %v1217 = vpop.f32.mrb[0].mxu0
      %v1218 = vadd.f32 %v1161, %v1217
      %v1219 = vpop.f32.mrb[0].mxu0
      %v1220 = vpop.f32.mrb[0].mxu0
      %v1221 = vpop.f32.mrb[0].mxu0
      %1222 = vdwg.mxu0
      %v1223 = vld [vmem:[%s16] sm:$0xf]
      %v1224 = vld [vmem:[%s16 + $0x4] sm:$0xf]
      %v1225 = vld [vmem:[%s16 + $0x8] sm:$0xf]
      %v1226 = vld [vmem:[%s16 + $0xc] sm:$0xf]
      %v1227 = vld [vmem:[%s17] sm:$0x1]
      %v1229 = vlaneseq
      %v1230 = vshrl.u32 %v1229, 7
      %v1231 = vsub.s32 0, %v1230
      %v1232 = vrot.slane %v1227, %v1231
      %v1238 = vunpack.c.l.b16 %v1223
      %v1239 = vunpack.c.l.b16 %v1224
      %v1240 = vunpack.c.l.b16 %v1225
      %v1241 = vunpack.c.l.b16 %v1226
      %v1242 = vpack.c.b16 %v1239, %v1238
      %v1243 = vpack.c.b16 %v1241, %v1240
      %1246 = vmatprep.subr.bf16.mxu0 0
      %1247 = vmatpush1.bf16.msra.mxu0 %v1242
      %1248 = vmatprep.subr.bf16.mxu0 0
      %1249 = vmatpush1.bf16.msra.mxu0 %v1243
      %1250 = vmatprep.subr.bf16.mxu0 0
      %1251 = vmatpush1.bf16.msra.mxu0 0
      %1252 = vmatprep.subr.bf16.mxu0 0
      %1253 = vmatpush1.bf16.msra.mxu0 0
      %1254 = vmatprep.subr.bf16.mxu0 0
      %1255 = vmatpush1.bf16.msra.mxu0 0
      %1256 = vmatprep.subr.bf16.mxu0 0
      %1257 = vmatpush1.bf16.msra.mxu0 0
      %1258 = vmatprep.subr.bf16.mxu0 0
      %1259 = vmatpush1.bf16.msra.mxu0 0
      %1260 = vmatprep.subr.bf16.mxu0 0
      %1261 = vmatpush1.bf16.msra.mxu0 0
      %1262 = vmatprep.subr.bf16.mxu0 0
      %1263 = vmatpush1.bf16.msra.mxu0 0
      %1264 = vmatprep.subr.bf16.mxu0 0
      %1265 = vmatpush1.bf16.msra.mxu0 0
      %1266 = vmatprep.subr.bf16.mxu0 0
      %1267 = vmatpush1.bf16.msra.mxu0 0
      %1268 = vmatprep.subr.bf16.mxu0 0
      %1269 = vmatpush1.bf16.msra.mxu0 0
      %1270 = vmatprep.subr.bf16.mxu0 0
      %1271 = vmatpush1.bf16.msra.mxu0 0
      %1272 = vmatprep.subr.bf16.mxu0 0
      %1273 = vmatpush1.bf16.msra.mxu0 0
      %1274 = vmatprep.subr.bf16.mxu0 0
      %1275 = vmatpush1.bf16.msra.mxu0 0
      %1276 = vmatprep.subr.bf16.mxu0 0
      %1277 = vmatpush1.bf16.msra.mxu0 0
      %1278 = vmatprep.mubr.bf16.mxu0 0
      %1279 = vmatmul.mubr.bf16.gmra.mrb[0].mxu0 %v1099
      %v1280 = vpop.f32.mrb[0].mxu0
      %v1281 = vadd.f32 %v1232, %v1280
      %v1282 = vpop.f32.mrb[0].mxu0
      %v1283 = vpop.f32.mrb[0].mxu0
      %v1284 = vadd.f32 %v1232, %v1283
      %v1285 = vpop.f32.mrb[0].mxu0
      %1286 = vmatprep.mubr.bf16.mxu0 0
      %1287 = vmatmul.mubr.bf16.gmra.mrb[0].mxu0 %v1102
      %v1288 = vpop.f32.mrb[0].mxu0
      %v1289 = vadd.f32 %v1232, %v1288
      %v1290 = vpop.f32.mrb[0].mxu0
      %v1291 = vpop.f32.mrb[0].mxu0
      %v1292 = vpop.f32.mrb[0].mxu0
      %1293 = vdwg.mxu0
      %v1294 = vpack.c.bf16 %v1142, %v1139
      %v1295 = vpack.c.bf16 %v1147, %v1147
      %v1296 = vpack.c.bf16 %v1213, %v1210
      %v1297 = vpack.c.bf16 %v1218, %v1218
      %v1299 = vsel %vm674, %v1294, 0
      %v1302 = vsel %vm674, %v1295, 0
      %v1305 = vsel %vm674, %v1296, 0
      %v1308 = vsel %vm674, %v1297, 0
      %1310 = vmatprep.subr.bf16.mxu0 0
      %1311 = vmatpush1.bf16.xpose.msra.mxu0 %v1305
      %1312 = vmatprep.subr.bf16.mxu0 0
      %1313 = vmatpush1.bf16.xpose.msra.mxu0 %v1308
      %1314 = vmatprep.subr.bf16.mxu0 0
      %1315 = vmatpush1.bf16.xpose.msra.mxu0 0
      %1316 = vmatprep.subr.bf16.mxu0 0
      %1317 = vmatpush1.bf16.xpose.msra.mxu0 0
      %1318 = vmatprep.subr.bf16.mxu0 0
      %1319 = vmatpush1.bf16.xpose.msra.mxu0 0
      %1320 = vmatprep.subr.bf16.mxu0 0
      %1321 = vmatpush1.bf16.xpose.msra.mxu0 0
      %1322 = vmatprep.subr.bf16.mxu0 0
      %1323 = vmatpush1.bf16.xpose.msra.mxu0 0
      %1324 = vmatprep.subr.bf16.mxu0 0
      %1325 = vmatpush1.bf16.xpose.msra.mxu0 0
      %1326 = vmatprep.subr.bf16.mxu0 0
      %1327 = vmatpush1.bf16.xpose.msra.mxu0 0
      %1328 = vmatprep.subr.bf16.mxu0 0
      %1329 = vmatpush1.bf16.xpose.msra.mxu0 0
      %1330 = vmatprep.subr.bf16.mxu0 0
      %1331 = vmatpush1.bf16.xpose.msra.mxu0 0
      %1332 = vmatprep.subr.bf16.mxu0 0
      %1333 = vmatpush1.bf16.xpose.msra.mxu0 0
      %1334 = vmatprep.subr.bf16.mxu0 0
      %1335 = vmatpush1.bf16.xpose.msra.mxu0 0
      %1336 = vmatprep.subr.bf16.mxu0 0
      %1337 = vmatpush1.bf16.xpose.msra.mxu0 0
      %1338 = vmatprep.subr.bf16.mxu0 0
      %1339 = vmatpush1.bf16.xpose.msra.mxu0 0
      %1340 = vmatprep.subr.bf16.mxu0 0
      %1341 = vmatpush1.bf16.xpose.msra.mxu0 0
      %1342 = vmatprep.mubr.bf16.mxu0 0
      %1343 = vmatmul.mubr.bf16.gmra.mrb[0].mxu0 %v1299
      %v1344 = vpop.f32.mrb[0].mxu0
      %v1345 = vadd.f32 0.0, %v1344
      %v1346 = vpop.f32.mrb[0].mxu0
      %v1347 = vpop.f32.mrb[0].mxu0
      %v1348 = vadd.f32 0.0, %v1347
      %v1349 = vpop.f32.mrb[0].mxu0
      %1350 = vmatprep.mubr.bf16.mxu0 0
      %1351 = vmatmul.mubr.bf16.gmra.mrb[0].mxu0 %v1302
      %v1352 = vpop.f32.mrb[0].mxu0
      %v1353 = vadd.f32 0.0, %v1352
      %v1354 = vpop.f32.mrb[0].mxu0
      %v1355 = vpop.f32.mrb[0].mxu0
      %v1356 = vpop.f32.mrb[0].mxu0
      %1357 = vdwg.mxu0
      %v1358 = vmul.f32 %v1345, 0.25
      %v1359 = vmul.f32 %v1348, 0.25
      %v1360 = vmul.f32 %v1353, 0.25
      %vm1361 = vcmask 138240
      %v1362 = vsel %vm1361, %v1358, -inf
      %1363 = vmax.xlane.f32.xlu0 %v1362
      %v1364 = vpop.xlane.xlu0 %1363
      %v1365 = vsel %vm1361, %v1359, -inf
      %1366 = vmax.xlane.f32.xlu0 %v1365
      %v1367 = vpop.xlane.xlu0 %1366
      %vm1368 = vcmask 131072
      %v1369 = vsel %vm1368, %v1360, -inf
      %1370 = vmax.xlane.f32.xlu0 %v1369
      %v1371 = vpop.xlane.xlu0 %1370
      %v1372 = vsub.f32 %v1358, %v1364
      %v1373 = vsub.f32 %v1359, %v1367
      %v1374 = vsub.f32 %v1360, %v1371
      %v1375 = vmul.f32 %v1372, 1.442695
      %v1376 = vpow.pop %v1375
      %v1377 = vmul.f32 %v1373, 1.442695
      %v1378 = vpow.pop %v1377
      %v1379 = vmul.f32 %v1374, 1.442695
      %v1380 = vpow.pop %v1379
      %v1381 = vsel %vm1361, %v1376, 0.0
      %1382 = vadd.xlane.f32.xlu0 %v1381
      %v1383 = vpop.xlane.xlu0 %1382
      %v1384 = vsel %vm1361, %v1378, 0.0
      %1385 = vadd.xlane.f32.xlu0 %v1384
      %v1386 = vpop.xlane.xlu0 %1385
      %v1387 = vsel %vm1368, %v1380, 0.0
      %1388 = vadd.xlane.f32.xlu0 %v1387
      %v1389 = vpop.xlane.xlu0 %1388
      %v1390 = vrcp.pop %v1383
      %v1391 = vrcp.pop %v1386
      %v1392 = vrcp.pop %v1389
      %v1393 = vmul.f32 %v1376, %v1390
      %v1394 = vmul.f32 %v1378, %v1391
      %v1395 = vmul.f32 %v1380, %v1392
      %v1396 = vpack.c.bf16 %v1394, %v1393
      %v1397 = vpack.c.bf16 %v1395, %v1395
      %v1398 = vpack.c.bf16 %v1284, %v1281
      %v1399 = vpack.c.bf16 %v1289, %v1289
      %v1401 = vsel %vm1361, %v1396, 0
      %v1404 = vsel %vm1361, %v1397, 0
      %vm1406 = vcmask 1040384
      %v1407 = vsel 0, 4294967295, 65535
      %v1408 = vsel %vm1406, %v1407, 0
      %v1410 = vand.u32 %v1399, %v1408
      %1412 = vmatprep.subr.bf16.mxu0 0
      %1413 = vmatpush1.bf16.msra.mxu0 %v1398
      %1414 = vmatprep.subr.bf16.mxu0 0
      %1415 = vmatpush1.bf16.msra.mxu0 %v1410
      %1416 = vmatprep.subr.bf16.mxu0 0
      %1417 = vmatpush1.bf16.msra.mxu0 0
      %1418 = vmatprep.subr.bf16.mxu0 0
      %1419 = vmatpush1.bf16.msra.mxu0 0
      %1420 = vmatprep.subr.bf16.mxu0 0
      %1421 = vmatpush1.bf16.msra.mxu0 0
      %1422 = vmatprep.subr.bf16.mxu0 0
      %1423 = vmatpush1.bf16.msra.mxu0 0
      %1424 = vmatprep.subr.bf16.mxu0 0
      %1425 = vmatpush1.bf16.msra.mxu0 0
      %1426 = vmatprep.subr.bf16.mxu0 0
      %1427 = vmatpush1.bf16.msra.mxu0 0
      %1428 = vmatprep.subr.bf16.mxu0 0
      %1429 = vmatpush1.bf16.msra.mxu0 0
      %1430 = vmatprep.subr.bf16.mxu0 0
      %1431 = vmatpush1.bf16.msra.mxu0 0
      %1432 = vmatprep.subr.bf16.mxu0 0
      %1433 = vmatpush1.bf16.msra.mxu0 0
      %1434 = vmatprep.subr.bf16.mxu0 0
      %1435 = vmatpush1.bf16.msra.mxu0 0
      %1436 = vmatprep.subr.bf16.mxu0 0
      %1437 = vmatpush1.bf16.msra.mxu0 0
      %1438 = vmatprep.subr.bf16.mxu0 0
      %1439 = vmatpush1.bf16.msra.mxu0 0
      %1440 = vmatprep.subr.bf16.mxu0 0
      %1441 = vmatpush1.bf16.msra.mxu0 0
      %1442 = vmatprep.subr.bf16.mxu0 0
      %1443 = vmatpush1.bf16.msra.mxu0 0
      %1444 = vmatprep.mubr.bf16.mxu0 0
      %1445 = vmatmul.mubr.bf16.gmra.mrb[0].mxu0 %v1401
      %v1446 = vpop.f32.mrb[0].mxu0
      %v1447 = vadd.f32 0.0, %v1446
      %v1448 = vpop.f32.mrb[0].mxu0
      %v1449 = vpop.f32.mrb[0].mxu0
      %v1450 = vadd.f32 0.0, %v1449
      %v1451 = vpop.f32.mrb[0].mxu0
      %1452 = vmatprep.mubr.bf16.mxu0 0
      %1453 = vmatmul.mubr.bf16.gmra.mrb[0].mxu0 %v1404
      %v1454 = vpop.f32.mrb[0].mxu0
      %v1455 = vadd.f32 0.0, %v1454
      %v1456 = vpop.f32.mrb[0].mxu0
      %v1457 = vpop.f32.mrb[0].mxu0
      %v1458 = vpop.f32.mrb[0].mxu0
      %1459 = vdwg.mxu0
      %v1460 = vpack.c.bf16 %v1450, %v1447
      %v1461 = vpack.c.bf16 %v1455, %v1455
      %v1464 = vunpack.c.l.b16 %v1460
      %v1465 = vunpack.c.h.b16 %v1460
      %v1466 = vunpack.c.l.b16 %v1461
      %v1467 = vpack.c.b16 %v1464, %v1464
      %v1468 = vpack.c.b16 %v1465, %v1465
      %v1469 = vpack.c.b16 %v1466, %v1466
      %vm1473 = vcmask 257024
      %1474 = vst.msk [vmem:[%s635] sm:$0xf] %vm1473, %v1467
      %1475 = vst.msk [vmem:[%s635 + $0x4] sm:$0xf] %vm1473, %v1468
      %vm1476 = vcmask 253952
      %vm1477 = vsmask.f32 256
      %vm1478 = vmand %vm1476, %vm1477
      %v1479 = vld [vmem:[%s635 + $0x8] sm:$0x1]
      %v1480 = vsel %vm1478, %v1469, %v1479
      %1481 = vst [vmem:[%s635 + $0x8] sm:$0x1] %v1480
      %p1482 = scmp.lt.s32.totalorder %s31, 1
      %s1483 = scalar_select %p1482, %s31, 1
      %s1484 = smul.addr %s1483, 3
      %s1485 = smul.addr %s1484, 8
      %s1486 = scalar_lea.vmem %s18, %s1485
      %p1487 = scmp.lt.s32.totalorder %s31, 1
      %s1488 = scalar_select %p1487, %s31, 1
      %s1489 = smul.addr %s1488, 3
      %s1490 = smul.addr %s1489, 4
      %s1491 = scalar_lea.vmem %s19, %s1490
      // Predicated region
      $region93: #{vit_forward.4} parent=91 // pred_check
        %p1492 = pneg %p437
      $region94: #{vit_forward.4} parent=91 // pred_check_branch
        %1494 = sbr.rel (%p1492) target = $region96
      $region95: #{vit_forward.4} parent=91 // pred_region
        _
      $region96: #{vit_forward.4} parent=91 // pred_fallthru
        _
      // Predicated region
      $region97: #{vit_forward.4} parent=91 // pred_check
        %p1495 = pneg %p463
      $region98: #{vit_forward.4} parent=91 // pred_check_branch
        %1497 = sbr.rel (%p1495) target = $region100
      $region99: #{vit_forward.4} parent=91 // pred_region
        _
      $region100: #{vit_forward.4} parent=91 // pred_fallthru
        _
    $region92: #{vit_forward.4} parent=5 // pred_fallthru
      _
    %p1498 = scmp.le.s32.totalorder 2, %s26
    // Predicated region
    $region101: #{vit_forward.4} parent=5 // pred_check
      %p1499 = pneg %p1498
    $region102: #{vit_forward.4} parent=5 // pred_check_branch
      %1501 = sbr.rel (%p1499) target = $region104
    $region103: #{vit_forward.4} parent=5 // pred_region
      %s1502 = ssub.s32 %s26, 2
      // Predicated region
      $region105: #{vit_forward.4} parent=103 // pred_check
        %p1503 = pneg %p443
      $region106: #{vit_forward.4} parent=103 // pred_check_branch
        %1505 = sbr.rel (%p1503) target = $region108
      $region107: #{vit_forward.4} parent=103 // pred_region
        %p1506 = scmp.lt.s32.totalorder %s32, 1
        %s1507 = scalar_select %p1506, %s32, 1
        %s1508 = smul.addr %s1507, 3
        %s1509 = smul.addr %s1508, 8
        %s1510 = scalar_lea.vmem %s18, %s1509
      $region108: #{vit_forward.4} parent=103 // pred_fallthru
        _
      // Predicated region
      $region109: #{vit_forward.4} parent=103 // pred_check
        %p1511 = pneg %p469
      $region110: #{vit_forward.4} parent=103 // pred_check_branch
        %1513 = sbr.rel (%p1511) target = $region112
      $region111: #{vit_forward.4} parent=103 // pred_region
        %p1514 = scmp.lt.s32.totalorder %s32, 1
        %s1515 = scalar_select %p1514, %s32, 1
        %s1516 = smul.addr %s1515, 3
        %s1517 = smul.addr %s1516, 4
        %s1518 = scalar_lea.vmem %s19, %s1517
      $region112: #{vit_forward.4} parent=103 // pred_fallthru
        _
    $region104: #{vit_forward.4} parent=5 // pred_fallthru
      _
  $region6: #{vit_forward.4} parent=0 // loop_footer
    %s30 = sadd.s32 1, %s26
  $region7: #{vit_forward.4} parent=0 // loop_footer_branch
    %25 = sbr.rel target = $region3
  $region8: #{vit_forward.4} parent=0 // loop_exit
    _

</llo_original>
